<compile_context>
chip_gen: v7x
topology: tpu7x:2x2x1
jax: 0.10.0
libtpu: 0.0.40
codegen_flags: <defaults>
</compile_context>

<pallas_src>
import jax
import jax.numpy as jnp
from jax import lax
from jax.experimental import pallas as pl
from jax.experimental.pallas import tpu as pltpu


# ------------------------------ fused kernel ---------------------------------

def _make_edsr_kernel(H, W, F, n_resblocks, res_scale, pad_off, compute_dtype):
    """Builds the fused EDSR_3d forward kernel body (one image per grid step)."""
    HW = H * W
    interior = pad_off + W          # flat offset of padded row 1 (multiple of 128)
    cdt = compute_dtype

    def kernel(x_ref, w_ref, b_ref, o_ref, planes_ref, y_ref, t_ref):
        # Zero the 3-plane buffer once per image.  Only its interior is
        # rewritten per conv, so the vertical/horizontal zero padding stays
        # valid for every layer of every image (done unconditionally so it is
        # also correct when the batch axis is split across TensorCores).
        planes_ref[...] = jnp.zeros_like(planes_ref)

        # (1, HW) horizontal-edge masks; jnp.where broadcasts them over F rows.
        wpos = lax.broadcasted_iota(jnp.int32, (1, HW), 1) % W
        not_left = wpos != 0
        not_right = wpos != (W - 1)

        def conv(layer, src, relu):
            # src: (F, HW) f32 activation feeding this conv.
            # Build the three dx-shifted zero-padded planes.  The +/-1 lane
            # store offset implements the horizontal shift; the wrap masks zero
            # the lanes that would leak across image-row boundaries.
            planes_ref[F:2 * F, interior:interior + HW] = src.astype(cdt)
            planes_ref[0:F, interior + 1:interior + 1 + HW] = (
                jnp.where(not_right, src, 0.0).astype(cdt))
            planes_ref[2 * F:3 * F, interior - 1:interior - 1 + HW] = (
                jnp.where(not_left, src, 0.0).astype(cdt))
            # Three accumulating K=3F matmuls (one per dy): the vertical shift
            # is a whole-row lane offset into the padded planes.  bf16 inputs,
            # f32 accumulation on the MXU.
            acc = jnp.dot(w_ref[3 * layer],
                          planes_ref[:, pad_off:pad_off + HW],
                          preferred_element_type=jnp.float32)
            for dy in (1, 2):
                start = pad_off + dy * W
                acc = acc + jnp.dot(w_ref[3 * layer + dy],
                                    planes_ref[:, start:start + HW],
                                    preferred_element_type=jnp.float32)
            acc = acc + b_ref[layer]          # (F, 1) bias, broadcast over lanes
            if relu:
                acc = jnp.maximum(acc, 0.0)
            return acc

        # head: conv(in_channel -> n_feats)
        y = conv(0, x_ref[...], relu=False)
        y_ref[...] = y
        t_ref[...] = y

        # body: ResBlocks (conv -> ReLU -> conv, * res_scale, + skip)
        def resblock(i, carry):
            layer = 1 + 2 * i                 # traced; dynamic weight indexing
            a = conv(layer, t_ref[...], relu=True)
            res = conv(layer + 1, a, relu=False)
            if res_scale != 1.0:
                res = res * jnp.float32(res_scale)
            t_ref[...] = res + t_ref[...]
            return carry

        lax.fori_loop(0, n_resblocks, resblock, 0)

        # final body conv + global skip of the head output
        out = conv(1 + 2 * n_resblocks, t_ref[...], relu=False) + y_ref[...]
        o_ref[...] = out.astype(o_ref.dtype)

    return kernel


# ------------------------------- wrapper --------------------------------------

def _pack_conv_weight(w, F):
    """(3,3,Cin,Cout) HWIO -> (3, Cout, 3F): per-dy slabs, K ordered (dx, cin)."""
    K, _, Cin, Cout = w.shape
    if Cin < F:
        w = jnp.pad(w, ((0, 0), (0, 0), (0, F - Cin), (0, 0)))
    return jnp.transpose(w.reshape(K, K * F, Cout), (0, 2, 1))     # (3, Cout, 3F)


def edsr3d_forward(x_nchw, params, *, res_scale=1.0, compute_dtype=jnp.bfloat16):
    """EDSR_3d forward.  x_nchw: (N, Cin, H, W) like PyTorch; returns NCHW f32."""
    N, Cin, H, W = x_nchw.shape
    F = params["head_w"].shape[-1]
    HW = H * W
    n_resblocks = len(params["blocks"])
    L = 2 + 2 * n_resblocks
    assert Cin <= F and F % 8 == 0 and HW % 128 == 0

    # NCHW is already channels-on-sublane: pad channels and flatten H, W.
    x = x_nchw.astype(jnp.float32)
    if Cin < F:
        x = jnp.pad(x, ((0, 0), (0, F - Cin), (0, 0), (0, 0)))
    x = x.reshape(N, F, HW)

    # Pack all conv weights / biases once; they stay resident in VMEM.
    ws = [_pack_conv_weight(params["head_w"], F)]
    bs = [params["head_b"]]
    for (w1, b1, w2, b2) in params["blocks"]:
        ws += [_pack_conv_weight(w1, F), _pack_conv_weight(w2, F)]
        bs += [b1, b2]
    ws.append(_pack_conv_weight(params["body_tail_w"], F))
    bs.append(params["body_tail_b"])
    # (L, 3, F, 3F) -> (3L, F, 3F): row 3*layer + dy = per-dy slab of conv `layer`.
    w_all = jnp.stack(ws).reshape(3 * L, F, 3 * F).astype(compute_dtype)
    b_all = jnp.stack(bs).astype(jnp.float32).reshape(L, F, 1)

    # Zero-padded flat plane buffer: one zero image row above/below plus a
    # symmetric lane pad so the center store starts at a multiple of 128.
    pad_off = ((-W) % 128) or 128
    apad_w = pad_off + (H + 2) * W + pad_off

    kernel = _make_edsr_kernel(H, W, F, n_resblocks, float(res_scale),
                               pad_off, compute_dtype)

    itm = jnp.dtype(compute_dtype).itemsize
    footprint = (2 * 2 * F * HW * 4                  # in + out blocks, double-buffered
                 + 2 * (3 * L * F * 3 * F * itm)     # resident weights (x2 buffers)
                 + 2 * (L * F * 128 * 4)             # biases (lane-padded)
                 + 3 * F * apad_w * itm              # dx-plane scratch
                 + 2 * F * HW * 4)                   # head-skip + running activation
    vmem_limit = int(min(100 << 20, max(32 << 20, footprint + (8 << 20))))

    cost = pl.CostEstimate(
        flops=2 * N * L * F * (9 * F) * HW,
        transcendentals=0,
        bytes_accessed=int(x.size * 4 + w_all.size * itm + b_all.size * 4
                           + N * F * HW * 4))

    out = pl.pallas_call(
        kernel,
        out_shape=jax.ShapeDtypeStruct((N, F, HW), jnp.float32),
        grid_spec=pltpu.PrefetchScalarGridSpec(
            num_scalar_prefetch=0,
            grid=(N,),
            in_specs=[
                pl.BlockSpec((None, F, HW), lambda n: (n, 0, 0)),          # image n
                pl.BlockSpec((3 * L, F, 3 * F), lambda n: (0, 0, 0)),      # weights
                pl.BlockSpec((L, F, 1), lambda n: (0, 0, 0)),              # biases
            ],
            out_specs=pl.BlockSpec((None, F, HW), lambda n: (n, 0, 0)),
            scratch_shapes=[
                pltpu.VMEM((3 * F, apad_w), compute_dtype),  # dx-shifted planes
                pltpu.VMEM((F, HW), jnp.float32),            # head output (skip)
                pltpu.VMEM((F, HW), jnp.float32),            # running activation
            ]),
        compiler_params=pltpu.CompilerParams(
            dimension_semantics=("parallel",),               # batch -> both TCs
            vmem_limit_bytes=vmem_limit),
        cost_estimate=cost,
    )(x, w_all, b_all)

    return out.reshape(N, F, H, W)                           # NCHW, no transpose


# -------------------------- pure-JAX reference ---------------------------------

def _conv_ref(x, w, b):
    y = lax.conv_general_dilated(
        x, w, window_strides=(1, 1), padding="SAME",
        dimension_numbers=("NHWC", "HWIO", "NHWC"))
    return y + b.reshape(1, 1, 1, -1)


def edsr3d_reference(x_nchw, params, *, res_scale=1.0):
    x = jnp.transpose(x_nchw, (0, 2, 3, 1)).astype(jnp.float32)
    y = _conv_ref(x, params["head_w"], params["head_b"])
    t = y
    for (w1, b1, w2, b2) in params["blocks"]:
        a = jnp.maximum(_conv_ref(t, w1, b1), 0.0)
        t = _conv_ref(a, w2, b2) * res_scale + t
    out = _conv_ref(t, params["body_tail_w"], params["body_tail_b"]) + y
    return jnp.transpose(out, (0, 3, 1, 2))


# ---------------------------------- main ----------------------------------------

if __name__ == "__main__":
    # args: in_channel=4, n_feats=32, kernel_size=3, n_resblocks=2,
    #       act=ReLU, res_scale=1.0, conv=3x3 same-padding conv with bias.
    N, Cin, H, W = 2, 4, 16, 16
    n_feats, K, n_resblocks, res_scale = 32, 3, 2, 1.0

    key = jax.random.PRNGKey(0)

    def nrm(k, shape, s=0.05):
        return jax.random.normal(k, shape, jnp.float32) * s

    keys = jax.random.split(key, 4 + 4 * n_resblocks)
    ki = iter(keys)

    params = {
        "head_w": nrm(next(ki), (K, K, Cin, n_feats)),
        "head_b": nrm(next(ki), (n_feats,)),
        "blocks": [],
        "body_tail_w": None,
        "body_tail_b": None,
    }
    for _ in range(n_resblocks):
        params["blocks"].append((
            nrm(next(ki), (K, K, n_feats, n_feats)),
            nrm(next(ki), (n_feats,)),
            nrm(next(ki), (K, K, n_feats, n_feats)),
            nrm(next(ki), (n_feats,)),
        ))
    params["body_tail_w"] = nrm(next(ki), (K, K, n_feats, n_feats))
    params["body_tail_b"] = nrm(next(ki), (n_feats,))

    x = jax.random.normal(jax.random.PRNGKey(1), (N, Cin, H, W), jnp.float32)

    ref = jax.block_until_ready(edsr3d_reference(x, params, res_scale=res_scale))

    # Strict validation of the kernel logic in f32 compute mode.
    out_f32 = jax.block_until_ready(
        edsr3d_forward(x, params, res_scale=res_scale, compute_dtype=jnp.float32))
    assert out_f32.shape == (N, n_feats, H, W)
    assert jnp.allclose(out_f32, ref, rtol=1e-4, atol=1e-4), (
        float(jnp.max(jnp.abs(out_f32 - ref))))

    # Fast path: bf16 MXU inputs with f32 accumulation (looser tolerance).
    out_bf16 = jax.block_until_ready(
        edsr3d_forward(x, params, res_scale=res_scale, compute_dtype=jnp.bfloat16))
    assert out_bf16.shape == (N, n_feats, H, W)
    assert jnp.allclose(out_bf16, ref, rtol=3e-2, atol=3e-2), (
        float(jnp.max(jnp.abs(out_bf16 - ref))))

    print("KERNEL_OK")
</pallas_src>

<mosaic_0001>
module attributes {stable_mosaic.version = 11 : i64} {
  func.func @kernel(%arg0: i32, %arg1: memref<1x32x256xf32, #tpu.memory_space<vmem>>, %arg2: memref<18x32x96xf32, #tpu.memory_space<vmem>>, %arg3: memref<6x32x1xf32, #tpu.memory_space<vmem>>, %arg4: memref<1x32x256xf32, #tpu.memory_space<vmem>>, %arg5: memref<96x512xf32, #tpu.memory_space<vmem>>, %arg6: memref<32x256xf32, #tpu.memory_space<vmem>>, %arg7: memref<32x256xf32, #tpu.memory_space<vmem>>) attributes {dimension_semantics = [#tpu.dimension_semantics<parallel>], iteration_bounds = array<i64: 2>, scalar_prefetch = 0 : i64, scratch_operands = 3 : i64, tpu.core_type = #tpu.core_type<tc>, window_params = [{transform_indices = @transform_0, window_bounds = array<i64: 1, 32, 256>}, {pipeline_mode = #tpu.pipeline_mode<synchronous>, transform_indices = @transform_1, window_bounds = array<i64: 18, 32, 96>}, {pipeline_mode = #tpu.pipeline_mode<synchronous>, transform_indices = @transform_2, window_bounds = array<i64: 6, 32, 1>}, {transform_indices = @transform_3, window_bounds = array<i64: 1, 32, 256>}]} {
    %cst = arith.constant 0.000000e+00 : f32
    %0 = vector.broadcast %cst : f32 to vector<96x512xf32>
    %c0 = arith.constant 0 : index
    %c0_0 = arith.constant 0 : index
    %1 = vector.load %arg5[%c0, %c0_0] : memref<96x512xf32, #tpu.memory_space<vmem>>, vector<96x512xf32>
    tpu.vector_store %arg5[%c0, %c0_0], %0 {strides = array<i32>} : memref<96x512xf32, #tpu.memory_space<vmem>>, vector<96x512xf32>,
    %2 = tpu.iota {dimensions = array<i32: 1>} : vector<1x256xi32>
    %c16_i32 = arith.constant 16 : i32
    %c0_i32 = arith.constant 0 : i32
    %3 = arith.cmpi eq, %c16_i32, %c0_i32 : i32
    %c1_i32 = arith.constant 1 : i32
    %4 = arith.select %3, %c1_i32, %c16_i32 : i32
    %5 = vector.broadcast %4 : i32 to vector<1x256xi32>
    %6 = arith.remsi %2, %5 : vector<1x256xi32>
    %c0_i32_1 = arith.constant 0 : i32
    %7 = vector.broadcast %c0_i32_1 : i32 to vector<1x256xi32>
    %8 = arith.cmpi ne, %6, %7 : vector<1x256xi32>
    %c0_i32_2 = arith.constant 0 : i32
    %9 = vector.broadcast %c0_i32_2 : i32 to vector<1x256xi32>
    %10 = arith.cmpi slt, %6, %9 : vector<1x256xi32>
    %c0_i32_3 = arith.constant 0 : i32
    %11 = arith.cmpi slt, %4, %c0_i32_3 : i32
    %12 = vector.broadcast %11 : i1 to vector<1x256xi1>
    %13 = vector.broadcast %12 : vector<1x256xi1> to vector<1x256xi1>
    %14 = arith.xori %10, %13 : vector<1x256xi1>
    %15 = arith.andi %14, %8 : vector<1x256xi1>
    %16 = vector.broadcast %4 : i32 to vector<1x256xi32>
    %17 = arith.addi %6, %16 : vector<1x256xi32>
    %18 = arith.select %15, %17, %6 : vector<1x256xi1>, vector<1x256xi32>
    %c0_i32_4 = arith.constant 0 : i32
    %19 = vector.broadcast %c0_i32_4 : i32 to vector<1x256xi32>
    %20 = arith.cmpi ne, %18, %19 : vector<1x256xi32>
    %c15_i32 = arith.constant 15 : i32
    %21 = vector.broadcast %c15_i32 : i32 to vector<1x256xi32>
    %22 = arith.cmpi ne, %18, %21 : vector<1x256xi32>
    %c0_5 = arith.constant 0 : index
    %c0_6 = arith.constant 0 : index
    %c0_7 = arith.constant 0 : index
    %23 = vector.load %arg1[%c0_5, %c0_6, %c0_7] : memref<1x32x256xf32, #tpu.memory_space<vmem>>, vector<1x32x256xf32>
    %24 = vector.shape_cast %23 : vector<1x32x256xf32> to vector<32x256xf32>
    %c32 = arith.constant 32 : index
    %c128 = arith.constant 128 : index
    %25 = vector.load %arg5[%c32, %c128] : memref<96x512xf32, #tpu.memory_space<vmem>>, vector<32x256xf32>
    tpu.vector_store %arg5[%c32, %c128], %24 {strides = array<i32>} : memref<96x512xf32, #tpu.memory_space<vmem>>, vector<32x256xf32>,
    %cst_8 = arith.constant 0.000000e+00 : f32
    %26 = vector.shape_cast %22 : vector<1x256xi1> to vector<1x256xi1>
    %27 = vector.broadcast %26 : vector<1x256xi1> to vector<32x256xi1>
    %28 = vector.broadcast %cst_8 : f32 to vector<32x256xf32>
    %29 = arith.select %27, %24, %28 : vector<32x256xi1>, vector<32x256xf32>
    %c0_9 = arith.constant 0 : index
    %c129 = arith.constant 129 : index
    %30 = vector.load %arg5[%c0_9, %c129] : memref<96x512xf32, #tpu.memory_space<vmem>>, vector<32x256xf32>
    tpu.vector_store %arg5[%c0_9, %c129], %29 {strides = array<i32>} : memref<96x512xf32, #tpu.memory_space<vmem>>, vector<32x256xf32>,
    %cst_10 = arith.constant 0.000000e+00 : f32
    %31 = vector.shape_cast %20 : vector<1x256xi1> to vector<1x256xi1>
    %32 = vector.broadcast %31 : vector<1x256xi1> to vector<32x256xi1>
    %33 = vector.broadcast %cst_10 : f32 to vector<32x256xf32>
    %34 = arith.select %32, %24, %33 : vector<32x256xi1>, vector<32x256xf32>
    %c64 = arith.constant 64 : index
    %c127 = arith.constant 127 : index
    %35 = vector.load %arg5[%c64, %c127] : memref<96x512xf32, #tpu.memory_space<vmem>>, vector<32x256xf32>
    tpu.vector_store %arg5[%c64, %c127], %34 {strides = array<i32>} : memref<96x512xf32, #tpu.memory_space<vmem>>, vector<32x256xf32>,
    %c0_11 = arith.constant 0 : index
    %c0_12 = arith.constant 0 : index
    %c0_13 = arith.constant 0 : index
    %36 = vector.load %arg2[%c0_11, %c0_12, %c0_13] : memref<18x32x96xf32, #tpu.memory_space<vmem>>, vector<1x32x96xf32>
    %37 = vector.shape_cast %36 : vector<1x32x96xf32> to vector<32x96xf32>
    %c0_14 = arith.constant 0 : index
    %c112 = arith.constant 112 : index
    %38 = vector.load %arg5[%c0_14, %c112] : memref<96x512xf32, #tpu.memory_space<vmem>>, vector<96x256xf32>
    %cst_15 = arith.constant dense<0.000000e+00> : vector<32x256xf32>
    %39 = tpu.matmul %37, %38, %cst_15 {dimension_numbers = #tpu.dot_dimension_numbers<[1], [0], [0], [1], [0, 0, 1, 1], [], []>} : vector<32x96xf32>, vector<96x256xf32>, vector<32x256xf32> -> vector<32x256xf32>
    %c1 = arith.constant 1 : index
    %c0_16 = arith.constant 0 : index
    %c0_17 = arith.constant 0 : index
    %40 = vector.load %arg2[%c1, %c0_16, %c0_17] : memref<18x32x96xf32, #tpu.memory_space<vmem>>, vector<1x32x96xf32>
    %41 = vector.shape_cast %40 : vector<1x32x96xf32> to vector<32x96xf32>
    %c0_18 = arith.constant 0 : index
    %c128_19 = arith.constant 128 : index
    %42 = vector.load %arg5[%c0_18, %c128_19] : memref<96x512xf32, #tpu.memory_space<vmem>>, vector<96x256xf32>
    %cst_20 = arith.constant dense<0.000000e+00> : vector<32x256xf32>
    %43 = tpu.matmul %41, %42, %cst_20 {dimension_numbers = #tpu.dot_dimension_numbers<[1], [0], [0], [1], [0, 0, 1, 1], [], []>} : vector<32x96xf32>, vector<96x256xf32>, vector<32x256xf32> -> vector<32x256xf32>
    %44 = arith.addf %39, %43 : vector<32x256xf32>
    %c2 = arith.constant 2 : index
    %c0_21 = arith.constant 0 : index
    %c0_22 = arith.constant 0 : index
    %45 = vector.load %arg2[%c2, %c0_21, %c0_22] : memref<18x32x96xf32, #tpu.memory_space<vmem>>, vector<1x32x96xf32>
    %46 = vector.shape_cast %45 : vector<1x32x96xf32> to vector<32x96xf32>
    %c0_23 = arith.constant 0 : index
    %c144 = arith.constant 144 : index
    %47 = vector.load %arg5[%c0_23, %c144] : memref<96x512xf32, #tpu.memory_space<vmem>>, vector<96x256xf32>
    %cst_24 = arith.constant dense<0.000000e+00> : vector<32x256xf32>
    %48 = tpu.matmul %46, %47, %cst_24 {dimension_numbers = #tpu.dot_dimension_numbers<[1], [0], [0], [1], [0, 0, 1, 1], [], []>} : vector<32x96xf32>, vector<96x256xf32>, vector<32x256xf32> -> vector<32x256xf32>
    %49 = arith.addf %44, %48 : vector<32x256xf32>
    %c0_25 = arith.constant 0 : index
    %c0_26 = arith.constant 0 : index
    %c0_27 = arith.constant 0 : index
    %50 = vector.load %arg3[%c0_25, %c0_26, %c0_27] : memref<6x32x1xf32, #tpu.memory_space<vmem>>, vector<1x32x1xf32>
    %51 = vector.shape_cast %50 : vector<1x32x1xf32> to vector<32x1xf32>
    %52 = vector.broadcast %51 : vector<32x1xf32> to vector<32x256xf32>
    %53 = arith.addf %49, %52 : vector<32x256xf32>
    %c0_28 = arith.constant 0 : index
    %c0_29 = arith.constant 0 : index
    %54 = vector.load %arg6[%c0_28, %c0_29] : memref<32x256xf32, #tpu.memory_space<vmem>>, vector<32x256xf32>
    tpu.vector_store %arg6[%c0_28, %c0_29], %53 {strides = array<i32>} : memref<32x256xf32, #tpu.memory_space<vmem>>, vector<32x256xf32>,
    %c0_30 = arith.constant 0 : index
    %c0_31 = arith.constant 0 : index
    %55 = vector.load %arg7[%c0_30, %c0_31] : memref<32x256xf32, #tpu.memory_space<vmem>>, vector<32x256xf32>
    tpu.vector_store %arg7[%c0_30, %c0_31], %53 {strides = array<i32>} : memref<32x256xf32, #tpu.memory_space<vmem>>, vector<32x256xf32>,
    %c0_i32_32 = arith.constant 0 : i32
    %c2_i32 = arith.constant 2 : i32
    %56 = arith.addi %c0_i32_32, %c2_i32 : i32
    %c1_i32_33 = arith.constant 1 : i32
    scf.for %arg8 = %c0_i32_32 to %56 step %c1_i32_33  : i32 {
      %c2_i32_67 = arith.constant 2 : i32
      %92 = arith.muli %c2_i32_67, %arg8 : i32
      %c1_i32_68 = arith.constant 1 : i32
      %93 = arith.addi %c1_i32_68, %92 : i32
      %c0_69 = arith.constant 0 : index
      %c0_70 = arith.constant 0 : index
      %94 = vector.load %arg7[%c0_69, %c0_70] : memref<32x256xf32, #tpu.memory_space<vmem>>, vector<32x256xf32>
      %c32_71 = arith.constant 32 : index
      %c128_72 = arith.constant 128 : index
      %95 = vector.load %arg5[%c32_71, %c128_72] : memref<96x512xf32, #tpu.memory_space<vmem>>, vector<32x256xf32>
      tpu.vector_store %arg5[%c32_71, %c128_72], %94 {strides = array<i32>} : memref<96x512xf32, #tpu.memory_space<vmem>>, vector<32x256xf32>,
      %cst_73 = arith.constant 0.000000e+00 : f32
      %96 = vector.shape_cast %22 : vector<1x256xi1> to vector<1x256xi1>
      %97 = vector.broadcast %96 : vector<1x256xi1> to vector<32x256xi1>
      %98 = vector.broadcast %cst_73 : f32 to vector<32x256xf32>
      %99 = arith.select %97, %94, %98 : vector<32x256xi1>, vector<32x256xf32>
      %c0_74 = arith.constant 0 : index
      %c129_75 = arith.constant 129 : index
      %100 = vector.load %arg5[%c0_74, %c129_75] : memref<96x512xf32, #tpu.memory_space<vmem>>, vector<32x256xf32>
      tpu.vector_store %arg5[%c0_74, %c129_75], %99 {strides = array<i32>} : memref<96x512xf32, #tpu.memory_space<vmem>>, vector<32x256xf32>,
      %cst_76 = arith.constant 0.000000e+00 : f32
      %101 = vector.shape_cast %20 : vector<1x256xi1> to vector<1x256xi1>
      %102 = vector.broadcast %101 : vector<1x256xi1> to vector<32x256xi1>
      %103 = vector.broadcast %cst_76 : f32 to vector<32x256xf32>
      %104 = arith.select %102, %94, %103 : vector<32x256xi1>, vector<32x256xf32>
      %c64_77 = arith.constant 64 : index
      %c127_78 = arith.constant 127 : index
      %105 = vector.load %arg5[%c64_77, %c127_78] : memref<96x512xf32, #tpu.memory_space<vmem>>, vector<32x256xf32>
      tpu.vector_store %arg5[%c64_77, %c127_78], %104 {strides = array<i32>} : memref<96x512xf32, #tpu.memory_space<vmem>>, vector<32x256xf32>,
      %c3_i32 = arith.constant 3 : i32
      %106 = arith.muli %c3_i32, %93 : i32
      %107 = arith.index_cast %106 : i32 to index
      %c0_79 = arith.constant 0 : index
      %c0_80 = arith.constant 0 : index
      %108 = vector.load %arg2[%107, %c0_79, %c0_80] : memref<18x32x96xf32, #tpu.memory_space<vmem>>, vector<1x32x96xf32>
      %109 = vector.shape_cast %108 : vector<1x32x96xf32> to vector<32x96xf32>
      %c0_81 = arith.constant 0 : index
      %c112_82 = arith.constant 112 : index
      %110 = vector.load %arg5[%c0_81, %c112_82] : memref<96x512xf32, #tpu.memory_space<vmem>>, vector<96x256xf32>
      %cst_83 = arith.constant dense<0.000000e+00> : vector<32x256xf32>
      %111 = tpu.matmul %109, %110, %cst_83 {dimension_numbers = #tpu.dot_dimension_numbers<[1], [0], [0], [1], [0, 0, 1, 1], [], []>} : vector<32x96xf32>, vector<96x256xf32>, vector<32x256xf32> -> vector<32x256xf32>
      %c3_i32_84 = arith.constant 3 : i32
      %112 = arith.muli %c3_i32_84, %93 : i32
      %c1_i32_85 = arith.constant 1 : i32
      %113 = arith.addi %112, %c1_i32_85 : i32
      %114 = arith.index_cast %113 : i32 to index
      %c0_86 = arith.constant 0 : index
      %c0_87 = arith.constant 0 : index
      %115 = vector.load %arg2[%114, %c0_86, %c0_87] : memref<18x32x96xf32, #tpu.memory_space<vmem>>, vector<1x32x96xf32>
      %116 = vector.shape_cast %115 : vector<1x32x96xf32> to vector<32x96xf32>
      %c0_88 = arith.constant 0 : index
      %c128_89 = arith.constant 128 : index
      %117 = vector.load %arg5[%c0_88, %c128_89] : memref<96x512xf32, #tpu.memory_space<vmem>>, vector<96x256xf32>
      %cst_90 = arith.constant dense<0.000000e+00> : vector<32x256xf32>
      %118 = tpu.matmul %116, %117, %cst_90 {dimension_numbers = #tpu.dot_dimension_numbers<[1], [0], [0], [1], [0, 0, 1, 1], [], []>} : vector<32x96xf32>, vector<96x256xf32>, vector<32x256xf32> -> vector<32x256xf32>
      %119 = arith.addf %111, %118 : vector<32x256xf32>
      %c3_i32_91 = arith.constant 3 : i32
      %120 = arith.muli %c3_i32_91, %93 : i32
      %c2_i32_92 = arith.constant 2 : i32
      %121 = arith.addi %120, %c2_i32_92 : i32
      %122 = arith.index_cast %121 : i32 to index
      %c0_93 = arith.constant 0 : index
      %c0_94 = arith.constant 0 : index
      %123 = vector.load %arg2[%122, %c0_93, %c0_94] : memref<18x32x96xf32, #tpu.memory_space<vmem>>, vector<1x32x96xf32>
      %124 = vector.shape_cast %123 : vector<1x32x96xf32> to vector<32x96xf32>
      %c0_95 = arith.constant 0 : index
      %c144_96 = arith.constant 144 : index
      %125 = vector.load %arg5[%c0_95, %c144_96] : memref<96x512xf32, #tpu.memory_space<vmem>>, vector<96x256xf32>
      %cst_97 = arith.constant dense<0.000000e+00> : vector<32x256xf32>
      %126 = tpu.matmul %124, %125, %cst_97 {dimension_numbers = #tpu.dot_dimension_numbers<[1], [0], [0], [1], [0, 0, 1, 1], [], []>} : vector<32x96xf32>, vector<96x256xf32>, vector<32x256xf32> -> vector<32x256xf32>
      %127 = arith.addf %119, %126 : vector<32x256xf32>
      %128 = arith.index_cast %93 : i32 to index
      %c0_98 = arith.constant 0 : index
      %c0_99 = arith.constant 0 : index
      %129 = vector.load %arg3[%128, %c0_98, %c0_99] : memref<6x32x1xf32, #tpu.memory_space<vmem>>, vector<1x32x1xf32>
      %130 = vector.shape_cast %129 : vector<1x32x1xf32> to vector<32x1xf32>
      %131 = vector.broadcast %130 : vector<32x1xf32> to vector<32x256xf32>
      %132 = arith.addf %127, %131 : vector<32x256xf32>
      %cst_100 = arith.constant 0.000000e+00 : f32
      %133 = vector.broadcast %cst_100 : f32 to vector<32x256xf32>
      %134 = arith.maximumf %132, %133 : vector<32x256xf32>
      %c1_i32_101 = arith.constant 1 : i32
      %135 = arith.addi %93, %c1_i32_101 : i32
      %c32_102 = arith.constant 32 : index
      %c128_103 = arith.constant 128 : index
      %136 = vector.load %arg5[%c32_102, %c128_103] : memref<96x512xf32, #tpu.memory_space<vmem>>, vector<32x256xf32>
      tpu.vector_store %arg5[%c32_102, %c128_103], %134 {strides = array<i32>} : memref<96x512xf32, #tpu.memory_space<vmem>>, vector<32x256xf32>,
      %cst_104 = arith.constant 0.000000e+00 : f32
      %137 = vector.shape_cast %22 : vector<1x256xi1> to vector<1x256xi1>
      %138 = vector.broadcast %137 : vector<1x256xi1> to vector<32x256xi1>
      %139 = vector.broadcast %cst_104 : f32 to vector<32x256xf32>
      %140 = arith.select %138, %134, %139 : vector<32x256xi1>, vector<32x256xf32>
      %c0_105 = arith.constant 0 : index
      %c129_106 = arith.constant 129 : index
      %141 = vector.load %arg5[%c0_105, %c129_106] : memref<96x512xf32, #tpu.memory_space<vmem>>, vector<32x256xf32>
      tpu.vector_store %arg5[%c0_105, %c129_106], %140 {strides = array<i32>} : memref<96x512xf32, #tpu.memory_space<vmem>>, vector<32x256xf32>,
      %cst_107 = arith.constant 0.000000e+00 : f32
      %142 = vector.shape_cast %20 : vector<1x256xi1> to vector<1x256xi1>
      %143 = vector.broadcast %142 : vector<1x256xi1> to vector<32x256xi1>
      %144 = vector.broadcast %cst_107 : f32 to vector<32x256xf32>
      %145 = arith.select %143, %134, %144 : vector<32x256xi1>, vector<32x256xf32>
      %c64_108 = arith.constant 64 : index
      %c127_109 = arith.constant 127 : index
      %146 = vector.load %arg5[%c64_108, %c127_109] : memref<96x512xf32, #tpu.memory_space<vmem>>, vector<32x256xf32>
      tpu.vector_store %arg5[%c64_108, %c127_109], %145 {strides = array<i32>} : memref<96x512xf32, #tpu.memory_space<vmem>>, vector<32x256xf32>,
      %c3_i32_110 = arith.constant 3 : i32
      %147 = arith.muli %c3_i32_110, %135 : i32
      %148 = arith.index_cast %147 : i32 to index
      %c0_111 = arith.constant 0 : index
      %c0_112 = arith.constant 0 : index
      %149 = vector.load %arg2[%148, %c0_111, %c0_112] : memref<18x32x96xf32, #tpu.memory_space<vmem>>, vector<1x32x96xf32>
      %150 = vector.shape_cast %149 : vector<1x32x96xf32> to vector<32x96xf32>
      %c0_113 = arith.constant 0 : index
      %c112_114 = arith.constant 112 : index
      %151 = vector.load %arg5[%c0_113, %c112_114] : memref<96x512xf32, #tpu.memory_space<vmem>>, vector<96x256xf32>
      %cst_115 = arith.constant dense<0.000000e+00> : vector<32x256xf32>
      %152 = tpu.matmul %150, %151, %cst_115 {dimension_numbers = #tpu.dot_dimension_numbers<[1], [0], [0], [1], [0, 0, 1, 1], [], []>} : vector<32x96xf32>, vector<96x256xf32>, vector<32x256xf32> -> vector<32x256xf32>
      %c3_i32_116 = arith.constant 3 : i32
      %153 = arith.muli %c3_i32_116, %135 : i32
      %c1_i32_117 = arith.constant 1 : i32
      %154 = arith.addi %153, %c1_i32_117 : i32
      %155 = arith.index_cast %154 : i32 to index
      %c0_118 = arith.constant 0 : index
      %c0_119 = arith.constant 0 : index
      %156 = vector.load %arg2[%155, %c0_118, %c0_119] : memref<18x32x96xf32, #tpu.memory_space<vmem>>, vector<1x32x96xf32>
      %157 = vector.shape_cast %156 : vector<1x32x96xf32> to vector<32x96xf32>
      %c0_120 = arith.constant 0 : index
      %c128_121 = arith.constant 128 : index
      %158 = vector.load %arg5[%c0_120, %c128_121] : memref<96x512xf32, #tpu.memory_space<vmem>>, vector<96x256xf32>
      %cst_122 = arith.constant dense<0.000000e+00> : vector<32x256xf32>
      %159 = tpu.matmul %157, %158, %cst_122 {dimension_numbers = #tpu.dot_dimension_numbers<[1], [0], [0], [1], [0, 0, 1, 1], [], []>} : vector<32x96xf32>, vector<96x256xf32>, vector<32x256xf32> -> vector<32x256xf32>
      %160 = arith.addf %152, %159 : vector<32x256xf32>
      %c3_i32_123 = arith.constant 3 : i32
      %161 = arith.muli %c3_i32_123, %135 : i32
      %c2_i32_124 = arith.constant 2 : i32
      %162 = arith.addi %161, %c2_i32_124 : i32
      %163 = arith.index_cast %162 : i32 to index
      %c0_125 = arith.constant 0 : index
      %c0_126 = arith.constant 0 : index
      %164 = vector.load %arg2[%163, %c0_125, %c0_126] : memref<18x32x96xf32, #tpu.memory_space<vmem>>, vector<1x32x96xf32>
      %165 = vector.shape_cast %164 : vector<1x32x96xf32> to vector<32x96xf32>
      %c0_127 = arith.constant 0 : index
      %c144_128 = arith.constant 144 : index
      %166 = vector.load %arg5[%c0_127, %c144_128] : memref<96x512xf32, #tpu.memory_space<vmem>>, vector<96x256xf32>
      %cst_129 = arith.constant dense<0.000000e+00> : vector<32x256xf32>
      %167 = tpu.matmul %165, %166, %cst_129 {dimension_numbers = #tpu.dot_dimension_numbers<[1], [0], [0], [1], [0, 0, 1, 1], [], []>} : vector<32x96xf32>, vector<96x256xf32>, vector<32x256xf32> -> vector<32x256xf32>
      %168 = arith.addf %160, %167 : vector<32x256xf32>
      %169 = arith.index_cast %135 : i32 to index
      %c0_130 = arith.constant 0 : index
      %c0_131 = arith.constant 0 : index
      %170 = vector.load %arg3[%169, %c0_130, %c0_131] : memref<6x32x1xf32, #tpu.memory_space<vmem>>, vector<1x32x1xf32>
      %171 = vector.shape_cast %170 : vector<1x32x1xf32> to vector<32x1xf32>
      %172 = vector.broadcast %171 : vector<32x1xf32> to vector<32x256xf32>
      %173 = arith.addf %168, %172 : vector<32x256xf32>
      %c0_132 = arith.constant 0 : index
      %c0_133 = arith.constant 0 : index
      %174 = vector.load %arg7[%c0_132, %c0_133] : memref<32x256xf32, #tpu.memory_space<vmem>>, vector<32x256xf32>
      %175 = arith.addf %173, %174 : vector<32x256xf32>
      %c0_134 = arith.constant 0 : index
      %c0_135 = arith.constant 0 : index
      %176 = vector.load %arg7[%c0_134, %c0_135] : memref<32x256xf32, #tpu.memory_space<vmem>>, vector<32x256xf32>
      tpu.vector_store %arg7[%c0_134, %c0_135], %175 {strides = array<i32>} : memref<32x256xf32, #tpu.memory_space<vmem>>, vector<32x256xf32>,
    }
    %c2_i32_34 = arith.constant 2 : i32
    %c0_35 = arith.constant 0 : index
    %c0_36 = arith.constant 0 : index
    %57 = vector.load %arg7[%c0_35, %c0_36] : memref<32x256xf32, #tpu.memory_space<vmem>>, vector<32x256xf32>
    %c32_37 = arith.constant 32 : index
    %c128_38 = arith.constant 128 : index
    %58 = vector.load %arg5[%c32_37, %c128_38] : memref<96x512xf32, #tpu.memory_space<vmem>>, vector<32x256xf32>
    tpu.vector_store %arg5[%c32_37, %c128_38], %57 {strides = array<i32>} : memref<96x512xf32, #tpu.memory_space<vmem>>, vector<32x256xf32>,
    %cst_39 = arith.constant 0.000000e+00 : f32
    %59 = vector.shape_cast %22 : vector<1x256xi1> to vector<1x256xi1>
    %60 = vector.broadcast %59 : vector<1x256xi1> to vector<32x256xi1>
    %61 = vector.broadcast %cst_39 : f32 to vector<32x256xf32>
    %62 = arith.select %60, %57, %61 : vector<32x256xi1>, vector<32x256xf32>
    %c0_40 = arith.constant 0 : index
    %c129_41 = arith.constant 129 : index
    %63 = vector.load %arg5[%c0_40, %c129_41] : memref<96x512xf32, #tpu.memory_space<vmem>>, vector<32x256xf32>
    tpu.vector_store %arg5[%c0_40, %c129_41], %62 {strides = array<i32>} : memref<96x512xf32, #tpu.memory_space<vmem>>, vector<32x256xf32>,
    %cst_42 = arith.constant 0.000000e+00 : f32
    %64 = vector.shape_cast %20 : vector<1x256xi1> to vector<1x256xi1>
    %65 = vector.broadcast %64 : vector<1x256xi1> to vector<32x256xi1>
    %66 = vector.broadcast %cst_42 : f32 to vector<32x256xf32>
    %67 = arith.select %65, %57, %66 : vector<32x256xi1>, vector<32x256xf32>
    %c64_43 = arith.constant 64 : index
    %c127_44 = arith.constant 127 : index
    %68 = vector.load %arg5[%c64_43, %c127_44] : memref<96x512xf32, #tpu.memory_space<vmem>>, vector<32x256xf32>
    tpu.vector_store %arg5[%c64_43, %c127_44], %67 {strides = array<i32>} : memref<96x512xf32, #tpu.memory_space<vmem>>, vector<32x256xf32>,
    %c15 = arith.constant 15 : index
    %c0_45 = arith.constant 0 : index
    %c0_46 = arith.constant 0 : index
    %69 = vector.load %arg2[%c15, %c0_45, %c0_46] : memref<18x32x96xf32, #tpu.memory_space<vmem>>, vector<1x32x96xf32>
    %70 = vector.shape_cast %69 : vector<1x32x96xf32> to vector<32x96xf32>
    %c0_47 = arith.constant 0 : index
    %c112_48 = arith.constant 112 : index
    %71 = vector.load %arg5[%c0_47, %c112_48] : memref<96x512xf32, #tpu.memory_space<vmem>>, vector<96x256xf32>
    %cst_49 = arith.constant dense<0.000000e+00> : vector<32x256xf32>
    %72 = tpu.matmul %70, %71, %cst_49 {dimension_numbers = #tpu.dot_dimension_numbers<[1], [0], [0], [1], [0, 0, 1, 1], [], []>} : vector<32x96xf32>, vector<96x256xf32>, vector<32x256xf32> -> vector<32x256xf32>
    %c16 = arith.constant 16 : index
    %c0_50 = arith.constant 0 : index
    %c0_51 = arith.constant 0 : index
    %73 = vector.load %arg2[%c16, %c0_50, %c0_51] : memref<18x32x96xf32, #tpu.memory_space<vmem>>, vector<1x32x96xf32>
    %74 = vector.shape_cast %73 : vector<1x32x96xf32> to vector<32x96xf32>
    %c0_52 = arith.constant 0 : index
    %c128_53 = arith.constant 128 : index
    %75 = vector.load %arg5[%c0_52, %c128_53] : memref<96x512xf32, #tpu.memory_space<vmem>>, vector<96x256xf32>
    %cst_54 = arith.constant dense<0.000000e+00> : vector<32x256xf32>
    %76 = tpu.matmul %74, %75, %cst_54 {dimension_numbers = #tpu.dot_dimension_numbers<[1], [0], [0], [1], [0, 0, 1, 1], [], []>} : vector<32x96xf32>, vector<96x256xf32>, vector<32x256xf32> -> vector<32x256xf32>
    %77 = arith.addf %72, %76 : vector<32x256xf32>
    %c17 = arith.constant 17 : index
    %c0_55 = arith.constant 0 : index
    %c0_56 = arith.constant 0 : index
    %78 = vector.load %arg2[%c17, %c0_55, %c0_56] : memref<18x32x96xf32, #tpu.memory_space<vmem>>, vector<1x32x96xf32>
    %79 = vector.shape_cast %78 : vector<1x32x96xf32> to vector<32x96xf32>
    %c0_57 = arith.constant 0 : index
    %c144_58 = arith.constant 144 : index
    %80 = vector.load %arg5[%c0_57, %c144_58] : memref<96x512xf32, #tpu.memory_space<vmem>>, vector<96x256xf32>
    %cst_59 = arith.constant dense<0.000000e+00> : vector<32x256xf32>
    %81 = tpu.matmul %79, %80, %cst_59 {dimension_numbers = #tpu.dot_dimension_numbers<[1], [0], [0], [1], [0, 0, 1, 1], [], []>} : vector<32x96xf32>, vector<96x256xf32>, vector<32x256xf32> -> vector<32x256xf32>
    %82 = arith.addf %77, %81 : vector<32x256xf32>
    %c5 = arith.constant 5 : index
    %c0_60 = arith.constant 0 : index
    %c0_61 = arith.constant 0 : index
    %83 = vector.load %arg3[%c5, %c0_60, %c0_61] : memref<6x32x1xf32, #tpu.memory_space<vmem>>, vector<1x32x1xf32>
    %84 = vector.shape_cast %83 : vector<1x32x1xf32> to vector<32x1xf32>
    %85 = vector.broadcast %84 : vector<32x1xf32> to vector<32x256xf32>
    %86 = arith.addf %82, %85 : vector<32x256xf32>
    %c0_62 = arith.constant 0 : index
    %c0_63 = arith.constant 0 : index
    %87 = vector.load %arg6[%c0_62, %c0_63] : memref<32x256xf32, #tpu.memory_space<vmem>>, vector<32x256xf32>
    %88 = arith.addf %86, %87 : vector<32x256xf32>
    %c0_64 = arith.constant 0 : index
    %c0_65 = arith.constant 0 : index
    %c0_66 = arith.constant 0 : index
    %89 = vector.load %arg4[%c0_64, %c0_65, %c0_66] : memref<1x32x256xf32, #tpu.memory_space<vmem>>, vector<1x32x256xf32>
    %90 = vector.shape_cast %89 : vector<1x32x256xf32> to vector<32x256xf32>
    %91 = vector.shape_cast %88 : vector<32x256xf32> to vector<1x32x256xf32>
    tpu.vector_store %arg4[%c0_64, %c0_65, %c0_66], %91 {strides = array<i32>} : memref<1x32x256xf32, #tpu.memory_space<vmem>>, vector<1x32x256xf32>,
    return
  }
  func.func @transform_0(%arg0: i32) -> (i32, i32, i32) {
    %c0_i32 = arith.constant 0 : i32
    %c0_i32_0 = arith.constant 0 : i32
    %c0_i32_1 = arith.constant 0 : i32
    return %arg0, %c0_i32, %c0_i32_0 : i32, i32, i32
  }
  func.func @transform_1(%arg0: i32) -> (i32, i32, i32) {
    %c0_i32 = arith.constant 0 : i32
    %c0_i32_0 = arith.constant 0 : i32
    %c0_i32_1 = arith.constant 0 : i32
    %c0_i32_2 = arith.constant 0 : i32
    return %c0_i32, %c0_i32_0, %c0_i32_1 : i32, i32, i32
  }
  func.func @transform_2(%arg0: i32) -> (i32, i32, i32) {
    %c0_i32 = arith.constant 0 : i32
    %c0_i32_0 = arith.constant 0 : i32
    %c0_i32_1 = arith.constant 0 : i32
    %c0_i32_2 = arith.constant 0 : i32
    return %c0_i32, %c0_i32_0, %c0_i32_1 : i32, i32, i32
  }
  func.func @transform_3(%arg0: i32) -> (i32, i32, i32) {
    %c0_i32 = arith.constant 0 : i32
    %c0_i32_0 = arith.constant 0 : i32
    %c0_i32_1 = arith.constant 0 : i32
    return %arg0, %c0_i32, %c0_i32_0 : i32, i32, i32
  }
}

</mosaic_0001>

<llo_original>
// kernel: tpu_custom_call.1
$region0: #{tpu_custom_call.1}
  #allocation0 [shape = 'u32[]', space=smem, size = 0x4, offset = 0x4, fixed_abs, tag = 'smem constant byte address 0x4 - core index']
  #allocation1 [shape = 'u32[144,128]{1,0:T(1,128)}', space=vmem, size = 0x12000, scoped, tag = 'internal scratch']
  #allocation2 [shape = 'f32[96,512]{1,0:T(8,128)}', space=vmem, size = 0x30000, scoped, tag = 'scratch operand']
  #allocation3 [shape = 'f32[32,256]{1,0:T(8,128)}', space=vmem, size = 0x8000, scoped, tag = 'scratch operand']
  #allocation4 [shape = 'f32[32,256]{1,0:T(8,128)}', space=vmem, size = 0x8000, scoped, tag = 'scratch operand']
  %s0 = inlined_call_operand.vmem [shape: f32[2,32,256], index: 0, kind: input, shape index: {}]
  %s1 = inlined_call_operand.hbm [shape: f32[18,32,96], index: 1, kind: input, shape index: {}]
  %s2 = inlined_call_operand.vmem [shape: f32[6,32,1], index: 2, kind: input, shape index: {}]
  %s3 = inlined_call_operand.hbm [shape: f32[2,32,256], index: 3, kind: output, shape index: {}]
  %s4 = sld [smem:[#allocation0]]
  $region56: #{tpu_custom_call.1} parent=0
    _
  %s6 = ssub.s32 1, %s4
  %s7 = scalar_select 0, %s6, %s4
  $region1: #{tpu_custom_call.1} parent=0
    #allocation5 [shape = 'u8[294912]{0}', space=vmem, size = 0x48000, scoped, tag = 'input window, operand 1, single buffered']
    #allocation6 [shape = 's32[2]{0}', space=sflag, size = 0x8, scoped, tag = 'scoped memory for tpu_custom_call.1']
    #allocation7 [shape = 's32[2]{0}', space=sflag, size = 0x8, scoped, tag = 'scoped memory for tpu_custom_call.1']
    #allocation8 [shape = 'u8[65536]{0}', space=vmem, size = 0x10000, scoped, tag = 'output window, operand 0']
    %8 = vsyncpa [#allocation6], 0
    %9 = vsyncpa [#allocation7], 0
    %s10 = scalar_lea.sflag [#allocation7], 1
    %11 = vsyncpa %s10, 0
    loop: start=0, step=1, limit=4
    $region2: #{tpu_custom_call.1} parent=1 // loop_pre_header
      _
    $region3: #{tpu_custom_call.1} parent=1 // loop_header
      %s13 = sphi 0, %s17
      %p14 = scmp.ge.s32.totalorder %s13, 4
      %s23 = sphi 0, %s25
      %s26 = sphi 0, %s23
      %s27 = sphi 0, %s26
      %s43 = sphi 0, %s27
      %s47 = sphi 0, %s47
      %s49 = sphi 0, %s47
      %s50 = sphi 0, %s49
      %s64 = sphi 0, %s50
      %s68 = sphi 0, %s68
      %s70 = sphi 0, %s68
      %s71 = sphi 0, %s70
      %s85 = sphi 0, %s71
      %s91 = sphi 0, %s93
      %s94 = sphi 0, %s91
      %s95 = sphi 0, %s94
      %s111 = sphi 0, %s95
    $region4: #{tpu_custom_call.1} parent=1 // loop_header_branch
      %16 = sbr.rel (%p14) target = $region8
    $region5: #{tpu_custom_call.1} parent=1 // loop_body
      %s18 = ssub.s32 %s13, 1
      %s19 = ssub.s32 %s13, 2
      %s20 = sadd.s32 %s13, 1
      %s21 = ssub.s32 %s13, %s20
      %p22 = scmp.eq.s32.totalorder %s21, 0
      %s24 = sadd.s32 %s23, 1
      %s25 = scalar_select %p22, %s23, %s24
      %p28 = pneg %p22
      %p29 = scmp.eq.s32.totalorder %s13, 1
      %p30 = por %p28, %p29
      %p31 = scmp.ne.s32.totalorder %s23, %s26
      %p32 = scmp.eq.s32.totalorder %s13, 0
      %p33 = por %p31, %p32
      %p34 = scmp.ne.s32.totalorder %s23, %s26
      %p35 = scmp.eq.s32.totalorder %s18, 1
      %p36 = por %p34, %p35
      %p37 = scmp.ne.s32.totalorder %s26, %s27
      %p38 = scmp.eq.s32.totalorder %s18, 0
      %p39 = por %p37, %p38
      %p40 = scmp.ne.s32.totalorder %s26, %s27
      %p41 = scmp.eq.s32.totalorder %s19, 1
      %p42 = por %p40, %p41
      %p44 = scmp.ne.s32.totalorder %s27, %s43
      %p45 = scmp.eq.s32.totalorder %s19, 0
      %p46 = por %p44, %p45
      %s48 = sadd.s32 %s47, 1
      %p51 = scmp.eq.s32.totalorder %s13, 1
      %p52 = scmp.ne.s32.totalorder %s47, %s49
      %p53 = scmp.eq.s32.totalorder %s13, 0
      %p54 = por %p52, %p53
      %p55 = scmp.ne.s32.totalorder %s47, %s49
      %p56 = scmp.eq.s32.totalorder %s18, 1
      %p57 = por %p55, %p56
      %p58 = scmp.ne.s32.totalorder %s49, %s50
      %p59 = scmp.eq.s32.totalorder %s18, 0
      %p60 = por %p58, %p59
      %p61 = scmp.ne.s32.totalorder %s49, %s50
      %p62 = scmp.eq.s32.totalorder %s19, 1
      %p63 = por %p61, %p62
      %p65 = scmp.ne.s32.totalorder %s50, %s64
      %p66 = scmp.eq.s32.totalorder %s19, 0
      %p67 = por %p65, %p66
      %s69 = sadd.s32 %s68, 1
      %p72 = scmp.eq.s32.totalorder %s13, 1
      %p73 = scmp.ne.s32.totalorder %s68, %s70
      %p74 = scmp.eq.s32.totalorder %s13, 0
      %p75 = por %p73, %p74
      %p76 = scmp.ne.s32.totalorder %s68, %s70
      %p77 = scmp.eq.s32.totalorder %s18, 1
      %p78 = por %p76, %p77
      %p79 = scmp.ne.s32.totalorder %s70, %s71
      %p80 = scmp.eq.s32.totalorder %s18, 0
      %p81 = por %p79, %p80
      %p82 = scmp.ne.s32.totalorder %s70, %s71
      %p83 = scmp.eq.s32.totalorder %s19, 1
      %p84 = por %p82, %p83
      %p86 = scmp.ne.s32.totalorder %s71, %s85
      %p87 = scmp.eq.s32.totalorder %s19, 0
      %p88 = por %p86, %p87
      %s89 = ssub.s32 %s13, %s20
      %p90 = scmp.eq.s32.totalorder %s89, 0
      %s92 = sadd.s32 %s91, 1
      %s93 = scalar_select %p90, %s91, %s92
      %p96 = pneg %p90
      %p97 = scmp.eq.s32.totalorder %s13, 1
      %p98 = por %p96, %p97
      %p99 = scmp.ne.s32.totalorder %s91, %s94
      %p100 = scmp.eq.s32.totalorder %s13, 0
      %p101 = por %p99, %p100
      %p102 = scmp.ne.s32.totalorder %s91, %s94
      %p103 = scmp.eq.s32.totalorder %s18, 1
      %p104 = por %p102, %p103
      %p105 = scmp.ne.s32.totalorder %s94, %s95
      %p106 = scmp.eq.s32.totalorder %s18, 0
      %p107 = por %p105, %p106
      %p108 = scmp.ne.s32.totalorder %s94, %s95
      %p109 = scmp.eq.s32.totalorder %s19, 1
      %p110 = por %p108, %p109
      %p112 = scmp.ne.s32.totalorder %s95, %s111
      %p113 = scmp.eq.s32.totalorder %s19, 0
      %p114 = por %p112, %p113
      %p115 = scmp.le.s32.totalorder 1, %s13
      %p116 = scmp.lt.s32.totalorder %s13, 3
      %p117 = pnand %p115, %p116
      %p118 = pneg %p117
      // Predicated region
      $region9: #{tpu_custom_call.1} parent=5 // pred_check
        _
      $region10: #{tpu_custom_call.1} parent=5 // pred_check_branch
        %120 = sbr.rel (%p117) target = $region12
      $region11: #{tpu_custom_call.1} parent=5 // pred_region
        %s121 = ssub.s32 %s13, 1
        // Predicated region
        $region13: #{tpu_custom_call.1} parent=11 // pred_check
          %p122 = pneg %p60
        $region14: #{tpu_custom_call.1} parent=11 // pred_check_branch
          %124 = sbr.rel (%p122) target = $region16
        $region15: #{tpu_custom_call.1} parent=11 // pred_region
          %s126 = ssub.s32 9216, 9216
          %127 = vsyncadd [#allocation6], %s126
          %s128 = sshll.u32 [#allocation5], 4
          %s129 = int_to_ptr.vmem [resolvable:$true] %s128
          %134 = dma.hbm_to_vmem [thread:$0]  %s1, 9216, %s129, [#allocation6], 128, 128, 8
        $region16: #{tpu_custom_call.1} parent=11 // pred_fallthru
          _
        // Predicated region
        $region17: #{tpu_custom_call.1} parent=11 // pred_check
          %p135 = pneg %p81
        $region18: #{tpu_custom_call.1} parent=11 // pred_check_branch
          %137 = sbr.rel (%p135) target = $region20
        $region19: #{tpu_custom_call.1} parent=11 // pred_region
          _
        $region20: #{tpu_custom_call.1} parent=11 // pred_fallthru
          _
      $region12: #{tpu_custom_call.1} parent=5 // pred_fallthru
        _
      %p138 = scmp.lt.s32.totalorder %s13, 2
      // Predicated region
      $region21: #{tpu_custom_call.1} parent=5 // pred_check
        %p139 = pneg %p138
      $region22: #{tpu_custom_call.1} parent=5 // pred_check_branch
        %141 = sbr.rel (%p139) target = $region24
      $region23: #{tpu_custom_call.1} parent=5 // pred_region
        // Predicated region
        $region25: #{tpu_custom_call.1} parent=23 // pred_check
          %p142 = pneg %p33
        $region26: #{tpu_custom_call.1} parent=23 // pred_check_branch
          %144 = sbr.rel (%p142) target = $region28
        $region27: #{tpu_custom_call.1} parent=23 // pred_region
          %p145 = scmp.lt.s32.totalorder %s13, 1
          %s146 = scalar_select %p145, %s13, 1
          %s147 = smul.addr %s146, 8
          %s148 = smul.addr %s147, 8
          %s149 = scalar_lea.vmem %s0, %s148
        $region28: #{tpu_custom_call.1} parent=23 // pred_fallthru
          _
      $region24: #{tpu_custom_call.1} parent=5 // pred_fallthru
        _
      %p150 = scmp.le.s32.totalorder 1, %s13
      %p151 = scmp.lt.s32.totalorder %s13, 3
      %p152 = pnand %p150, %p151
      %p153 = pneg %p152
      // Predicated region
      $region29: #{tpu_custom_call.1} parent=5 // pred_check
        _
      $region30: #{tpu_custom_call.1} parent=5 // pred_check_branch
        %155 = sbr.rel (%p152) target = $region32
      $region31: #{tpu_custom_call.1} parent=5 // pred_region
        %s156 = ssub.s32 %s13, 1
        // Predicated region
        $region33: #{tpu_custom_call.1} parent=31 // pred_check
          %p157 = pneg %p60
        $region34: #{tpu_custom_call.1} parent=31 // pred_check_branch
          %159 = sbr.rel (%p157) target = $region36
        $region35: #{tpu_custom_call.1} parent=31 // pred_region
          %160 = dma.done [#allocation6], 9216
        $region36: #{tpu_custom_call.1} parent=31 // pred_fallthru
          _
        %p161 = scmp.lt.s32.totalorder %s18, 1
        %s162 = scalar_select %p161, %s18, 1
        %s163 = smul.addr %s162, 8
        %s164 = smul.addr %s163, 8
        %s165 = scalar_lea.vmem %s0, %s164
        %p166 = pneg %p39
        %p167 = pneg %p36
        %p168 = pneg %p60
        %p169 = pneg %p57
        %p170 = pneg %p81
        %p171 = pneg %p78
        %p172 = pneg %p107
        %p173 = pneg %p104
        %s174 = sand.u32 %s94, 1
        %s175 = scalar_lea.sflag [#allocation7], %s174
        %s176 = sand.u32 %s94, 1
        %s177 = smul.addr %s176, 64
        %s178 = scalar_lea.vmem [#allocation8], %s177
        %p179 = scmp.lt.s32.totalorder %s18, 1
        %s180 = scalar_select %p179, %s18, 1
        %s181 = smul.addr %s180, 8
        %s182 = smul.addr %s181, 8
        %s183 = scalar_lea.vmem %s0, %s182
        %184 = vst [vmem:[#allocation2] sm:$0xff] 0.0
        %185 = vst [vmem:[#allocation2 + $0x8] sm:$0xff] 0.0
        %186 = vst [vmem:[#allocation2 + $0x10] sm:$0xff] 0.0
        %187 = vst [vmem:[#allocation2 + $0x18] sm:$0xff] 0.0
        %188 = vst [vmem:[#allocation2 + $0x20] sm:$0xff] 0.0
        %189 = vst [vmem:[#allocation2 + $0x28] sm:$0xff] 0.0
        %190 = vst [vmem:[#allocation2 + $0x30] sm:$0xff] 0.0
        %191 = vst [vmem:[#allocation2 + $0x38] sm:$0xff] 0.0
        %192 = vst [vmem:[#allocation2 + $0x40] sm:$0xff] 0.0
        %193 = vst [vmem:[#allocation2 + $0x48] sm:$0xff] 0.0
        %194 = vst [vmem:[#allocation2 + $0x50] sm:$0xff] 0.0
        %195 = vst [vmem:[#allocation2 + $0x58] sm:$0xff] 0.0
        %196 = vst [vmem:[#allocation2 + $0x60] sm:$0xff] 0.0
        %197 = vst [vmem:[#allocation2 + $0x68] sm:$0xff] 0.0
        %198 = vst [vmem:[#allocation2 + $0x70] sm:$0xff] 0.0
        %199 = vst [vmem:[#allocation2 + $0x78] sm:$0xff] 0.0
        %200 = vst [vmem:[#allocation2 + $0x80] sm:$0xff] 0.0
        %201 = vst [vmem:[#allocation2 + $0x88] sm:$0xff] 0.0
        %202 = vst [vmem:[#allocation2 + $0x90] sm:$0xff] 0.0
        %203 = vst [vmem:[#allocation2 + $0x98] sm:$0xff] 0.0
        %204 = vst [vmem:[#allocation2 + $0xa0] sm:$0xff] 0.0
        %205 = vst [vmem:[#allocation2 + $0xa8] sm:$0xff] 0.0
        %206 = vst [vmem:[#allocation2 + $0xb0] sm:$0xff] 0.0
        %207 = vst [vmem:[#allocation2 + $0xb8] sm:$0xff] 0.0
        %208 = vst [vmem:[#allocation2 + $0xc0] sm:$0xff] 0.0
        %209 = vst [vmem:[#allocation2 + $0xc8] sm:$0xff] 0.0
        %210 = vst [vmem:[#allocation2 + $0xd0] sm:$0xff] 0.0
        %211 = vst [vmem:[#allocation2 + $0xd8] sm:$0xff] 0.0
        %212 = vst [vmem:[#allocation2 + $0xe0] sm:$0xff] 0.0
        %213 = vst [vmem:[#allocation2 + $0xe8] sm:$0xff] 0.0
        %214 = vst [vmem:[#allocation2 + $0xf0] sm:$0xff] 0.0
        %215 = vst [vmem:[#allocation2 + $0xf8] sm:$0xff] 0.0
        %216 = vst [vmem:[#allocation2 + $0x100] sm:$0xff] 0.0
        %217 = vst [vmem:[#allocation2 + $0x108] sm:$0xff] 0.0
        %218 = vst [vmem:[#allocation2 + $0x110] sm:$0xff] 0.0
        %219 = vst [vmem:[#allocation2 + $0x118] sm:$0xff] 0.0
        %220 = vst [vmem:[#allocation2 + $0x120] sm:$0xff] 0.0
        %221 = vst [vmem:[#allocation2 + $0x128] sm:$0xff] 0.0
        %222 = vst [vmem:[#allocation2 + $0x130] sm:$0xff] 0.0
        %223 = vst [vmem:[#allocation2 + $0x138] sm:$0xff] 0.0
        %224 = vst [vmem:[#allocation2 + $0x140] sm:$0xff] 0.0
        %225 = vst [vmem:[#allocation2 + $0x148] sm:$0xff] 0.0
        %226 = vst [vmem:[#allocation2 + $0x150] sm:$0xff] 0.0
        %227 = vst [vmem:[#allocation2 + $0x158] sm:$0xff] 0.0
        %228 = vst [vmem:[#allocation2 + $0x160] sm:$0xff] 0.0
        %229 = vst [vmem:[#allocation2 + $0x168] sm:$0xff] 0.0
        %230 = vst [vmem:[#allocation2 + $0x170] sm:$0xff] 0.0
        %231 = vst [vmem:[#allocation2 + $0x178] sm:$0xff] 0.0
        %v232 = vlaneseq
        %v233 = vand.u32 %v232, 127
        %v234 = vadd.s32 %v233, 128
        %vm235 = vcmp.lt.s32.totalorder %v233, 0
        %v236 = vsub.s32 0, %v233
        %v237 = vsel %vm235, %v236, %v233
        %v238 = vshrl.u32 %v237, 4
        %v239 = vand.u32 %v237, 15
        %v240 = vsub.s32 0, %v239
        %v241 = vsel %vm235, %v240, %v239
        %vm242 = vcmp.lt.s32.totalorder %v234, 0
        %v243 = vsub.s32 0, %v234
        %v244 = vsel %vm242, %v243, %v234
        %v245 = vshrl.u32 %v244, 4
        %v246 = vand.u32 %v244, 15
        %v247 = vsub.s32 0, %v246
        %v248 = vsel %vm242, %v247, %v246
        %vm249 = vcmp.ne.s32.totalorder %v241, 0
        %vm250 = vcmp.ne.s32.totalorder %v248, 0
        %vm251 = vcmp.lt.s32.totalorder %v241, 0
        %vm252 = vcmp.lt.s32.totalorder %v248, 0
        %vm253 = vmand %vm251, %vm249
        %vm254 = vmand %vm252, %vm250
        %v255 = vadd.s32 %v241, 16
        %v256 = vadd.s32 %v248, 16
        %v257 = vsel %vm253, %v255, %v241
        %v258 = vsel %vm254, %v256, %v248
        %vm259 = vcmp.ne.s32.totalorder %v257, 0
        %vm260 = vcmp.ne.s32.totalorder %v258, 0
        %vm261 = vcmp.ne.s32.totalorder %v257, 15
        %vm262 = vcmp.ne.s32.totalorder %v258, 15
        %v263 = vld [vmem:[%s183] sm:$0xff]
        %v264 = vld [vmem:[%s183 + $0x8] sm:$0xff]
        %v265 = vld [vmem:[%s183 + $0x10] sm:$0xff]
        %v266 = vld [vmem:[%s183 + $0x18] sm:$0xff]
        %v267 = vld [vmem:[%s183 + $0x20] sm:$0xff]
        %v268 = vld [vmem:[%s183 + $0x28] sm:$0xff]
        %v269 = vld [vmem:[%s183 + $0x30] sm:$0xff]
        %v270 = vld [vmem:[%s183 + $0x38] sm:$0xff]
        %271 = vst [vmem:[#allocation2 + $0x88] sm:$0xff] %v263
        %272 = vst [vmem:[#allocation2 + $0x90] sm:$0xff] %v264
        %273 = vst [vmem:[#allocation2 + $0xa8] sm:$0xff] %v265
        %274 = vst [vmem:[#allocation2 + $0xb0] sm:$0xff] %v266
        %275 = vst [vmem:[#allocation2 + $0xc8] sm:$0xff] %v267
        %276 = vst [vmem:[#allocation2 + $0xd0] sm:$0xff] %v268
        %277 = vst [vmem:[#allocation2 + $0xe8] sm:$0xff] %v269
        %278 = vst [vmem:[#allocation2 + $0xf0] sm:$0xff] %v270
        %v279 = vsel %vm261, 1, 0
        %v280 = vsel %vm262, 1, 0
        %vm281 = vcmp.eq.s32.totalorder %v279, 1
        %vm282 = vcmp.eq.s32.totalorder %v280, 1
        %v283 = vsel %vm281, %v263, 0.0
        %v284 = vsel %vm282, %v264, 0.0
        %v285 = vsel %vm281, %v265, 0.0
        %v286 = vsel %vm282, %v266, 0.0
        %v287 = vsel %vm281, %v267, 0.0
        %v288 = vsel %vm282, %v268, 0.0
        %v289 = vsel %vm281, %v269, 0.0
        %v290 = vsel %vm282, %v270, 0.0
        %299 = vrot.lane.b32.xlu0 %v283, 1
        %v300 = vpop.permute.xlu0 %299
        %301 = vrot.lane.b32.xlu0 %v284, 1
        %v302 = vpop.permute.xlu0 %301
        %303 = vrot.lane.b32.xlu0 %v285, 1
        %v304 = vpop.permute.xlu0 %303
        %305 = vrot.lane.b32.xlu0 %v286, 1
        %v306 = vpop.permute.xlu0 %305
        %307 = vrot.lane.b32.xlu0 %v287, 1
        %v308 = vpop.permute.xlu0 %307
        %309 = vrot.lane.b32.xlu0 %v288, 1
        %v310 = vpop.permute.xlu0 %309
        %311 = vrot.lane.b32.xlu0 %v289, 1
        %v312 = vpop.permute.xlu0 %311
        %313 = vrot.lane.b32.xlu0 %v290, 1
        %v314 = vpop.permute.xlu0 %313
        %vm315 = vcmask 7168
        %v316 = vsel %vm315, %v300, %v302
        %v317 = vsel %vm315, %v304, %v306
        %v318 = vsel %vm315, %v308, %v310
        %v319 = vsel %vm315, %v312, %v314
        %vm332 = vcmask 1047560
        %333 = vst.msk [vmem:[#allocation2 + $0x8] sm:$0xff] %vm332, %v300
        %334 = vst [vmem:[#allocation2 + $0x10] sm:$0xff] %v316
        %335 = vst.msk [vmem:[#allocation2 + $0x18] sm:$0xff] %vm315, %v302
        %336 = vst.msk [vmem:[#allocation2 + $0x28] sm:$0xff] %vm332, %v304
        %337 = vst [vmem:[#allocation2 + $0x30] sm:$0xff] %v317
        %338 = vst.msk [vmem:[#allocation2 + $0x38] sm:$0xff] %vm315, %v306
        %339 = vst.msk [vmem:[#allocation2 + $0x48] sm:$0xff] %vm332, %v308
        %340 = vst [vmem:[#allocation2 + $0x50] sm:$0xff] %v318
        %341 = vst.msk [vmem:[#allocation2 + $0x58] sm:$0xff] %vm315, %v310
        %342 = vst.msk [vmem:[#allocation2 + $0x68] sm:$0xff] %vm332, %v312
        %343 = vst [vmem:[#allocation2 + $0x70] sm:$0xff] %v319
        %344 = vst.msk [vmem:[#allocation2 + $0x78] sm:$0xff] %vm315, %v314
        %v345 = vsel %vm259, 1, 0
        %v346 = vsel %vm260, 1, 0
        %vm347 = vcmp.eq.s32.totalorder %v345, 1
        %vm348 = vcmp.eq.s32.totalorder %v346, 1
        %v349 = vsel %vm347, %v263, 0.0
        %v350 = vsel %vm348, %v264, 0.0
        %v351 = vsel %vm347, %v265, 0.0
        %v352 = vsel %vm348, %v266, 0.0
        %v353 = vsel %vm347, %v267, 0.0
        %v354 = vsel %vm348, %v268, 0.0
        %v355 = vsel %vm347, %v269, 0.0
        %v356 = vsel %vm348, %v270, 0.0
        %365 = vrot.lane.b32.xlu0 %v349, 127
        %v366 = vpop.permute.xlu0 %365
        %367 = vrot.lane.b32.xlu0 %v350, 127
        %v368 = vpop.permute.xlu0 %367
        %369 = vrot.lane.b32.xlu0 %v351, 127
        %v370 = vpop.permute.xlu0 %369
        %371 = vrot.lane.b32.xlu0 %v352, 127
        %v372 = vpop.permute.xlu0 %371
        %373 = vrot.lane.b32.xlu0 %v353, 127
        %v374 = vpop.permute.xlu0 %373
        %375 = vrot.lane.b32.xlu0 %v354, 127
        %v376 = vpop.permute.xlu0 %375
        %377 = vrot.lane.b32.xlu0 %v355, 127
        %v378 = vpop.permute.xlu0 %377
        %379 = vrot.lane.b32.xlu0 %v356, 127
        %v380 = vpop.permute.xlu0 %379
        %vm381 = vcmask 1039360
        %v382 = vsel %vm381, %v366, %v368
        %v383 = vsel %vm381, %v370, %v372
        %v384 = vsel %vm381, %v374, %v376
        %v385 = vsel %vm381, %v378, %v380
        %vm398 = vcmask 1048568
        %399 = vst.msk [vmem:[#allocation2 + $0x100] sm:$0xff] %vm398, %v366
        %400 = vst [vmem:[#allocation2 + $0x108] sm:$0xff] %v382
        %401 = vst.msk [vmem:[#allocation2 + $0x110] sm:$0xff] %vm381, %v368
        %402 = vst.msk [vmem:[#allocation2 + $0x120] sm:$0xff] %vm398, %v370
        %403 = vst [vmem:[#allocation2 + $0x128] sm:$0xff] %v383
        %404 = vst.msk [vmem:[#allocation2 + $0x130] sm:$0xff] %vm381, %v372
        %405 = vst.msk [vmem:[#allocation2 + $0x140] sm:$0xff] %vm398, %v374
        %406 = vst [vmem:[#allocation2 + $0x148] sm:$0xff] %v384
        %407 = vst.msk [vmem:[#allocation2 + $0x150] sm:$0xff] %vm381, %v376
        %408 = vst.msk [vmem:[#allocation2 + $0x160] sm:$0xff] %vm398, %v378
        %409 = vst [vmem:[#allocation2 + $0x168] sm:$0xff] %v385
        %410 = vst.msk [vmem:[#allocation2 + $0x170] sm:$0xff] %vm381, %v380
        %v411 = vld [vmem:[#allocation5] sm:$0xff]
        %v412 = vld [vmem:[#allocation5 + $0x8] sm:$0xff]
        %v413 = vld [vmem:[#allocation5 + $0x10] sm:$0xff]
        %v414 = vld [vmem:[#allocation5 + $0x18] sm:$0xff]
        %v415 = vld [vmem:[#allocation2] sm:$0xff]
        %v416 = vld [vmem:[#allocation2 + $0x8] sm:$0xff]
        %v417 = vld [vmem:[#allocation2 + $0x10] sm:$0xff]
        %v418 = vld [vmem:[#allocation2 + $0x20] sm:$0xff]
        %v419 = vld [vmem:[#allocation2 + $0x28] sm:$0xff]
        %v420 = vld [vmem:[#allocation2 + $0x30] sm:$0xff]
        %v421 = vld [vmem:[#allocation2 + $0x40] sm:$0xff]
        %v422 = vld [vmem:[#allocation2 + $0x48] sm:$0xff]
        %v423 = vld [vmem:[#allocation2 + $0x50] sm:$0xff]
        %v424 = vld [vmem:[#allocation2 + $0x60] sm:$0xff]
        %v425 = vld [vmem:[#allocation2 + $0x68] sm:$0xff]
        %v426 = vld [vmem:[#allocation2 + $0x70] sm:$0xff]
        %v427 = vld [vmem:[#allocation2 + $0x80] sm:$0xff]
        %v428 = vld [vmem:[#allocation2 + $0x88] sm:$0xff]
        %v429 = vld [vmem:[#allocation2 + $0x90] sm:$0xff]
        %v430 = vld [vmem:[#allocation2 + $0xa0] sm:$0xff]
        %v431 = vld [vmem:[#allocation2 + $0xa8] sm:$0xff]
        %v432 = vld [vmem:[#allocation2 + $0xb0] sm:$0xff]
        %v433 = vld [vmem:[#allocation2 + $0xc0] sm:$0xff]
        %v434 = vld [vmem:[#allocation2 + $0xc8] sm:$0xff]
        %v435 = vld [vmem:[#allocation2 + $0xd0] sm:$0xff]
        %v436 = vld [vmem:[#allocation2 + $0xe0] sm:$0xff]
        %v437 = vld [vmem:[#allocation2 + $0xe8] sm:$0xff]
        %v438 = vld [vmem:[#allocation2 + $0xf0] sm:$0xff]
        %v439 = vld [vmem:[#allocation2 + $0x100] sm:$0xff]
        %v440 = vld [vmem:[#allocation2 + $0x108] sm:$0xff]
        %v441 = vld [vmem:[#allocation2 + $0x110] sm:$0xff]
        %v442 = vld [vmem:[#allocation2 + $0x120] sm:$0xff]
        %v443 = vld [vmem:[#allocation2 + $0x128] sm:$0xff]
        %v444 = vld [vmem:[#allocation2 + $0x130] sm:$0xff]
        %v445 = vld [vmem:[#allocation2 + $0x140] sm:$0xff]
        %v446 = vld [vmem:[#allocation2 + $0x148] sm:$0xff]
        %v447 = vld [vmem:[#allocation2 + $0x150] sm:$0xff]
        %v448 = vld [vmem:[#allocation2 + $0x160] sm:$0xff]
        %v449 = vld [vmem:[#allocation2 + $0x168] sm:$0xff]
        %v450 = vld [vmem:[#allocation2 + $0x170] sm:$0xff]
        %s451 = scalar_lea.vmem [#allocation5], 32
        %v452 = vld [vmem:[%s451] sm:$0xff]
        %v453 = vld [vmem:[%s451 + $0x8] sm:$0xff]
        %v454 = vld [vmem:[%s451 + $0x10] sm:$0xff]
        %v455 = vld [vmem:[%s451 + $0x18] sm:$0xff]
        %vm456 = vcmask 785408
        %v458 = vsel %vm456, %v452, 0
        %v461 = vsel %vm456, %v453, 0
        %v464 = vsel %vm456, %v454, 0
        %v467 = vsel %vm456, %v455, 0
        %469 = vmatprep.subr.mxu0 %v417
        %470 = vmatpush1.msra.mxu0 %v416
        %471 = vmatprep.subr.mxu0 %v420
        %472 = vmatpush1.msra.mxu0 %v419
        %473 = vmatprep.subr.mxu0 %v423
        %474 = vmatpush1.msra.mxu0 %v422
        %475 = vmatprep.subr.mxu0 %v426
        %476 = vmatpush1.msra.mxu0 %v425
        %477 = vmatprep.subr.mxu0 %v429
        %478 = vmatpush1.msra.mxu0 %v428
        %479 = vmatprep.subr.mxu0 %v432
        %480 = vmatpush1.msra.mxu0 %v431
        %481 = vmatprep.subr.mxu0 %v435
        %482 = vmatpush1.msra.mxu0 %v434
        %483 = vmatprep.subr.mxu0 %v438
        %484 = vmatpush1.msra.mxu0 %v437
        %485 = vmatprep.subr.mxu0 %v441
        %486 = vmatpush1.msra.mxu0 %v440
        %487 = vmatprep.subr.mxu0 %v444
        %488 = vmatpush1.msra.mxu0 %v443
        %489 = vmatprep.subr.mxu0 %v447
        %490 = vmatpush1.msra.mxu0 %v446
        %491 = vmatprep.subr.mxu0 %v450
        %492 = vmatpush1.msra.mxu0 %v449
        %493 = vmatprep.subr.mxu0 0.0
        %494 = vmatpush1.msra.mxu0 0.0
        %495 = vmatprep.subr.mxu0 0.0
        %496 = vmatpush1.msra.mxu0 0.0
        %497 = vmatprep.subr.mxu0 0.0
        %498 = vmatpush1.msra.mxu0 0.0
        %499 = vmatprep.subr.mxu0 0.0
        %500 = vmatpush1.msra.mxu0 0.0
        %501 = vmatprep.subr.mxu0 0.0
        %502 = vmatpush1.msra.mxu0 0.0
        %503 = vmatprep.subr.mxu0 0.0
        %504 = vmatpush1.msra.mxu0 0.0
        %505 = vmatprep.subr.mxu0 0.0
        %506 = vmatpush1.msra.mxu0 0.0
        %507 = vmatprep.subr.mxu0 0.0
        %508 = vmatpush1.msra.mxu0 0.0
        %509 = vmatprep.subr.mxu0 0.0
        %510 = vmatpush1.msra.mxu0 0.0
        %511 = vmatprep.subr.mxu0 0.0
        %512 = vmatpush1.msra.mxu0 0.0
        %513 = vmatprep.subr.mxu0 0.0
        %514 = vmatpush1.msra.mxu0 0.0
        %515 = vmatprep.subr.mxu0 0.0
        %516 = vmatpush1.msra.mxu0 0.0
        %517 = vmatprep.subr.mxu0 0.0
        %518 = vmatpush1.msra.mxu0 0.0
        %519 = vmatprep.subr.mxu0 0.0
        %520 = vmatpush1.msra.mxu0 0.0
        %521 = vmatprep.subr.mxu0 0.0
        %522 = vmatpush1.msra.mxu0 0.0
        %523 = vmatprep.subr.mxu0 0.0
        %524 = vmatpush1.msra.mxu0 0.0
        %525 = vmatprep.subr.mxu0 0.0
        %526 = vmatpush1.msra.mxu0 0.0
        %527 = vmatprep.subr.mxu0 0.0
        %528 = vmatpush1.msra.mxu0 0.0
        %529 = vmatprep.subr.mxu0 0.0
        %530 = vmatpush1.msra.mxu0 0.0
        %531 = vmatprep.subr.mxu0 0.0
        %532 = vmatpush1.msra.mxu0 0.0
        %533 = vmatprep.mubr.f32.mxu0 0.0
        %534 = vmatmul.mubr.f32.gmra.mrb[0].mxu0 %v458
        %v535 = vpop.f32.mrb[0].mxu0
        %v536 = vadd.f32 0.0, %v535
        %v537 = vpop.f32.mrb[0].mxu0
        %v538 = vadd.f32 0.0, %v537
        %539 = vmatprep.mubr.f32.mxu0 0.0
        %540 = vmatmul.mubr.f32.gmra.mrb[0].mxu0 %v461
        %v541 = vpop.f32.mrb[0].mxu0
        %v542 = vadd.f32 0.0, %v541
        %v543 = vpop.f32.mrb[0].mxu0
        %v544 = vadd.f32 0.0, %v543
        %545 = vmatprep.mubr.f32.mxu0 0.0
        %546 = vmatmul.mubr.f32.gmra.mrb[0].mxu0 %v464
        %v547 = vpop.f32.mrb[0].mxu0
        %v548 = vadd.f32 0.0, %v547
        %v549 = vpop.f32.mrb[0].mxu0
        %v550 = vadd.f32 0.0, %v549
        %551 = vmatprep.mubr.f32.mxu0 0.0
        %552 = vmatmul.mubr.f32.gmra.mrb[0].mxu0 %v467
        %v553 = vpop.f32.mrb[0].mxu0
        %v554 = vadd.f32 0.0, %v553
        %v555 = vpop.f32.mrb[0].mxu0
        %v556 = vadd.f32 0.0, %v555
        %557 = vdwg.mxu0
        %594 = vrot.lane.b32.xlu0 %v415, 16
        %v595 = vpop.permute.xlu0 %594
        %596 = vrot.lane.b32.xlu0 %v416, 16
        %v597 = vpop.permute.xlu0 %596
        %598 = vrot.lane.b32.xlu0 %v417, 16
        %v599 = vpop.permute.xlu0 %598
        %600 = vrot.lane.b32.xlu0 %v418, 16
        %v601 = vpop.permute.xlu0 %600
        %602 = vrot.lane.b32.xlu0 %v419, 16
        %v603 = vpop.permute.xlu0 %602
        %604 = vrot.lane.b32.xlu0 %v420, 16
        %v605 = vpop.permute.xlu0 %604
        %606 = vrot.lane.b32.xlu0 %v421, 16
        %v607 = vpop.permute.xlu0 %606
        %608 = vrot.lane.b32.xlu0 %v422, 16
        %v609 = vpop.permute.xlu0 %608
        %610 = vrot.lane.b32.xlu0 %v423, 16
        %v611 = vpop.permute.xlu0 %610
        %612 = vrot.lane.b32.xlu0 %v424, 16
        %v613 = vpop.permute.xlu0 %612
        %614 = vrot.lane.b32.xlu0 %v425, 16
        %v615 = vpop.permute.xlu0 %614
        %616 = vrot.lane.b32.xlu0 %v426, 16
        %v617 = vpop.permute.xlu0 %616
        %618 = vrot.lane.b32.xlu0 %v427, 16
        %v619 = vpop.permute.xlu0 %618
        %620 = vrot.lane.b32.xlu0 %v428, 16
        %v621 = vpop.permute.xlu0 %620
        %622 = vrot.lane.b32.xlu0 %v429, 16
        %v623 = vpop.permute.xlu0 %622
        %624 = vrot.lane.b32.xlu0 %v430, 16
        %v625 = vpop.permute.xlu0 %624
        %626 = vrot.lane.b32.xlu0 %v431, 16
        %v627 = vpop.permute.xlu0 %626
        %628 = vrot.lane.b32.xlu0 %v432, 16
        %v629 = vpop.permute.xlu0 %628
        %630 = vrot.lane.b32.xlu0 %v433, 16
        %v631 = vpop.permute.xlu0 %630
        %632 = vrot.lane.b32.xlu0 %v434, 16
        %v633 = vpop.permute.xlu0 %632
        %634 = vrot.lane.b32.xlu0 %v435, 16
        %v635 = vpop.permute.xlu0 %634
        %636 = vrot.lane.b32.xlu0 %v436, 16
        %v637 = vpop.permute.xlu0 %636
        %638 = vrot.lane.b32.xlu0 %v437, 16
        %v639 = vpop.permute.xlu0 %638
        %640 = vrot.lane.b32.xlu0 %v438, 16
        %v641 = vpop.permute.xlu0 %640
        %642 = vrot.lane.b32.xlu0 %v439, 16
        %v643 = vpop.permute.xlu0 %642
        %644 = vrot.lane.b32.xlu0 %v440, 16
        %v645 = vpop.permute.xlu0 %644
        %646 = vrot.lane.b32.xlu0 %v441, 16
        %v647 = vpop.permute.xlu0 %646
        %648 = vrot.lane.b32.xlu0 %v442, 16
        %v649 = vpop.permute.xlu0 %648
        %650 = vrot.lane.b32.xlu0 %v443, 16
        %v651 = vpop.permute.xlu0 %650
        %652 = vrot.lane.b32.xlu0 %v444, 16
        %v653 = vpop.permute.xlu0 %652
        %654 = vrot.lane.b32.xlu0 %v445, 16
        %v655 = vpop.permute.xlu0 %654
        %656 = vrot.lane.b32.xlu0 %v446, 16
        %v657 = vpop.permute.xlu0 %656
        %658 = vrot.lane.b32.xlu0 %v447, 16
        %v659 = vpop.permute.xlu0 %658
        %660 = vrot.lane.b32.xlu0 %v448, 16
        %v661 = vpop.permute.xlu0 %660
        %662 = vrot.lane.b32.xlu0 %v449, 16
        %v663 = vpop.permute.xlu0 %662
        %664 = vrot.lane.b32.xlu0 %v450, 16
        %v665 = vpop.permute.xlu0 %664
        %vm666 = vcmask 130048
        %v667 = vsel %vm666, %v595, %v597
        %v668 = vsel %vm666, %v597, %v599
        %v669 = vsel %vm666, %v601, %v603
        %v670 = vsel %vm666, %v603, %v605
        %v671 = vsel %vm666, %v607, %v609
        %v672 = vsel %vm666, %v609, %v611
        %v673 = vsel %vm666, %v613, %v615
        %v674 = vsel %vm666, %v615, %v617
        %v675 = vsel %vm666, %v619, %v621
        %v676 = vsel %vm666, %v621, %v623
        %v677 = vsel %vm666, %v625, %v627
        %v678 = vsel %vm666, %v627, %v629
        %v679 = vsel %vm666, %v631, %v633
        %v680 = vsel %vm666, %v633, %v635
        %v681 = vsel %vm666, %v637, %v639
        %v682 = vsel %vm666, %v639, %v641
        %v683 = vsel %vm666, %v643, %v645
        %v684 = vsel %vm666, %v645, %v647
        %v685 = vsel %vm666, %v649, %v651
        %v686 = vsel %vm666, %v651, %v653
        %v687 = vsel %vm666, %v655, %v657
        %v688 = vsel %vm666, %v657, %v659
        %v689 = vsel %vm666, %v661, %v663
        %v690 = vsel %vm666, %v663, %v665
        %v716 = vsel %vm456, %v411, 0
        %v719 = vsel %vm456, %v412, 0
        %v722 = vsel %vm456, %v413, 0
        %v725 = vsel %vm456, %v414, 0
        %727 = vmatprep.subr.mxu0 %v668
        %728 = vmatpush1.msra.mxu0 %v667
        %729 = vmatprep.subr.mxu0 %v670
        %730 = vmatpush1.msra.mxu0 %v669
        %731 = vmatprep.subr.mxu0 %v672
        %732 = vmatpush1.msra.mxu0 %v671
        %733 = vmatprep.subr.mxu0 %v674
        %734 = vmatpush1.msra.mxu0 %v673
        %735 = vmatprep.subr.mxu0 %v676
        %736 = vmatpush1.msra.mxu0 %v675
        %737 = vmatprep.subr.mxu0 %v678
        %738 = vmatpush1.msra.mxu0 %v677
        %739 = vmatprep.subr.mxu0 %v680
        %740 = vmatpush1.msra.mxu0 %v679
        %741 = vmatprep.subr.mxu0 %v682
        %742 = vmatpush1.msra.mxu0 %v681
        %743 = vmatprep.subr.mxu0 %v684
        %744 = vmatpush1.msra.mxu0 %v683
        %745 = vmatprep.subr.mxu0 %v686
        %746 = vmatpush1.msra.mxu0 %v685
        %747 = vmatprep.subr.mxu0 %v688
        %748 = vmatpush1.msra.mxu0 %v687
        %749 = vmatprep.subr.mxu0 %v690
        %750 = vmatpush1.msra.mxu0 %v689
        %751 = vmatprep.subr.mxu0 0.0
        %752 = vmatpush1.msra.mxu0 0.0
        %753 = vmatprep.subr.mxu0 0.0
        %754 = vmatpush1.msra.mxu0 0.0
        %755 = vmatprep.subr.mxu0 0.0
        %756 = vmatpush1.msra.mxu0 0.0
        %757 = vmatprep.subr.mxu0 0.0
        %758 = vmatpush1.msra.mxu0 0.0
        %759 = vmatprep.subr.mxu0 0.0
        %760 = vmatpush1.msra.mxu0 0.0
        %761 = vmatprep.subr.mxu0 0.0
        %762 = vmatpush1.msra.mxu0 0.0
        %763 = vmatprep.subr.mxu0 0.0
        %764 = vmatpush1.msra.mxu0 0.0
        %765 = vmatprep.subr.mxu0 0.0
        %766 = vmatpush1.msra.mxu0 0.0
        %767 = vmatprep.subr.mxu0 0.0
        %768 = vmatpush1.msra.mxu0 0.0
        %769 = vmatprep.subr.mxu0 0.0
        %770 = vmatpush1.msra.mxu0 0.0
        %771 = vmatprep.subr.mxu0 0.0
        %772 = vmatpush1.msra.mxu0 0.0
        %773 = vmatprep.subr.mxu0 0.0
        %774 = vmatpush1.msra.mxu0 0.0
        %775 = vmatprep.subr.mxu0 0.0
        %776 = vmatpush1.msra.mxu0 0.0
        %777 = vmatprep.subr.mxu0 0.0
        %778 = vmatpush1.msra.mxu0 0.0
        %779 = vmatprep.subr.mxu0 0.0
        %780 = vmatpush1.msra.mxu0 0.0
        %781 = vmatprep.subr.mxu0 0.0
        %782 = vmatpush1.msra.mxu0 0.0
        %783 = vmatprep.subr.mxu0 0.0
        %784 = vmatpush1.msra.mxu0 0.0
        %785 = vmatprep.subr.mxu0 0.0
        %786 = vmatpush1.msra.mxu0 0.0
        %787 = vmatprep.subr.mxu0 0.0
        %788 = vmatpush1.msra.mxu0 0.0
        %789 = vmatprep.subr.mxu0 0.0
        %790 = vmatpush1.msra.mxu0 0.0
        %791 = vmatprep.mubr.f32.mxu0 0.0
        %792 = vmatmul.mubr.f32.gmra.mrb[0].mxu0 %v716
        %v793 = vpop.f32.mrb[0].mxu0
        %v794 = vadd.f32 %v536, %v793
        %v795 = vpop.f32.mrb[0].mxu0
        %v796 = vadd.f32 %v538, %v795
        %797 = vmatprep.mubr.f32.mxu0 0.0
        %798 = vmatmul.mubr.f32.gmra.mrb[0].mxu0 %v719
        %v799 = vpop.f32.mrb[0].mxu0
        %v800 = vadd.f32 %v542, %v799
        %v801 = vpop.f32.mrb[0].mxu0
        %v802 = vadd.f32 %v544, %v801
        %803 = vmatprep.mubr.f32.mxu0 0.0
        %804 = vmatmul.mubr.f32.gmra.mrb[0].mxu0 %v722
        %v805 = vpop.f32.mrb[0].mxu0
        %v806 = vadd.f32 %v548, %v805
        %v807 = vpop.f32.mrb[0].mxu0
        %v808 = vadd.f32 %v550, %v807
        %809 = vmatprep.mubr.f32.mxu0 0.0
        %810 = vmatmul.mubr.f32.gmra.mrb[0].mxu0 %v725
        %v811 = vpop.f32.mrb[0].mxu0
        %v812 = vadd.f32 %v554, %v811
        %v813 = vpop.f32.mrb[0].mxu0
        %v814 = vadd.f32 %v556, %v813
        %815 = vdwg.mxu0
        %s816 = scalar_lea.vmem [#allocation5], 64
        %v817 = vld [vmem:[%s816] sm:$0xff]
        %v818 = vld [vmem:[%s816 + $0x8] sm:$0xff]
        %v819 = vld [vmem:[%s816 + $0x10] sm:$0xff]
        %v820 = vld [vmem:[%s816 + $0x18] sm:$0xff]
        %v821 = vld [vmem:[#allocation2 + $0x8] sm:$0xff]
        %v822 = vld [vmem:[#allocation2 + $0x10] sm:$0xff]
        %v823 = vld [vmem:[#allocation2 + $0x18] sm:$0xff]
        %v824 = vld [vmem:[#allocation2 + $0x28] sm:$0xff]
        %v825 = vld [vmem:[#allocation2 + $0x30] sm:$0xff]
        %v826 = vld [vmem:[#allocation2 + $0x38] sm:$0xff]
        %v827 = vld [vmem:[#allocation2 + $0x48] sm:$0xff]
        %v828 = vld [vmem:[#allocation2 + $0x50] sm:$0xff]
        %v829 = vld [vmem:[#allocation2 + $0x58] sm:$0xff]
        %v830 = vld [vmem:[#allocation2 + $0x68] sm:$0xff]
        %v831 = vld [vmem:[#allocation2 + $0x70] sm:$0xff]
        %v832 = vld [vmem:[#allocation2 + $0x78] sm:$0xff]
        %v833 = vld [vmem:[#allocation2 + $0x88] sm:$0xff]
        %v834 = vld [vmem:[#allocation2 + $0x90] sm:$0xff]
        %v835 = vld [vmem:[#allocation2 + $0x98] sm:$0xff]
        %v836 = vld [vmem:[#allocation2 + $0xa8] sm:$0xff]
        %v837 = vld [vmem:[#allocation2 + $0xb0] sm:$0xff]
        %v838 = vld [vmem:[#allocation2 + $0xb8] sm:$0xff]
        %v839 = vld [vmem:[#allocation2 + $0xc8] sm:$0xff]
        %v840 = vld [vmem:[#allocation2 + $0xd0] sm:$0xff]
        %v841 = vld [vmem:[#allocation2 + $0xd8] sm:$0xff]
        %v842 = vld [vmem:[#allocation2 + $0xe8] sm:$0xff]
        %v843 = vld [vmem:[#allocation2 + $0xf0] sm:$0xff]
        %v844 = vld [vmem:[#allocation2 + $0xf8] sm:$0xff]
        %v845 = vld [vmem:[#allocation2 + $0x108] sm:$0xff]
        %v846 = vld [vmem:[#allocation2 + $0x110] sm:$0xff]
        %v847 = vld [vmem:[#allocation2 + $0x118] sm:$0xff]
        %v848 = vld [vmem:[#allocation2 + $0x128] sm:$0xff]
        %v849 = vld [vmem:[#allocation2 + $0x130] sm:$0xff]
        %v850 = vld [vmem:[#allocation2 + $0x138] sm:$0xff]
        %v851 = vld [vmem:[#allocation2 + $0x148] sm:$0xff]
        %v852 = vld [vmem:[#allocation2 + $0x150] sm:$0xff]
        %v853 = vld [vmem:[#allocation2 + $0x158] sm:$0xff]
        %v854 = vld [vmem:[#allocation2 + $0x168] sm:$0xff]
        %v855 = vld [vmem:[#allocation2 + $0x170] sm:$0xff]
        %v856 = vld [vmem:[#allocation2 + $0x178] sm:$0xff]
        %893 = vrot.lane.b32.xlu0 %v821, 112
        %v894 = vpop.permute.xlu0 %893
        %895 = vrot.lane.b32.xlu0 %v822, 112
        %v896 = vpop.permute.xlu0 %895
        %897 = vrot.lane.b32.xlu0 %v823, 112
        %v898 = vpop.permute.xlu0 %897
        %899 = vrot.lane.b32.xlu0 %v824, 112
        %v900 = vpop.permute.xlu0 %899
        %901 = vrot.lane.b32.xlu0 %v825, 112
        %v902 = vpop.permute.xlu0 %901
        %903 = vrot.lane.b32.xlu0 %v826, 112
        %v904 = vpop.permute.xlu0 %903
        %905 = vrot.lane.b32.xlu0 %v827, 112
        %v906 = vpop.permute.xlu0 %905
        %907 = vrot.lane.b32.xlu0 %v828, 112
        %v908 = vpop.permute.xlu0 %907
        %909 = vrot.lane.b32.xlu0 %v829, 112
        %v910 = vpop.permute.xlu0 %909
        %911 = vrot.lane.b32.xlu0 %v830, 112
        %v912 = vpop.permute.xlu0 %911
        %913 = vrot.lane.b32.xlu0 %v831, 112
        %v914 = vpop.permute.xlu0 %913
        %915 = vrot.lane.b32.xlu0 %v832, 112
        %v916 = vpop.permute.xlu0 %915
        %917 = vrot.lane.b32.xlu0 %v833, 112
        %v918 = vpop.permute.xlu0 %917
        %919 = vrot.lane.b32.xlu0 %v834, 112
        %v920 = vpop.permute.xlu0 %919
        %921 = vrot.lane.b32.xlu0 %v835, 112
        %v922 = vpop.permute.xlu0 %921
        %923 = vrot.lane.b32.xlu0 %v836, 112
        %v924 = vpop.permute.xlu0 %923
        %925 = vrot.lane.b32.xlu0 %v837, 112
        %v926 = vpop.permute.xlu0 %925
        %927 = vrot.lane.b32.xlu0 %v838, 112
        %v928 = vpop.permute.xlu0 %927
        %929 = vrot.lane.b32.xlu0 %v839, 112
        %v930 = vpop.permute.xlu0 %929
        %931 = vrot.lane.b32.xlu0 %v840, 112
        %v932 = vpop.permute.xlu0 %931
        %933 = vrot.lane.b32.xlu0 %v841, 112
        %v934 = vpop.permute.xlu0 %933
        %935 = vrot.lane.b32.xlu0 %v842, 112
        %v936 = vpop.permute.xlu0 %935
        %937 = vrot.lane.b32.xlu0 %v843, 112
        %v938 = vpop.permute.xlu0 %937
        %939 = vrot.lane.b32.xlu0 %v844, 112
        %v940 = vpop.permute.xlu0 %939
        %941 = vrot.lane.b32.xlu0 %v845, 112
        %v942 = vpop.permute.xlu0 %941
        %943 = vrot.lane.b32.xlu0 %v846, 112
        %v944 = vpop.permute.xlu0 %943
        %945 = vrot.lane.b32.xlu0 %v847, 112
        %v946 = vpop.permute.xlu0 %945
        %947 = vrot.lane.b32.xlu0 %v848, 112
        %v948 = vpop.permute.xlu0 %947
        %949 = vrot.lane.b32.xlu0 %v849, 112
        %v950 = vpop.permute.xlu0 %949
        %951 = vrot.lane.b32.xlu0 %v850, 112
        %v952 = vpop.permute.xlu0 %951
        %953 = vrot.lane.b32.xlu0 %v851, 112
        %v954 = vpop.permute.xlu0 %953
        %955 = vrot.lane.b32.xlu0 %v852, 112
        %v956 = vpop.permute.xlu0 %955
        %957 = vrot.lane.b32.xlu0 %v853, 112
        %v958 = vpop.permute.xlu0 %957
        %959 = vrot.lane.b32.xlu0 %v854, 112
        %v960 = vpop.permute.xlu0 %959
        %961 = vrot.lane.b32.xlu0 %v855, 112
        %v962 = vpop.permute.xlu0 %961
        %963 = vrot.lane.b32.xlu0 %v856, 112
        %v964 = vpop.permute.xlu0 %963
        %vm965 = vcmask 916480
        %v966 = vsel %vm965, %v894, %v896
        %v967 = vsel %vm965, %v896, %v898
        %v968 = vsel %vm965, %v900, %v902
        %v969 = vsel %vm965, %v902, %v904
        %v970 = vsel %vm965, %v906, %v908
        %v971 = vsel %vm965, %v908, %v910
        %v972 = vsel %vm965, %v912, %v914
        %v973 = vsel %vm965, %v914, %v916
        %v974 = vsel %vm965, %v918, %v920
        %v975 = vsel %vm965, %v920, %v922
        %v976 = vsel %vm965, %v924, %v926
        %v977 = vsel %vm965, %v926, %v928
        %v978 = vsel %vm965, %v930, %v932
        %v979 = vsel %vm965, %v932, %v934
        %v980 = vsel %vm965, %v936, %v938
        %v981 = vsel %vm965, %v938, %v940
        %v982 = vsel %vm965, %v942, %v944
        %v983 = vsel %vm965, %v944, %v946
        %v984 = vsel %vm965, %v948, %v950
        %v985 = vsel %vm965, %v950, %v952
        %v986 = vsel %vm965, %v954, %v956
        %v987 = vsel %vm965, %v956, %v958
        %v988 = vsel %vm965, %v960, %v962
        %v989 = vsel %vm965, %v962, %v964
        %v1015 = vsel %vm456, %v817, 0
        %v1018 = vsel %vm456, %v818, 0
        %v1021 = vsel %vm456, %v819, 0
        %v1024 = vsel %vm456, %v820, 0
        %1026 = vmatprep.subr.mxu0 %v967
        %1027 = vmatpush1.msra.mxu0 %v966
        %1028 = vmatprep.subr.mxu0 %v969
        %1029 = vmatpush1.msra.mxu0 %v968
        %1030 = vmatprep.subr.mxu0 %v971
        %1031 = vmatpush1.msra.mxu0 %v970
        %1032 = vmatprep.subr.mxu0 %v973
        %1033 = vmatpush1.msra.mxu0 %v972
        %1034 = vmatprep.subr.mxu0 %v975
        %1035 = vmatpush1.msra.mxu0 %v974
        %1036 = vmatprep.subr.mxu0 %v977
        %1037 = vmatpush1.msra.mxu0 %v976
        %1038 = vmatprep.subr.mxu0 %v979
        %1039 = vmatpush1.msra.mxu0 %v978
        %1040 = vmatprep.subr.mxu0 %v981
        %1041 = vmatpush1.msra.mxu0 %v980
        %1042 = vmatprep.subr.mxu0 %v983
        %1043 = vmatpush1.msra.mxu0 %v982
        %1044 = vmatprep.subr.mxu0 %v985
        %1045 = vmatpush1.msra.mxu0 %v984
        %1046 = vmatprep.subr.mxu0 %v987
        %1047 = vmatpush1.msra.mxu0 %v986
        %1048 = vmatprep.subr.mxu0 %v989
        %1049 = vmatpush1.msra.mxu0 %v988
        %1050 = vmatprep.subr.mxu0 0.0
        %1051 = vmatpush1.msra.mxu0 0.0
        %1052 = vmatprep.subr.mxu0 0.0
        %1053 = vmatpush1.msra.mxu0 0.0
        %1054 = vmatprep.subr.mxu0 0.0
        %1055 = vmatpush1.msra.mxu0 0.0
        %1056 = vmatprep.subr.mxu0 0.0
        %1057 = vmatpush1.msra.mxu0 0.0
        %1058 = vmatprep.subr.mxu0 0.0
        %1059 = vmatpush1.msra.mxu0 0.0
        %1060 = vmatprep.subr.mxu0 0.0
        %1061 = vmatpush1.msra.mxu0 0.0
        %1062 = vmatprep.subr.mxu0 0.0
        %1063 = vmatpush1.msra.mxu0 0.0
        %1064 = vmatprep.subr.mxu0 0.0
        %1065 = vmatpush1.msra.mxu0 0.0
        %1066 = vmatprep.subr.mxu0 0.0
        %1067 = vmatpush1.msra.mxu0 0.0
        %1068 = vmatprep.subr.mxu0 0.0
        %1069 = vmatpush1.msra.mxu0 0.0
        %1070 = vmatprep.subr.mxu0 0.0
        %1071 = vmatpush1.msra.mxu0 0.0
        %1072 = vmatprep.subr.mxu0 0.0
        %1073 = vmatpush1.msra.mxu0 0.0
        %1074 = vmatprep.subr.mxu0 0.0
        %1075 = vmatpush1.msra.mxu0 0.0
        %1076 = vmatprep.subr.mxu0 0.0
        %1077 = vmatpush1.msra.mxu0 0.0
        %1078 = vmatprep.subr.mxu0 0.0
        %1079 = vmatpush1.msra.mxu0 0.0
        %1080 = vmatprep.subr.mxu0 0.0
        %1081 = vmatpush1.msra.mxu0 0.0
        %1082 = vmatprep.subr.mxu0 0.0
        %1083 = vmatpush1.msra.mxu0 0.0
        %1084 = vmatprep.subr.mxu0 0.0
        %1085 = vmatpush1.msra.mxu0 0.0
        %1086 = vmatprep.subr.mxu0 0.0
        %1087 = vmatpush1.msra.mxu0 0.0
        %1088 = vmatprep.subr.mxu0 0.0
        %1089 = vmatpush1.msra.mxu0 0.0
        %1090 = vmatprep.mubr.f32.mxu0 0.0
        %1091 = vmatmul.mubr.f32.gmra.mrb[0].mxu0 %v1015
        %v1092 = vpop.f32.mrb[0].mxu0
        %v1093 = vadd.f32 0.0, %v1092
        %v1094 = vpop.f32.mrb[0].mxu0
        %v1095 = vadd.f32 0.0, %v1094
        %1096 = vmatprep.mubr.f32.mxu0 0.0
        %1097 = vmatmul.mubr.f32.gmra.mrb[0].mxu0 %v1018
        %v1098 = vpop.f32.mrb[0].mxu0
        %v1099 = vadd.f32 0.0, %v1098
        %v1100 = vpop.f32.mrb[0].mxu0
        %v1101 = vadd.f32 0.0, %v1100
        %1102 = vmatprep.mubr.f32.mxu0 0.0
        %1103 = vmatmul.mubr.f32.gmra.mrb[0].mxu0 %v1021
        %v1104 = vpop.f32.mrb[0].mxu0
        %v1105 = vadd.f32 0.0, %v1104
        %v1106 = vpop.f32.mrb[0].mxu0
        %v1107 = vadd.f32 0.0, %v1106
        %1108 = vmatprep.mubr.f32.mxu0 0.0
        %1109 = vmatmul.mubr.f32.gmra.mrb[0].mxu0 %v1024
        %v1110 = vpop.f32.mrb[0].mxu0
        %v1111 = vadd.f32 0.0, %v1110
        %v1112 = vpop.f32.mrb[0].mxu0
        %v1113 = vadd.f32 0.0, %v1112
        %1114 = vdwg.mxu0
        %v1115 = vadd.f32 %v794, %v1093
        %v1116 = vadd.f32 %v796, %v1095
        %v1117 = vadd.f32 %v800, %v1099
        %v1118 = vadd.f32 %v802, %v1101
        %v1119 = vadd.f32 %v806, %v1105
        %v1120 = vadd.f32 %v808, %v1107
        %v1121 = vadd.f32 %v812, %v1111
        %v1122 = vadd.f32 %v814, %v1113
        %v1123 = vld [vmem:[%s2] sm:$0xff]
        %v1124 = vld [vmem:[%s2 + $0x8] sm:$0xff]
        %v1125 = vld [vmem:[%s2 + $0x10] sm:$0xff]
        %v1126 = vld [vmem:[%s2 + $0x18] sm:$0xff]
        %1128 = vset.pattern.permute.xlu0 0
        %1129 = vperm.xlu0 %1128, %v1123
        %v1130 = vpop.permute.xlu0 %1129
        %1133 = vset.pattern.permute.xlu0 0
        %1134 = vperm.xlu0 %1133, %v1124
        %v1135 = vpop.permute.xlu0 %1134
        %1138 = vset.pattern.permute.xlu0 0
        %1139 = vperm.xlu0 %1138, %v1125
        %v1140 = vpop.permute.xlu0 %1139
        %1143 = vset.pattern.permute.xlu0 0
        %1144 = vperm.xlu0 %1143, %v1126
        %v1145 = vpop.permute.xlu0 %1144
        %v1147 = vadd.f32 %v1115, %v1130
        %v1148 = vadd.f32 %v1116, %v1130
        %v1149 = vadd.f32 %v1117, %v1135
        %v1150 = vadd.f32 %v1118, %v1135
        %v1151 = vadd.f32 %v1119, %v1140
        %v1152 = vadd.f32 %v1120, %v1140
        %v1153 = vadd.f32 %v1121, %v1145
        %v1154 = vadd.f32 %v1122, %v1145
        %1155 = vst [vmem:[#allocation3] sm:$0xff] %v1147
        %1156 = vst [vmem:[#allocation3 + $0x8] sm:$0xff] %v1148
        %1157 = vst [vmem:[#allocation3 + $0x10] sm:$0xff] %v1149
        %1158 = vst [vmem:[#allocation3 + $0x18] sm:$0xff] %v1150
        %1159 = vst [vmem:[#allocation3 + $0x20] sm:$0xff] %v1151
        %1160 = vst [vmem:[#allocation3 + $0x28] sm:$0xff] %v1152
        %1161 = vst [vmem:[#allocation3 + $0x30] sm:$0xff] %v1153
        %1162 = vst [vmem:[#allocation3 + $0x38] sm:$0xff] %v1154
        %1163 = vst [vmem:[#allocation4] sm:$0xff] %v1147
        %1164 = vst [vmem:[#allocation4 + $0x8] sm:$0xff] %v1148
        %1165 = vst [vmem:[#allocation4 + $0x10] sm:$0xff] %v1149
        %1166 = vst [vmem:[#allocation4 + $0x18] sm:$0xff] %v1150
        %1167 = vst [vmem:[#allocation4 + $0x20] sm:$0xff] %v1151
        %1168 = vst [vmem:[#allocation4 + $0x28] sm:$0xff] %v1152
        %1169 = vst [vmem:[#allocation4 + $0x30] sm:$0xff] %v1153
        %1170 = vst [vmem:[#allocation4 + $0x38] sm:$0xff] %v1154
        loop: start=0, step=1, limit=2
        $region37: #{tpu_custom_call.1} parent=31 // loop_pre_header
          _
        $region38: #{tpu_custom_call.1} parent=31 // loop_header
          %s1172 = sphi 0, %s1176
          %p1173 = scmp.ge.s32.totalorder %s1172, 2
        $region39: #{tpu_custom_call.1} parent=31 // loop_header_branch
          %1175 = sbr.rel (%p1173) target = $region43
        $region40: #{tpu_custom_call.1} parent=31 // loop_body
          %s1177 = smul.u32 %s1172, 2
          %s1178 = sadd.s32 %s1177, 1
          %v1179 = vld [vmem:[#allocation4] sm:$0xff]
          %v1180 = vld [vmem:[#allocation4 + $0x8] sm:$0xff]
          %v1181 = vld [vmem:[#allocation4 + $0x10] sm:$0xff]
          %v1182 = vld [vmem:[#allocation4 + $0x18] sm:$0xff]
          %v1183 = vld [vmem:[#allocation4 + $0x20] sm:$0xff]
          %v1184 = vld [vmem:[#allocation4 + $0x28] sm:$0xff]
          %v1185 = vld [vmem:[#allocation4 + $0x30] sm:$0xff]
          %v1186 = vld [vmem:[#allocation4 + $0x38] sm:$0xff]
          %1187 = vst [vmem:[#allocation2 + $0x88] sm:$0xff] %v1179
          %1188 = vst [vmem:[#allocation2 + $0x90] sm:$0xff] %v1180
          %1189 = vst [vmem:[#allocation2 + $0xa8] sm:$0xff] %v1181
          %1190 = vst [vmem:[#allocation2 + $0xb0] sm:$0xff] %v1182
          %1191 = vst [vmem:[#allocation2 + $0xc8] sm:$0xff] %v1183
          %1192 = vst [vmem:[#allocation2 + $0xd0] sm:$0xff] %v1184
          %1193 = vst [vmem:[#allocation2 + $0xe8] sm:$0xff] %v1185
          %1194 = vst [vmem:[#allocation2 + $0xf0] sm:$0xff] %v1186
          %v1195 = vsel %vm281, %v1179, 0.0
          %v1196 = vsel %vm282, %v1180, 0.0
          %v1197 = vsel %vm281, %v1181, 0.0
          %v1198 = vsel %vm282, %v1182, 0.0
          %v1199 = vsel %vm281, %v1183, 0.0
          %v1200 = vsel %vm282, %v1184, 0.0
          %v1201 = vsel %vm281, %v1185, 0.0
          %v1202 = vsel %vm282, %v1186, 0.0
          %1211 = vrot.lane.b32.xlu0 %v1195, 1
          %v1212 = vpop.permute.xlu0 %1211
          %1213 = vrot.lane.b32.xlu0 %v1196, 1
          %v1214 = vpop.permute.xlu0 %1213
          %1215 = vrot.lane.b32.xlu0 %v1197, 1
          %v1216 = vpop.permute.xlu0 %1215
          %1217 = vrot.lane.b32.xlu0 %v1198, 1
          %v1218 = vpop.permute.xlu0 %1217
          %1219 = vrot.lane.b32.xlu0 %v1199, 1
          %v1220 = vpop.permute.xlu0 %1219
          %1221 = vrot.lane.b32.xlu0 %v1200, 1
          %v1222 = vpop.permute.xlu0 %1221
          %1223 = vrot.lane.b32.xlu0 %v1201, 1
          %v1224 = vpop.permute.xlu0 %1223
          %1225 = vrot.lane.b32.xlu0 %v1202, 1
          %v1226 = vpop.permute.xlu0 %1225
          %v1227 = vsel %vm315, %v1212, %v1214
          %v1228 = vsel %vm315, %v1216, %v1218
          %v1229 = vsel %vm315, %v1220, %v1222
          %v1230 = vsel %vm315, %v1224, %v1226
          %1243 = vst.msk [vmem:[#allocation2 + $0x8] sm:$0xff] %vm332, %v1212
          %1244 = vst [vmem:[#allocation2 + $0x10] sm:$0xff] %v1227
          %1245 = vst.msk [vmem:[#allocation2 + $0x18] sm:$0xff] %vm315, %v1214
          %1246 = vst.msk [vmem:[#allocation2 + $0x28] sm:$0xff] %vm332, %v1216
          %1247 = vst [vmem:[#allocation2 + $0x30] sm:$0xff] %v1228
          %1248 = vst.msk [vmem:[#allocation2 + $0x38] sm:$0xff] %vm315, %v1218
          %1249 = vst.msk [vmem:[#allocation2 + $0x48] sm:$0xff] %vm332, %v1220
          %1250 = vst [vmem:[#allocation2 + $0x50] sm:$0xff] %v1229
          %1251 = vst.msk [vmem:[#allocation2 + $0x58] sm:$0xff] %vm315, %v1222
          %1252 = vst.msk [vmem:[#allocation2 + $0x68] sm:$0xff] %vm332, %v1224
          %1253 = vst [vmem:[#allocation2 + $0x70] sm:$0xff] %v1230
          %1254 = vst.msk [vmem:[#allocation2 + $0x78] sm:$0xff] %vm315, %v1226
          %v1255 = vsel %vm347, %v1179, 0.0
          %v1256 = vsel %vm348, %v1180, 0.0
          %v1257 = vsel %vm347, %v1181, 0.0
          %v1258 = vsel %vm348, %v1182, 0.0
          %v1259 = vsel %vm347, %v1183, 0.0
          %v1260 = vsel %vm348, %v1184, 0.0
          %v1261 = vsel %vm347, %v1185, 0.0
          %v1262 = vsel %vm348, %v1186, 0.0
          %1271 = vrot.lane.b32.xlu0 %v1255, 127
          %v1272 = vpop.permute.xlu0 %1271
          %1273 = vrot.lane.b32.xlu0 %v1256, 127
          %v1274 = vpop.permute.xlu0 %1273
          %1275 = vrot.lane.b32.xlu0 %v1257, 127
          %v1276 = vpop.permute.xlu0 %1275
          %1277 = vrot.lane.b32.xlu0 %v1258, 127
          %v1278 = vpop.permute.xlu0 %1277
          %1279 = vrot.lane.b32.xlu0 %v1259, 127
          %v1280 = vpop.permute.xlu0 %1279
          %1281 = vrot.lane.b32.xlu0 %v1260, 127
          %v1282 = vpop.permute.xlu0 %1281
          %1283 = vrot.lane.b32.xlu0 %v1261, 127
          %v1284 = vpop.permute.xlu0 %1283
          %1285 = vrot.lane.b32.xlu0 %v1262, 127
          %v1286 = vpop.permute.xlu0 %1285
          %v1287 = vsel %vm381, %v1272, %v1274
          %v1288 = vsel %vm381, %v1276, %v1278
          %v1289 = vsel %vm381, %v1280, %v1282
          %v1290 = vsel %vm381, %v1284, %v1286
          %1303 = vst.msk [vmem:[#allocation2 + $0x100] sm:$0xff] %vm398, %v1272
          %1304 = vst [vmem:[#allocation2 + $0x108] sm:$0xff] %v1287
          %1305 = vst.msk [vmem:[#allocation2 + $0x110] sm:$0xff] %vm381, %v1274
          %1306 = vst.msk [vmem:[#allocation2 + $0x120] sm:$0xff] %vm398, %v1276
          %1307 = vst [vmem:[#allocation2 + $0x128] sm:$0xff] %v1288
          %1308 = vst.msk [vmem:[#allocation2 + $0x130] sm:$0xff] %vm381, %v1278
          %1309 = vst.msk [vmem:[#allocation2 + $0x140] sm:$0xff] %vm398, %v1280
          %1310 = vst [vmem:[#allocation2 + $0x148] sm:$0xff] %v1289
          %1311 = vst.msk [vmem:[#allocation2 + $0x150] sm:$0xff] %vm381, %v1282
          %1312 = vst.msk [vmem:[#allocation2 + $0x160] sm:$0xff] %vm398, %v1284
          %1313 = vst [vmem:[#allocation2 + $0x168] sm:$0xff] %v1290
          %1314 = vst.msk [vmem:[#allocation2 + $0x170] sm:$0xff] %vm381, %v1286
          %s1315 = smul.u32 %s1178, 3
          %s1316 = smul.u32 %s1315, 32
          %s1317 = scalar_lea.vmem [#allocation5], %s1316
          %v1318 = vld [vmem:[%s1317] sm:$0xff]
          %v1319 = vld [vmem:[%s1317 + $0x8] sm:$0xff]
          %v1320 = vld [vmem:[%s1317 + $0x10] sm:$0xff]
          %v1321 = vld [vmem:[%s1317 + $0x18] sm:$0xff]
          %v1322 = vld [vmem:[#allocation2] sm:$0xff]
          %v1323 = vld [vmem:[#allocation2 + $0x8] sm:$0xff]
          %v1324 = vld [vmem:[#allocation2 + $0x10] sm:$0xff]
          %v1325 = vld [vmem:[#allocation2 + $0x20] sm:$0xff]
          %v1326 = vld [vmem:[#allocation2 + $0x28] sm:$0xff]
          %v1327 = vld [vmem:[#allocation2 + $0x30] sm:$0xff]
          %v1328 = vld [vmem:[#allocation2 + $0x40] sm:$0xff]
          %v1329 = vld [vmem:[#allocation2 + $0x48] sm:$0xff]
          %v1330 = vld [vmem:[#allocation2 + $0x50] sm:$0xff]
          %v1331 = vld [vmem:[#allocation2 + $0x60] sm:$0xff]
          %v1332 = vld [vmem:[#allocation2 + $0x68] sm:$0xff]
          %v1333 = vld [vmem:[#allocation2 + $0x70] sm:$0xff]
          %v1334 = vld [vmem:[#allocation2 + $0x80] sm:$0xff]
          %v1335 = vld [vmem:[#allocation2 + $0x88] sm:$0xff]
          %v1336 = vld [vmem:[#allocation2 + $0x90] sm:$0xff]
          %v1337 = vld [vmem:[#allocation2 + $0xa0] sm:$0xff]
          %v1338 = vld [vmem:[#allocation2 + $0xa8] sm:$0xff]
          %v1339 = vld [vmem:[#allocation2 + $0xb0] sm:$0xff]
          %v1340 = vld [vmem:[#allocation2 + $0xc0] sm:$0xff]
          %v1341 = vld [vmem:[#allocation2 + $0xc8] sm:$0xff]
          %v1342 = vld [vmem:[#allocation2 + $0xd0] sm:$0xff]
          %v1343 = vld [vmem:[#allocation2 + $0xe0] sm:$0xff]
          %v1344 = vld [vmem:[#allocation2 + $0xe8] sm:$0xff]
          %v1345 = vld [vmem:[#allocation2 + $0xf0] sm:$0xff]
          %v1346 = vld [vmem:[#allocation2 + $0x100] sm:$0xff]
          %v1347 = vld [vmem:[#allocation2 + $0x108] sm:$0xff]
          %v1348 = vld [vmem:[#allocation2 + $0x110] sm:$0xff]
          %v1349 = vld [vmem:[#allocation2 + $0x120] sm:$0xff]
          %v1350 = vld [vmem:[#allocation2 + $0x128] sm:$0xff]
          %v1351 = vld [vmem:[#allocation2 + $0x130] sm:$0xff]
          %v1352 = vld [vmem:[#allocation2 + $0x140] sm:$0xff]
          %v1353 = vld [vmem:[#allocation2 + $0x148] sm:$0xff]
          %v1354 = vld [vmem:[#allocation2 + $0x150] sm:$0xff]
          %v1355 = vld [vmem:[#allocation2 + $0x160] sm:$0xff]
          %v1356 = vld [vmem:[#allocation2 + $0x168] sm:$0xff]
          %v1357 = vld [vmem:[#allocation2 + $0x170] sm:$0xff]
          %s1358 = sadd.s32 %s1315, 1
          %s1359 = smul.u32 %s1358, 32
          %s1360 = scalar_lea.vmem [#allocation5], %s1359
          %v1361 = vld [vmem:[%s1360] sm:$0xff]
          %v1362 = vld [vmem:[%s1360 + $0x8] sm:$0xff]
          %v1363 = vld [vmem:[%s1360 + $0x10] sm:$0xff]
          %v1364 = vld [vmem:[%s1360 + $0x18] sm:$0xff]
          %v1366 = vsel %vm456, %v1361, 0
          %v1369 = vsel %vm456, %v1362, 0
          %v1372 = vsel %vm456, %v1363, 0
          %v1375 = vsel %vm456, %v1364, 0
          %1377 = vmatprep.subr.mxu0 %v1324
          %1378 = vmatpush1.msra.mxu0 %v1323
          %1379 = vmatprep.subr.mxu0 %v1327
          %1380 = vmatpush1.msra.mxu0 %v1326
          %1381 = vmatprep.subr.mxu0 %v1330
          %1382 = vmatpush1.msra.mxu0 %v1329
          %1383 = vmatprep.subr.mxu0 %v1333
          %1384 = vmatpush1.msra.mxu0 %v1332
          %1385 = vmatprep.subr.mxu0 %v1336
          %1386 = vmatpush1.msra.mxu0 %v1335
          %1387 = vmatprep.subr.mxu0 %v1339
          %1388 = vmatpush1.msra.mxu0 %v1338
          %1389 = vmatprep.subr.mxu0 %v1342
          %1390 = vmatpush1.msra.mxu0 %v1341
          %1391 = vmatprep.subr.mxu0 %v1345
          %1392 = vmatpush1.msra.mxu0 %v1344
          %1393 = vmatprep.subr.mxu0 %v1348
          %1394 = vmatpush1.msra.mxu0 %v1347
          %1395 = vmatprep.subr.mxu0 %v1351
          %1396 = vmatpush1.msra.mxu0 %v1350
          %1397 = vmatprep.subr.mxu0 %v1354
          %1398 = vmatpush1.msra.mxu0 %v1353
          %1399 = vmatprep.subr.mxu0 %v1357
          %1400 = vmatpush1.msra.mxu0 %v1356
          %1401 = vmatprep.subr.mxu0 0.0
          %1402 = vmatpush1.msra.mxu0 0.0
          %1403 = vmatprep.subr.mxu0 0.0
          %1404 = vmatpush1.msra.mxu0 0.0
          %1405 = vmatprep.subr.mxu0 0.0
          %1406 = vmatpush1.msra.mxu0 0.0
          %1407 = vmatprep.subr.mxu0 0.0
          %1408 = vmatpush1.msra.mxu0 0.0
          %1409 = vmatprep.subr.mxu0 0.0
          %1410 = vmatpush1.msra.mxu0 0.0
          %1411 = vmatprep.subr.mxu0 0.0
          %1412 = vmatpush1.msra.mxu0 0.0
          %1413 = vmatprep.subr.mxu0 0.0
          %1414 = vmatpush1.msra.mxu0 0.0
          %1415 = vmatprep.subr.mxu0 0.0
          %1416 = vmatpush1.msra.mxu0 0.0
          %1417 = vmatprep.subr.mxu0 0.0
          %1418 = vmatpush1.msra.mxu0 0.0
          %1419 = vmatprep.subr.mxu0 0.0
          %1420 = vmatpush1.msra.mxu0 0.0
          %1421 = vmatprep.subr.mxu0 0.0
          %1422 = vmatpush1.msra.mxu0 0.0
          %1423 = vmatprep.subr.mxu0 0.0
          %1424 = vmatpush1.msra.mxu0 0.0
          %1425 = vmatprep.subr.mxu0 0.0
          %1426 = vmatpush1.msra.mxu0 0.0
          %1427 = vmatprep.subr.mxu0 0.0
          %1428 = vmatpush1.msra.mxu0 0.0
          %1429 = vmatprep.subr.mxu0 0.0
          %1430 = vmatpush1.msra.mxu0 0.0
          %1431 = vmatprep.subr.mxu0 0.0
          %1432 = vmatpush1.msra.mxu0 0.0
          %1433 = vmatprep.subr.mxu0 0.0
          %1434 = vmatpush1.msra.mxu0 0.0
          %1435 = vmatprep.subr.mxu0 0.0
          %1436 = vmatpush1.msra.mxu0 0.0
          %1437 = vmatprep.subr.mxu0 0.0
          %1438 = vmatpush1.msra.mxu0 0.0
          %1439 = vmatprep.subr.mxu0 0.0
          %1440 = vmatpush1.msra.mxu0 0.0
          %1441 = vmatprep.mubr.f32.mxu0 0.0
          %1442 = vmatmul.mubr.f32.gmra.mrb[0].mxu0 %v1366
          %v1443 = vpop.f32.mrb[0].mxu0
          %v1444 = vadd.f32 0.0, %v1443
          %v1445 = vpop.f32.mrb[0].mxu0
          %v1446 = vadd.f32 0.0, %v1445
          %1447 = vmatprep.mubr.f32.mxu0 0.0
          %1448 = vmatmul.mubr.f32.gmra.mrb[0].mxu0 %v1369
          %v1449 = vpop.f32.mrb[0].mxu0
          %v1450 = vadd.f32 0.0, %v1449
          %v1451 = vpop.f32.mrb[0].mxu0
          %v1452 = vadd.f32 0.0, %v1451
          %1453 = vmatprep.mubr.f32.mxu0 0.0
          %1454 = vmatmul.mubr.f32.gmra.mrb[0].mxu0 %v1372
          %v1455 = vpop.f32.mrb[0].mxu0
          %v1456 = vadd.f32 0.0, %v1455
          %v1457 = vpop.f32.mrb[0].mxu0
          %v1458 = vadd.f32 0.0, %v1457
          %1459 = vmatprep.mubr.f32.mxu0 0.0
          %1460 = vmatmul.mubr.f32.gmra.mrb[0].mxu0 %v1375
          %v1461 = vpop.f32.mrb[0].mxu0
          %v1462 = vadd.f32 0.0, %v1461
          %v1463 = vpop.f32.mrb[0].mxu0
          %v1464 = vadd.f32 0.0, %v1463
          %1465 = vdwg.mxu0
          %1502 = vrot.lane.b32.xlu0 %v1322, 16
          %v1503 = vpop.permute.xlu0 %1502
          %1504 = vrot.lane.b32.xlu0 %v1323, 16
          %v1505 = vpop.permute.xlu0 %1504
          %1506 = vrot.lane.b32.xlu0 %v1324, 16
          %v1507 = vpop.permute.xlu0 %1506
          %1508 = vrot.lane.b32.xlu0 %v1325, 16
          %v1509 = vpop.permute.xlu0 %1508
          %1510 = vrot.lane.b32.xlu0 %v1326, 16
          %v1511 = vpop.permute.xlu0 %1510
          %1512 = vrot.lane.b32.xlu0 %v1327, 16
          %v1513 = vpop.permute.xlu0 %1512
          %1514 = vrot.lane.b32.xlu0 %v1328, 16
          %v1515 = vpop.permute.xlu0 %1514
          %1516 = vrot.lane.b32.xlu0 %v1329, 16
          %v1517 = vpop.permute.xlu0 %1516
          %1518 = vrot.lane.b32.xlu0 %v1330, 16
          %v1519 = vpop.permute.xlu0 %1518
          %1520 = vrot.lane.b32.xlu0 %v1331, 16
          %v1521 = vpop.permute.xlu0 %1520
          %1522 = vrot.lane.b32.xlu0 %v1332, 16
          %v1523 = vpop.permute.xlu0 %1522
          %1524 = vrot.lane.b32.xlu0 %v1333, 16
          %v1525 = vpop.permute.xlu0 %1524
          %1526 = vrot.lane.b32.xlu0 %v1334, 16
          %v1527 = vpop.permute.xlu0 %1526
          %1528 = vrot.lane.b32.xlu0 %v1335, 16
          %v1529 = vpop.permute.xlu0 %1528
          %1530 = vrot.lane.b32.xlu0 %v1336, 16
          %v1531 = vpop.permute.xlu0 %1530
          %1532 = vrot.lane.b32.xlu0 %v1337, 16
          %v1533 = vpop.permute.xlu0 %1532
          %1534 = vrot.lane.b32.xlu0 %v1338, 16
          %v1535 = vpop.permute.xlu0 %1534
          %1536 = vrot.lane.b32.xlu0 %v1339, 16
          %v1537 = vpop.permute.xlu0 %1536
          %1538 = vrot.lane.b32.xlu0 %v1340, 16
          %v1539 = vpop.permute.xlu0 %1538
          %1540 = vrot.lane.b32.xlu0 %v1341, 16
          %v1541 = vpop.permute.xlu0 %1540
          %1542 = vrot.lane.b32.xlu0 %v1342, 16
          %v1543 = vpop.permute.xlu0 %1542
          %1544 = vrot.lane.b32.xlu0 %v1343, 16
          %v1545 = vpop.permute.xlu0 %1544
          %1546 = vrot.lane.b32.xlu0 %v1344, 16
          %v1547 = vpop.permute.xlu0 %1546
          %1548 = vrot.lane.b32.xlu0 %v1345, 16
          %v1549 = vpop.permute.xlu0 %1548
          %1550 = vrot.lane.b32.xlu0 %v1346, 16
          %v1551 = vpop.permute.xlu0 %1550
          %1552 = vrot.lane.b32.xlu0 %v1347, 16
          %v1553 = vpop.permute.xlu0 %1552
          %1554 = vrot.lane.b32.xlu0 %v1348, 16
          %v1555 = vpop.permute.xlu0 %1554
          %1556 = vrot.lane.b32.xlu0 %v1349, 16
          %v1557 = vpop.permute.xlu0 %1556
          %1558 = vrot.lane.b32.xlu0 %v1350, 16
          %v1559 = vpop.permute.xlu0 %1558
          %1560 = vrot.lane.b32.xlu0 %v1351, 16
          %v1561 = vpop.permute.xlu0 %1560
          %1562 = vrot.lane.b32.xlu0 %v1352, 16
          %v1563 = vpop.permute.xlu0 %1562
          %1564 = vrot.lane.b32.xlu0 %v1353, 16
          %v1565 = vpop.permute.xlu0 %1564
          %1566 = vrot.lane.b32.xlu0 %v1354, 16
          %v1567 = vpop.permute.xlu0 %1566
          %1568 = vrot.lane.b32.xlu0 %v1355, 16
          %v1569 = vpop.permute.xlu0 %1568
          %1570 = vrot.lane.b32.xlu0 %v1356, 16
          %v1571 = vpop.permute.xlu0 %1570
          %1572 = vrot.lane.b32.xlu0 %v1357, 16
          %v1573 = vpop.permute.xlu0 %1572
          %v1574 = vsel %vm666, %v1503, %v1505
          %v1575 = vsel %vm666, %v1505, %v1507
          %v1576 = vsel %vm666, %v1509, %v1511
          %v1577 = vsel %vm666, %v1511, %v1513
          %v1578 = vsel %vm666, %v1515, %v1517
          %v1579 = vsel %vm666, %v1517, %v1519
          %v1580 = vsel %vm666, %v1521, %v1523
          %v1581 = vsel %vm666, %v1523, %v1525
          %v1582 = vsel %vm666, %v1527, %v1529
          %v1583 = vsel %vm666, %v1529, %v1531
          %v1584 = vsel %vm666, %v1533, %v1535
          %v1585 = vsel %vm666, %v1535, %v1537
          %v1586 = vsel %vm666, %v1539, %v1541
          %v1587 = vsel %vm666, %v1541, %v1543
          %v1588 = vsel %vm666, %v1545, %v1547
          %v1589 = vsel %vm666, %v1547, %v1549
          %v1590 = vsel %vm666, %v1551, %v1553
          %v1591 = vsel %vm666, %v1553, %v1555
          %v1592 = vsel %vm666, %v1557, %v1559
          %v1593 = vsel %vm666, %v1559, %v1561
          %v1594 = vsel %vm666, %v1563, %v1565
          %v1595 = vsel %vm666, %v1565, %v1567
          %v1596 = vsel %vm666, %v1569, %v1571
          %v1597 = vsel %vm666, %v1571, %v1573
          %v1623 = vsel %vm456, %v1318, 0
          %v1626 = vsel %vm456, %v1319, 0
          %v1629 = vsel %vm456, %v1320, 0
          %v1632 = vsel %vm456, %v1321, 0
          %1634 = vmatprep.subr.mxu0 %v1575
          %1635 = vmatpush1.msra.mxu0 %v1574
          %1636 = vmatprep.subr.mxu0 %v1577
          %1637 = vmatpush1.msra.mxu0 %v1576
          %1638 = vmatprep.subr.mxu0 %v1579
          %1639 = vmatpush1.msra.mxu0 %v1578
          %1640 = vmatprep.subr.mxu0 %v1581
          %1641 = vmatpush1.msra.mxu0 %v1580
          %1642 = vmatprep.subr.mxu0 %v1583
          %1643 = vmatpush1.msra.mxu0 %v1582
          %1644 = vmatprep.subr.mxu0 %v1585
          %1645 = vmatpush1.msra.mxu0 %v1584
          %1646 = vmatprep.subr.mxu0 %v1587
          %1647 = vmatpush1.msra.mxu0 %v1586
          %1648 = vmatprep.subr.mxu0 %v1589
          %1649 = vmatpush1.msra.mxu0 %v1588
          %1650 = vmatprep.subr.mxu0 %v1591
          %1651 = vmatpush1.msra.mxu0 %v1590
          %1652 = vmatprep.subr.mxu0 %v1593
          %1653 = vmatpush1.msra.mxu0 %v1592
          %1654 = vmatprep.subr.mxu0 %v1595
          %1655 = vmatpush1.msra.mxu0 %v1594
          %1656 = vmatprep.subr.mxu0 %v1597
          %1657 = vmatpush1.msra.mxu0 %v1596
          %1658 = vmatprep.subr.mxu0 0.0
          %1659 = vmatpush1.msra.mxu0 0.0
          %1660 = vmatprep.subr.mxu0 0.0
          %1661 = vmatpush1.msra.mxu0 0.0
          %1662 = vmatprep.subr.mxu0 0.0
          %1663 = vmatpush1.msra.mxu0 0.0
          %1664 = vmatprep.subr.mxu0 0.0
          %1665 = vmatpush1.msra.mxu0 0.0
          %1666 = vmatprep.subr.mxu0 0.0
          %1667 = vmatpush1.msra.mxu0 0.0
          %1668 = vmatprep.subr.mxu0 0.0
          %1669 = vmatpush1.msra.mxu0 0.0
          %1670 = vmatprep.subr.mxu0 0.0
          %1671 = vmatpush1.msra.mxu0 0.0
          %1672 = vmatprep.subr.mxu0 0.0
          %1673 = vmatpush1.msra.mxu0 0.0
          %1674 = vmatprep.subr.mxu0 0.0
          %1675 = vmatpush1.msra.mxu0 0.0
          %1676 = vmatprep.subr.mxu0 0.0
          %1677 = vmatpush1.msra.mxu0 0.0
          %1678 = vmatprep.subr.mxu0 0.0
          %1679 = vmatpush1.msra.mxu0 0.0
          %1680 = vmatprep.subr.mxu0 0.0
          %1681 = vmatpush1.msra.mxu0 0.0
          %1682 = vmatprep.subr.mxu0 0.0
          %1683 = vmatpush1.msra.mxu0 0.0
          %1684 = vmatprep.subr.mxu0 0.0
          %1685 = vmatpush1.msra.mxu0 0.0
          %1686 = vmatprep.subr.mxu0 0.0
          %1687 = vmatpush1.msra.mxu0 0.0
          %1688 = vmatprep.subr.mxu0 0.0
          %1689 = vmatpush1.msra.mxu0 0.0
          %1690 = vmatprep.subr.mxu0 0.0
          %1691 = vmatpush1.msra.mxu0 0.0
          %1692 = vmatprep.subr.mxu0 0.0
          %1693 = vmatpush1.msra.mxu0 0.0
          %1694 = vmatprep.subr.mxu0 0.0
          %1695 = vmatpush1.msra.mxu0 0.0
          %1696 = vmatprep.subr.mxu0 0.0
          %1697 = vmatpush1.msra.mxu0 0.0
          %1698 = vmatprep.mubr.f32.mxu0 0.0
          %1699 = vmatmul.mubr.f32.gmra.mrb[0].mxu0 %v1623
          %v1700 = vpop.f32.mrb[0].mxu0
          %v1701 = vadd.f32 %v1444, %v1700
          %v1702 = vpop.f32.mrb[0].mxu0
          %v1703 = vadd.f32 %v1446, %v1702
          %1704 = vmatprep.mubr.f32.mxu0 0.0
          %1705 = vmatmul.mubr.f32.gmra.mrb[0].mxu0 %v1626
          %v1706 = vpop.f32.mrb[0].mxu0
          %v1707 = vadd.f32 %v1450, %v1706
          %v1708 = vpop.f32.mrb[0].mxu0
          %v1709 = vadd.f32 %v1452, %v1708
          %1710 = vmatprep.mubr.f32.mxu0 0.0
          %1711 = vmatmul.mubr.f32.gmra.mrb[0].mxu0 %v1629
          %v1712 = vpop.f32.mrb[0].mxu0
          %v1713 = vadd.f32 %v1456, %v1712
          %v1714 = vpop.f32.mrb[0].mxu0
          %v1715 = vadd.f32 %v1458, %v1714
          %1716 = vmatprep.mubr.f32.mxu0 0.0
          %1717 = vmatmul.mubr.f32.gmra.mrb[0].mxu0 %v1632
          %v1718 = vpop.f32.mrb[0].mxu0
          %v1719 = vadd.f32 %v1462, %v1718
          %v1720 = vpop.f32.mrb[0].mxu0
          %v1721 = vadd.f32 %v1464, %v1720
          %1722 = vdwg.mxu0
          %s1723 = sadd.s32 %s1315, 2
          %s1724 = smul.u32 %s1723, 32
          %s1725 = scalar_lea.vmem [#allocation5], %s1724
          %v1726 = vld [vmem:[%s1725] sm:$0xff]
          %v1727 = vld [vmem:[%s1725 + $0x8] sm:$0xff]
          %v1728 = vld [vmem:[%s1725 + $0x10] sm:$0xff]
          %v1729 = vld [vmem:[%s1725 + $0x18] sm:$0xff]
          %v1730 = vld [vmem:[#allocation2 + $0x8] sm:$0xff]
          %v1731 = vld [vmem:[#allocation2 + $0x10] sm:$0xff]
          %v1732 = vld [vmem:[#allocation2 + $0x18] sm:$0xff]
          %v1733 = vld [vmem:[#allocation2 + $0x28] sm:$0xff]
          %v1734 = vld [vmem:[#allocation2 + $0x30] sm:$0xff]
          %v1735 = vld [vmem:[#allocation2 + $0x38] sm:$0xff]
          %v1736 = vld [vmem:[#allocation2 + $0x48] sm:$0xff]
          %v1737 = vld [vmem:[#allocation2 + $0x50] sm:$0xff]
          %v1738 = vld [vmem:[#allocation2 + $0x58] sm:$0xff]
          %v1739 = vld [vmem:[#allocation2 + $0x68] sm:$0xff]
          %v1740 = vld [vmem:[#allocation2 + $0x70] sm:$0xff]
          %v1741 = vld [vmem:[#allocation2 + $0x78] sm:$0xff]
          %v1742 = vld [vmem:[#allocation2 + $0x88] sm:$0xff]
          %v1743 = vld [vmem:[#allocation2 + $0x90] sm:$0xff]
          %v1744 = vld [vmem:[#allocation2 + $0x98] sm:$0xff]
          %v1745 = vld [vmem:[#allocation2 + $0xa8] sm:$0xff]
          %v1746 = vld [vmem:[#allocation2 + $0xb0] sm:$0xff]
          %v1747 = vld [vmem:[#allocation2 + $0xb8] sm:$0xff]
          %v1748 = vld [vmem:[#allocation2 + $0xc8] sm:$0xff]
          %v1749 = vld [vmem:[#allocation2 + $0xd0] sm:$0xff]
          %v1750 = vld [vmem:[#allocation2 + $0xd8] sm:$0xff]
          %v1751 = vld [vmem:[#allocation2 + $0xe8] sm:$0xff]
          %v1752 = vld [vmem:[#allocation2 + $0xf0] sm:$0xff]
          %v1753 = vld [vmem:[#allocation2 + $0xf8] sm:$0xff]
          %v1754 = vld [vmem:[#allocation2 + $0x108] sm:$0xff]
          %v1755 = vld [vmem:[#allocation2 + $0x110] sm:$0xff]
          %v1756 = vld [vmem:[#allocation2 + $0x118] sm:$0xff]
          %v1757 = vld [vmem:[#allocation2 + $0x128] sm:$0xff]
          %v1758 = vld [vmem:[#allocation2 + $0x130] sm:$0xff]
          %v1759 = vld [vmem:[#allocation2 + $0x138] sm:$0xff]
          %v1760 = vld [vmem:[#allocation2 + $0x148] sm:$0xff]
          %v1761 = vld [vmem:[#allocation2 + $0x150] sm:$0xff]
          %v1762 = vld [vmem:[#allocation2 + $0x158] sm:$0xff]
          %v1763 = vld [vmem:[#allocation2 + $0x168] sm:$0xff]
          %v1764 = vld [vmem:[#allocation2 + $0x170] sm:$0xff]
          %v1765 = vld [vmem:[#allocation2 + $0x178] sm:$0xff]
          %1802 = vrot.lane.b32.xlu0 %v1730, 112
          %v1803 = vpop.permute.xlu0 %1802
          %1804 = vrot.lane.b32.xlu0 %v1731, 112
          %v1805 = vpop.permute.xlu0 %1804
          %1806 = vrot.lane.b32.xlu0 %v1732, 112
          %v1807 = vpop.permute.xlu0 %1806
          %1808 = vrot.lane.b32.xlu0 %v1733, 112
          %v1809 = vpop.permute.xlu0 %1808
          %1810 = vrot.lane.b32.xlu0 %v1734, 112
          %v1811 = vpop.permute.xlu0 %1810
          %1812 = vrot.lane.b32.xlu0 %v1735, 112
          %v1813 = vpop.permute.xlu0 %1812
          %1814 = vrot.lane.b32.xlu0 %v1736, 112
          %v1815 = vpop.permute.xlu0 %1814
          %1816 = vrot.lane.b32.xlu0 %v1737, 112
          %v1817 = vpop.permute.xlu0 %1816
          %1818 = vrot.lane.b32.xlu0 %v1738, 112
          %v1819 = vpop.permute.xlu0 %1818
          %1820 = vrot.lane.b32.xlu0 %v1739, 112
          %v1821 = vpop.permute.xlu0 %1820
          %1822 = vrot.lane.b32.xlu0 %v1740, 112
          %v1823 = vpop.permute.xlu0 %1822
          %1824 = vrot.lane.b32.xlu0 %v1741, 112
          %v1825 = vpop.permute.xlu0 %1824
          %1826 = vrot.lane.b32.xlu0 %v1742, 112
          %v1827 = vpop.permute.xlu0 %1826
          %1828 = vrot.lane.b32.xlu0 %v1743, 112
          %v1829 = vpop.permute.xlu0 %1828
          %1830 = vrot.lane.b32.xlu0 %v1744, 112
          %v1831 = vpop.permute.xlu0 %1830
          %1832 = vrot.lane.b32.xlu0 %v1745, 112
          %v1833 = vpop.permute.xlu0 %1832
          %1834 = vrot.lane.b32.xlu0 %v1746, 112
          %v1835 = vpop.permute.xlu0 %1834
          %1836 = vrot.lane.b32.xlu0 %v1747, 112
          %v1837 = vpop.permute.xlu0 %1836
          %1838 = vrot.lane.b32.xlu0 %v1748, 112
          %v1839 = vpop.permute.xlu0 %1838
          %1840 = vrot.lane.b32.xlu0 %v1749, 112
          %v1841 = vpop.permute.xlu0 %1840
          %1842 = vrot.lane.b32.xlu0 %v1750, 112
          %v1843 = vpop.permute.xlu0 %1842
          %1844 = vrot.lane.b32.xlu0 %v1751, 112
          %v1845 = vpop.permute.xlu0 %1844
          %1846 = vrot.lane.b32.xlu0 %v1752, 112
          %v1847 = vpop.permute.xlu0 %1846
          %1848 = vrot.lane.b32.xlu0 %v1753, 112
          %v1849 = vpop.permute.xlu0 %1848
          %1850 = vrot.lane.b32.xlu0 %v1754, 112
          %v1851 = vpop.permute.xlu0 %1850
          %1852 = vrot.lane.b32.xlu0 %v1755, 112
          %v1853 = vpop.permute.xlu0 %1852
          %1854 = vrot.lane.b32.xlu0 %v1756, 112
          %v1855 = vpop.permute.xlu0 %1854
          %1856 = vrot.lane.b32.xlu0 %v1757, 112
          %v1857 = vpop.permute.xlu0 %1856
          %1858 = vrot.lane.b32.xlu0 %v1758, 112
          %v1859 = vpop.permute.xlu0 %1858
          %1860 = vrot.lane.b32.xlu0 %v1759, 112
          %v1861 = vpop.permute.xlu0 %1860
          %1862 = vrot.lane.b32.xlu0 %v1760, 112
          %v1863 = vpop.permute.xlu0 %1862
          %1864 = vrot.lane.b32.xlu0 %v1761, 112
          %v1865 = vpop.permute.xlu0 %1864
          %1866 = vrot.lane.b32.xlu0 %v1762, 112
          %v1867 = vpop.permute.xlu0 %1866
          %1868 = vrot.lane.b32.xlu0 %v1763, 112
          %v1869 = vpop.permute.xlu0 %1868
          %1870 = vrot.lane.b32.xlu0 %v1764, 112
          %v1871 = vpop.permute.xlu0 %1870
          %1872 = vrot.lane.b32.xlu0 %v1765, 112
          %v1873 = vpop.permute.xlu0 %1872
          %v1874 = vsel %vm965, %v1803, %v1805
          %v1875 = vsel %vm965, %v1805, %v1807
          %v1876 = vsel %vm965, %v1809, %v1811
          %v1877 = vsel %vm965, %v1811, %v1813
          %v1878 = vsel %vm965, %v1815, %v1817
          %v1879 = vsel %vm965, %v1817, %v1819
          %v1880 = vsel %vm965, %v1821, %v1823
          %v1881 = vsel %vm965, %v1823, %v1825
          %v1882 = vsel %vm965, %v1827, %v1829
          %v1883 = vsel %vm965, %v1829, %v1831
          %v1884 = vsel %vm965, %v1833, %v1835
          %v1885 = vsel %vm965, %v1835, %v1837
          %v1886 = vsel %vm965, %v1839, %v1841
          %v1887 = vsel %vm965, %v1841, %v1843
          %v1888 = vsel %vm965, %v1845, %v1847
          %v1889 = vsel %vm965, %v1847, %v1849
          %v1890 = vsel %vm965, %v1851, %v1853
          %v1891 = vsel %vm965, %v1853, %v1855
          %v1892 = vsel %vm965, %v1857, %v1859
          %v1893 = vsel %vm965, %v1859, %v1861
          %v1894 = vsel %vm965, %v1863, %v1865
          %v1895 = vsel %vm965, %v1865, %v1867
          %v1896 = vsel %vm965, %v1869, %v1871
          %v1897 = vsel %vm965, %v1871, %v1873
          %v1923 = vsel %vm456, %v1726, 0
          %v1926 = vsel %vm456, %v1727, 0
          %v1929 = vsel %vm456, %v1728, 0
          %v1932 = vsel %vm456, %v1729, 0
          %1934 = vmatprep.subr.mxu0 %v1875
          %1935 = vmatpush1.msra.mxu0 %v1874
          %1936 = vmatprep.subr.mxu0 %v1877
          %1937 = vmatpush1.msra.mxu0 %v1876
          %1938 = vmatprep.subr.mxu0 %v1879
          %1939 = vmatpush1.msra.mxu0 %v1878
          %1940 = vmatprep.subr.mxu0 %v1881
          %1941 = vmatpush1.msra.mxu0 %v1880
          %1942 = vmatprep.subr.mxu0 %v1883
          %1943 = vmatpush1.msra.mxu0 %v1882
          %1944 = vmatprep.subr.mxu0 %v1885
          %1945 = vmatpush1.msra.mxu0 %v1884
          %1946 = vmatprep.subr.mxu0 %v1887
          %1947 = vmatpush1.msra.mxu0 %v1886
          %1948 = vmatprep.subr.mxu0 %v1889
          %1949 = vmatpush1.msra.mxu0 %v1888
          %1950 = vmatprep.subr.mxu0 %v1891
          %1951 = vmatpush1.msra.mxu0 %v1890
          %1952 = vmatprep.subr.mxu0 %v1893
          %1953 = vmatpush1.msra.mxu0 %v1892
          %1954 = vmatprep.subr.mxu0 %v1895
          %1955 = vmatpush1.msra.mxu0 %v1894
          %1956 = vmatprep.subr.mxu0 %v1897
          %1957 = vmatpush1.msra.mxu0 %v1896
          %1958 = vmatprep.subr.mxu0 0.0
          %1959 = vmatpush1.msra.mxu0 0.0
          %1960 = vmatprep.subr.mxu0 0.0
          %1961 = vmatpush1.msra.mxu0 0.0
          %1962 = vmatprep.subr.mxu0 0.0
          %1963 = vmatpush1.msra.mxu0 0.0
          %1964 = vmatprep.subr.mxu0 0.0
          %1965 = vmatpush1.msra.mxu0 0.0
          %1966 = vmatprep.subr.mxu0 0.0
          %1967 = vmatpush1.msra.mxu0 0.0
          %1968 = vmatprep.subr.mxu0 0.0
          %1969 = vmatpush1.msra.mxu0 0.0
          %1970 = vmatprep.subr.mxu0 0.0
          %1971 = vmatpush1.msra.mxu0 0.0
          %1972 = vmatprep.subr.mxu0 0.0
          %1973 = vmatpush1.msra.mxu0 0.0
          %1974 = vmatprep.subr.mxu0 0.0
          %1975 = vmatpush1.msra.mxu0 0.0
          %1976 = vmatprep.subr.mxu0 0.0
          %1977 = vmatpush1.msra.mxu0 0.0
          %1978 = vmatprep.subr.mxu0 0.0
          %1979 = vmatpush1.msra.mxu0 0.0
          %1980 = vmatprep.subr.mxu0 0.0
          %1981 = vmatpush1.msra.mxu0 0.0
          %1982 = vmatprep.subr.mxu0 0.0
          %1983 = vmatpush1.msra.mxu0 0.0
          %1984 = vmatprep.subr.mxu0 0.0
          %1985 = vmatpush1.msra.mxu0 0.0
          %1986 = vmatprep.subr.mxu0 0.0
          %1987 = vmatpush1.msra.mxu0 0.0
          %1988 = vmatprep.subr.mxu0 0.0
          %1989 = vmatpush1.msra.mxu0 0.0
          %1990 = vmatprep.subr.mxu0 0.0
          %1991 = vmatpush1.msra.mxu0 0.0
          %1992 = vmatprep.subr.mxu0 0.0
          %1993 = vmatpush1.msra.mxu0 0.0
          %1994 = vmatprep.subr.mxu0 0.0
          %1995 = vmatpush1.msra.mxu0 0.0
          %1996 = vmatprep.subr.mxu0 0.0
          %1997 = vmatpush1.msra.mxu0 0.0
          %1998 = vmatprep.mubr.f32.mxu0 0.0
          %1999 = vmatmul.mubr.f32.gmra.mrb[0].mxu0 %v1923
          %v2000 = vpop.f32.mrb[0].mxu0
          %v2001 = vadd.f32 0.0, %v2000
          %v2002 = vpop.f32.mrb[0].mxu0
          %v2003 = vadd.f32 0.0, %v2002
          %2004 = vmatprep.mubr.f32.mxu0 0.0
          %2005 = vmatmul.mubr.f32.gmra.mrb[0].mxu0 %v1926
          %v2006 = vpop.f32.mrb[0].mxu0
          %v2007 = vadd.f32 0.0, %v2006
          %v2008 = vpop.f32.mrb[0].mxu0
          %v2009 = vadd.f32 0.0, %v2008
          %2010 = vmatprep.mubr.f32.mxu0 0.0
          %2011 = vmatmul.mubr.f32.gmra.mrb[0].mxu0 %v1929
          %v2012 = vpop.f32.mrb[0].mxu0
          %v2013 = vadd.f32 0.0, %v2012
          %v2014 = vpop.f32.mrb[0].mxu0
          %v2015 = vadd.f32 0.0, %v2014
          %2016 = vmatprep.mubr.f32.mxu0 0.0
          %2017 = vmatmul.mubr.f32.gmra.mrb[0].mxu0 %v1932
          %v2018 = vpop.f32.mrb[0].mxu0
          %v2019 = vadd.f32 0.0, %v2018
          %v2020 = vpop.f32.mrb[0].mxu0
          %v2021 = vadd.f32 0.0, %v2020
          %2022 = vdwg.mxu0
          %v2023 = vadd.f32 %v1701, %v2001
          %v2024 = vadd.f32 %v1703, %v2003
          %v2025 = vadd.f32 %v1707, %v2007
          %v2026 = vadd.f32 %v1709, %v2009
          %v2027 = vadd.f32 %v1713, %v2013
          %v2028 = vadd.f32 %v1715, %v2015
          %v2029 = vadd.f32 %v1719, %v2019
          %v2030 = vadd.f32 %v1721, %v2021
          %s2031 = smul.u32 %s1178, 32
          %s2032 = scalar_lea.vmem %s2, %s2031
          %v2033 = vld [vmem:[%s2032] sm:$0xff]
          %v2034 = vld [vmem:[%s2032 + $0x8] sm:$0xff]
          %v2035 = vld [vmem:[%s2032 + $0x10] sm:$0xff]
          %v2036 = vld [vmem:[%s2032 + $0x18] sm:$0xff]
          %2038 = vset.pattern.permute.xlu0 0
          %2039 = vperm.xlu0 %2038, %v2033
          %v2040 = vpop.permute.xlu0 %2039
          %2043 = vset.pattern.permute.xlu0 0
          %2044 = vperm.xlu0 %2043, %v2034
          %v2045 = vpop.permute.xlu0 %2044
          %2048 = vset.pattern.permute.xlu0 0
          %2049 = vperm.xlu0 %2048, %v2035
          %v2050 = vpop.permute.xlu0 %2049
          %2053 = vset.pattern.permute.xlu0 0
          %2054 = vperm.xlu0 %2053, %v2036
          %v2055 = vpop.permute.xlu0 %2054
          %v2057 = vadd.f32 %v2023, %v2040
          %v2058 = vadd.f32 %v2024, %v2040
          %v2059 = vadd.f32 %v2025, %v2045
          %v2060 = vadd.f32 %v2026, %v2045
          %v2061 = vadd.f32 %v2027, %v2050
          %v2062 = vadd.f32 %v2028, %v2050
          %v2063 = vadd.f32 %v2029, %v2055
          %v2064 = vadd.f32 %v2030, %v2055
          %v2065 = vmax.f32 %v2057, 0.0
          %v2066 = vmax.f32 %v2058, 0.0
          %v2067 = vmax.f32 %v2059, 0.0
          %v2068 = vmax.f32 %v2060, 0.0
          %v2069 = vmax.f32 %v2061, 0.0
          %v2070 = vmax.f32 %v2062, 0.0
          %v2071 = vmax.f32 %v2063, 0.0
          %v2072 = vmax.f32 %v2064, 0.0
          %s2073 = sadd.s32 %s1177, 2
          %2074 = vst [vmem:[#allocation2 + $0x88] sm:$0xff] %v2065
          %2075 = vst [vmem:[#allocation2 + $0x90] sm:$0xff] %v2066
          %2076 = vst [vmem:[#allocation2 + $0xa8] sm:$0xff] %v2067
          %2077 = vst [vmem:[#allocation2 + $0xb0] sm:$0xff] %v2068
          %2078 = vst [vmem:[#allocation2 + $0xc8] sm:$0xff] %v2069
          %2079 = vst [vmem:[#allocation2 + $0xd0] sm:$0xff] %v2070
          %2080 = vst [vmem:[#allocation2 + $0xe8] sm:$0xff] %v2071
          %2081 = vst [vmem:[#allocation2 + $0xf0] sm:$0xff] %v2072
          %v2082 = vsel %vm281, %v2065, 0.0
          %v2083 = vsel %vm282, %v2066, 0.0
          %v2084 = vsel %vm281, %v2067, 0.0
          %v2085 = vsel %vm282, %v2068, 0.0
          %v2086 = vsel %vm281, %v2069, 0.0
          %v2087 = vsel %vm282, %v2070, 0.0
          %v2088 = vsel %vm281, %v2071, 0.0
          %v2089 = vsel %vm282, %v2072, 0.0
          %2098 = vrot.lane.b32.xlu0 %v2082, 1
          %v2099 = vpop.permute.xlu0 %2098
          %2100 = vrot.lane.b32.xlu0 %v2083, 1
          %v2101 = vpop.permute.xlu0 %2100
          %2102 = vrot.lane.b32.xlu0 %v2084, 1
          %v2103 = vpop.permute.xlu0 %2102
          %2104 = vrot.lane.b32.xlu0 %v2085, 1
          %v2105 = vpop.permute.xlu0 %2104
          %2106 = vrot.lane.b32.xlu0 %v2086, 1
          %v2107 = vpop.permute.xlu0 %2106
          %2108 = vrot.lane.b32.xlu0 %v2087, 1
          %v2109 = vpop.permute.xlu0 %2108
          %2110 = vrot.lane.b32.xlu0 %v2088, 1
          %v2111 = vpop.permute.xlu0 %2110
          %2112 = vrot.lane.b32.xlu0 %v2089, 1
          %v2113 = vpop.permute.xlu0 %2112
          %v2114 = vsel %vm315, %v2099, %v2101
          %v2115 = vsel %vm315, %v2103, %v2105
          %v2116 = vsel %vm315, %v2107, %v2109
          %v2117 = vsel %vm315, %v2111, %v2113
          %2130 = vst.msk [vmem:[#allocation2 + $0x8] sm:$0xff] %vm332, %v2099
          %2131 = vst [vmem:[#allocation2 + $0x10] sm:$0xff] %v2114
          %2132 = vst.msk [vmem:[#allocation2 + $0x18] sm:$0xff] %vm315, %v2101
          %2133 = vst.msk [vmem:[#allocation2 + $0x28] sm:$0xff] %vm332, %v2103
          %2134 = vst [vmem:[#allocation2 + $0x30] sm:$0xff] %v2115
          %2135 = vst.msk [vmem:[#allocation2 + $0x38] sm:$0xff] %vm315, %v2105
          %2136 = vst.msk [vmem:[#allocation2 + $0x48] sm:$0xff] %vm332, %v2107
          %2137 = vst [vmem:[#allocation2 + $0x50] sm:$0xff] %v2116
          %2138 = vst.msk [vmem:[#allocation2 + $0x58] sm:$0xff] %vm315, %v2109
          %2139 = vst.msk [vmem:[#allocation2 + $0x68] sm:$0xff] %vm332, %v2111
          %2140 = vst [vmem:[#allocation2 + $0x70] sm:$0xff] %v2117
          %2141 = vst.msk [vmem:[#allocation2 + $0x78] sm:$0xff] %vm315, %v2113
          %v2142 = vsel %vm347, %v2065, 0.0
          %v2143 = vsel %vm348, %v2066, 0.0
          %v2144 = vsel %vm347, %v2067, 0.0
          %v2145 = vsel %vm348, %v2068, 0.0
          %v2146 = vsel %vm347, %v2069, 0.0
          %v2147 = vsel %vm348, %v2070, 0.0
          %v2148 = vsel %vm347, %v2071, 0.0
          %v2149 = vsel %vm348, %v2072, 0.0
          %2158 = vrot.lane.b32.xlu0 %v2142, 127
          %v2159 = vpop.permute.xlu0 %2158
          %2160 = vrot.lane.b32.xlu0 %v2143, 127
          %v2161 = vpop.permute.xlu0 %2160
          %2162 = vrot.lane.b32.xlu0 %v2144, 127
          %v2163 = vpop.permute.xlu0 %2162
          %2164 = vrot.lane.b32.xlu0 %v2145, 127
          %v2165 = vpop.permute.xlu0 %2164
          %2166 = vrot.lane.b32.xlu0 %v2146, 127
          %v2167 = vpop.permute.xlu0 %2166
          %2168 = vrot.lane.b32.xlu0 %v2147, 127
          %v2169 = vpop.permute.xlu0 %2168
          %2170 = vrot.lane.b32.xlu0 %v2148, 127
          %v2171 = vpop.permute.xlu0 %2170
          %2172 = vrot.lane.b32.xlu0 %v2149, 127
          %v2173 = vpop.permute.xlu0 %2172
          %v2174 = vsel %vm381, %v2159, %v2161
          %v2175 = vsel %vm381, %v2163, %v2165
          %v2176 = vsel %vm381, %v2167, %v2169
          %v2177 = vsel %vm381, %v2171, %v2173
          %2190 = vst.msk [vmem:[#allocation2 + $0x100] sm:$0xff] %vm398, %v2159
          %2191 = vst [vmem:[#allocation2 + $0x108] sm:$0xff] %v2174
          %2192 = vst.msk [vmem:[#allocation2 + $0x110] sm:$0xff] %vm381, %v2161
          %2193 = vst.msk [vmem:[#allocation2 + $0x120] sm:$0xff] %vm398, %v2163
          %2194 = vst [vmem:[#allocation2 + $0x128] sm:$0xff] %v2175
          %2195 = vst.msk [vmem:[#allocation2 + $0x130] sm:$0xff] %vm381, %v2165
          %2196 = vst.msk [vmem:[#allocation2 + $0x140] sm:$0xff] %vm398, %v2167
          %2197 = vst [vmem:[#allocation2 + $0x148] sm:$0xff] %v2176
          %2198 = vst.msk [vmem:[#allocation2 + $0x150] sm:$0xff] %vm381, %v2169
          %2199 = vst.msk [vmem:[#allocation2 + $0x160] sm:$0xff] %vm398, %v2171
          %2200 = vst [vmem:[#allocation2 + $0x168] sm:$0xff] %v2177
          %2201 = vst.msk [vmem:[#allocation2 + $0x170] sm:$0xff] %vm381, %v2173
          %s2202 = smul.u32 %s2073, 3
          %s2203 = smul.u32 %s2202, 32
          %s2204 = scalar_lea.vmem [#allocation5], %s2203
          %v2205 = vld [vmem:[%s2204] sm:$0xff]
          %v2206 = vld [vmem:[%s2204 + $0x8] sm:$0xff]
          %v2207 = vld [vmem:[%s2204 + $0x10] sm:$0xff]
          %v2208 = vld [vmem:[%s2204 + $0x18] sm:$0xff]
          %v2209 = vld [vmem:[#allocation2] sm:$0xff]
          %v2210 = vld [vmem:[#allocation2 + $0x8] sm:$0xff]
          %v2211 = vld [vmem:[#allocation2 + $0x10] sm:$0xff]
          %v2212 = vld [vmem:[#allocation2 + $0x20] sm:$0xff]
          %v2213 = vld [vmem:[#allocation2 + $0x28] sm:$0xff]
          %v2214 = vld [vmem:[#allocation2 + $0x30] sm:$0xff]
          %v2215 = vld [vmem:[#allocation2 + $0x40] sm:$0xff]
          %v2216 = vld [vmem:[#allocation2 + $0x48] sm:$0xff]
          %v2217 = vld [vmem:[#allocation2 + $0x50] sm:$0xff]
          %v2218 = vld [vmem:[#allocation2 + $0x60] sm:$0xff]
          %v2219 = vld [vmem:[#allocation2 + $0x68] sm:$0xff]
          %v2220 = vld [vmem:[#allocation2 + $0x70] sm:$0xff]
          %v2221 = vld [vmem:[#allocation2 + $0x80] sm:$0xff]
          %v2222 = vld [vmem:[#allocation2 + $0x88] sm:$0xff]
          %v2223 = vld [vmem:[#allocation2 + $0x90] sm:$0xff]
          %v2224 = vld [vmem:[#allocation2 + $0xa0] sm:$0xff]
          %v2225 = vld [vmem:[#allocation2 + $0xa8] sm:$0xff]
          %v2226 = vld [vmem:[#allocation2 + $0xb0] sm:$0xff]
          %v2227 = vld [vmem:[#allocation2 + $0xc0] sm:$0xff]
          %v2228 = vld [vmem:[#allocation2 + $0xc8] sm:$0xff]
          %v2229 = vld [vmem:[#allocation2 + $0xd0] sm:$0xff]
          %v2230 = vld [vmem:[#allocation2 + $0xe0] sm:$0xff]
          %v2231 = vld [vmem:[#allocation2 + $0xe8] sm:$0xff]
          %v2232 = vld [vmem:[#allocation2 + $0xf0] sm:$0xff]
          %v2233 = vld [vmem:[#allocation2 + $0x100] sm:$0xff]
          %v2234 = vld [vmem:[#allocation2 + $0x108] sm:$0xff]
          %v2235 = vld [vmem:[#allocation2 + $0x110] sm:$0xff]
          %v2236 = vld [vmem:[#allocation2 + $0x120] sm:$0xff]
          %v2237 = vld [vmem:[#allocation2 + $0x128] sm:$0xff]
          %v2238 = vld [vmem:[#allocation2 + $0x130] sm:$0xff]
          %v2239 = vld [vmem:[#allocation2 + $0x140] sm:$0xff]
          %v2240 = vld [vmem:[#allocation2 + $0x148] sm:$0xff]
          %v2241 = vld [vmem:[#allocation2 + $0x150] sm:$0xff]
          %v2242 = vld [vmem:[#allocation2 + $0x160] sm:$0xff]
          %v2243 = vld [vmem:[#allocation2 + $0x168] sm:$0xff]
          %v2244 = vld [vmem:[#allocation2 + $0x170] sm:$0xff]
          %s2245 = sadd.s32 %s2202, 1
          %s2246 = smul.u32 %s2245, 32
          %s2247 = scalar_lea.vmem [#allocation5], %s2246
          %v2248 = vld [vmem:[%s2247] sm:$0xff]
          %v2249 = vld [vmem:[%s2247 + $0x8] sm:$0xff]
          %v2250 = vld [vmem:[%s2247 + $0x10] sm:$0xff]
          %v2251 = vld [vmem:[%s2247 + $0x18] sm:$0xff]
          %v2253 = vsel %vm456, %v2248, 0
          %v2256 = vsel %vm456, %v2249, 0
          %v2259 = vsel %vm456, %v2250, 0
          %v2262 = vsel %vm456, %v2251, 0
          %2264 = vmatprep.subr.mxu0 %v2211
          %2265 = vmatpush1.msra.mxu0 %v2210
          %2266 = vmatprep.subr.mxu0 %v2214
          %2267 = vmatpush1.msra.mxu0 %v2213
          %2268 = vmatprep.subr.mxu0 %v2217
          %2269 = vmatpush1.msra.mxu0 %v2216
          %2270 = vmatprep.subr.mxu0 %v2220
          %2271 = vmatpush1.msra.mxu0 %v2219
          %2272 = vmatprep.subr.mxu0 %v2223
          %2273 = vmatpush1.msra.mxu0 %v2222
          %2274 = vmatprep.subr.mxu0 %v2226
          %2275 = vmatpush1.msra.mxu0 %v2225
          %2276 = vmatprep.subr.mxu0 %v2229
          %2277 = vmatpush1.msra.mxu0 %v2228
          %2278 = vmatprep.subr.mxu0 %v2232
          %2279 = vmatpush1.msra.mxu0 %v2231
          %2280 = vmatprep.subr.mxu0 %v2235
          %2281 = vmatpush1.msra.mxu0 %v2234
          %2282 = vmatprep.subr.mxu0 %v2238
          %2283 = vmatpush1.msra.mxu0 %v2237
          %2284 = vmatprep.subr.mxu0 %v2241
          %2285 = vmatpush1.msra.mxu0 %v2240
          %2286 = vmatprep.subr.mxu0 %v2244
          %2287 = vmatpush1.msra.mxu0 %v2243
          %2288 = vmatprep.subr.mxu0 0.0
          %2289 = vmatpush1.msra.mxu0 0.0
          %2290 = vmatprep.subr.mxu0 0.0
          %2291 = vmatpush1.msra.mxu0 0.0
          %2292 = vmatprep.subr.mxu0 0.0
          %2293 = vmatpush1.msra.mxu0 0.0
          %2294 = vmatprep.subr.mxu0 0.0
          %2295 = vmatpush1.msra.mxu0 0.0
          %2296 = vmatprep.subr.mxu0 0.0
          %2297 = vmatpush1.msra.mxu0 0.0
          %2298 = vmatprep.subr.mxu0 0.0
          %2299 = vmatpush1.msra.mxu0 0.0
          %2300 = vmatprep.subr.mxu0 0.0
          %2301 = vmatpush1.msra.mxu0 0.0
          %2302 = vmatprep.subr.mxu0 0.0
          %2303 = vmatpush1.msra.mxu0 0.0
          %2304 = vmatprep.subr.mxu0 0.0
          %2305 = vmatpush1.msra.mxu0 0.0
          %2306 = vmatprep.subr.mxu0 0.0
          %2307 = vmatpush1.msra.mxu0 0.0
          %2308 = vmatprep.subr.mxu0 0.0
          %2309 = vmatpush1.msra.mxu0 0.0
          %2310 = vmatprep.subr.mxu0 0.0
          %2311 = vmatpush1.msra.mxu0 0.0
          %2312 = vmatprep.subr.mxu0 0.0
          %2313 = vmatpush1.msra.mxu0 0.0
          %2314 = vmatprep.subr.mxu0 0.0
          %2315 = vmatpush1.msra.mxu0 0.0
          %2316 = vmatprep.subr.mxu0 0.0
          %2317 = vmatpush1.msra.mxu0 0.0
          %2318 = vmatprep.subr.mxu0 0.0
          %2319 = vmatpush1.msra.mxu0 0.0
          %2320 = vmatprep.subr.mxu0 0.0
          %2321 = vmatpush1.msra.mxu0 0.0
          %2322 = vmatprep.subr.mxu0 0.0
          %2323 = vmatpush1.msra.mxu0 0.0
          %2324 = vmatprep.subr.mxu0 0.0
          %2325 = vmatpush1.msra.mxu0 0.0
          %2326 = vmatprep.subr.mxu0 0.0
          %2327 = vmatpush1.msra.mxu0 0.0
          %2328 = vmatprep.mubr.f32.mxu0 0.0
          %2329 = vmatmul.mubr.f32.gmra.mrb[0].mxu0 %v2253
          %v2330 = vpop.f32.mrb[0].mxu0
          %v2331 = vadd.f32 0.0, %v2330
          %v2332 = vpop.f32.mrb[0].mxu0
          %v2333 = vadd.f32 0.0, %v2332
          %2334 = vmatprep.mubr.f32.mxu0 0.0
          %2335 = vmatmul.mubr.f32.gmra.mrb[0].mxu0 %v2256
          %v2336 = vpop.f32.mrb[0].mxu0
          %v2337 = vadd.f32 0.0, %v2336
          %v2338 = vpop.f32.mrb[0].mxu0
          %v2339 = vadd.f32 0.0, %v2338
          %2340 = vmatprep.mubr.f32.mxu0 0.0
          %2341 = vmatmul.mubr.f32.gmra.mrb[0].mxu0 %v2259
          %v2342 = vpop.f32.mrb[0].mxu0
          %v2343 = vadd.f32 0.0, %v2342
          %v2344 = vpop.f32.mrb[0].mxu0
          %v2345 = vadd.f32 0.0, %v2344
          %2346 = vmatprep.mubr.f32.mxu0 0.0
          %2347 = vmatmul.mubr.f32.gmra.mrb[0].mxu0 %v2262
          %v2348 = vpop.f32.mrb[0].mxu0
          %v2349 = vadd.f32 0.0, %v2348
          %v2350 = vpop.f32.mrb[0].mxu0
          %v2351 = vadd.f32 0.0, %v2350
          %2352 = vdwg.mxu0
          %2389 = vrot.lane.b32.xlu0 %v2209, 16
          %v2390 = vpop.permute.xlu0 %2389
          %2391 = vrot.lane.b32.xlu0 %v2210, 16
          %v2392 = vpop.permute.xlu0 %2391
          %2393 = vrot.lane.b32.xlu0 %v2211, 16
          %v2394 = vpop.permute.xlu0 %2393
          %2395 = vrot.lane.b32.xlu0 %v2212, 16
          %v2396 = vpop.permute.xlu0 %2395
          %2397 = vrot.lane.b32.xlu0 %v2213, 16
          %v2398 = vpop.permute.xlu0 %2397
          %2399 = vrot.lane.b32.xlu0 %v2214, 16
          %v2400 = vpop.permute.xlu0 %2399
          %2401 = vrot.lane.b32.xlu0 %v2215, 16
          %v2402 = vpop.permute.xlu0 %2401
          %2403 = vrot.lane.b32.xlu0 %v2216, 16
          %v2404 = vpop.permute.xlu0 %2403
          %2405 = vrot.lane.b32.xlu0 %v2217, 16
          %v2406 = vpop.permute.xlu0 %2405
          %2407 = vrot.lane.b32.xlu0 %v2218, 16
          %v2408 = vpop.permute.xlu0 %2407
          %2409 = vrot.lane.b32.xlu0 %v2219, 16
          %v2410 = vpop.permute.xlu0 %2409
          %2411 = vrot.lane.b32.xlu0 %v2220, 16
          %v2412 = vpop.permute.xlu0 %2411
          %2413 = vrot.lane.b32.xlu0 %v2221, 16
          %v2414 = vpop.permute.xlu0 %2413
          %2415 = vrot.lane.b32.xlu0 %v2222, 16
          %v2416 = vpop.permute.xlu0 %2415
          %2417 = vrot.lane.b32.xlu0 %v2223, 16
          %v2418 = vpop.permute.xlu0 %2417
          %2419 = vrot.lane.b32.xlu0 %v2224, 16
          %v2420 = vpop.permute.xlu0 %2419
          %2421 = vrot.lane.b32.xlu0 %v2225, 16
          %v2422 = vpop.permute.xlu0 %2421
          %2423 = vrot.lane.b32.xlu0 %v2226, 16
          %v2424 = vpop.permute.xlu0 %2423
          %2425 = vrot.lane.b32.xlu0 %v2227, 16
          %v2426 = vpop.permute.xlu0 %2425
          %2427 = vrot.lane.b32.xlu0 %v2228, 16
          %v2428 = vpop.permute.xlu0 %2427
          %2429 = vrot.lane.b32.xlu0 %v2229, 16
          %v2430 = vpop.permute.xlu0 %2429
          %2431 = vrot.lane.b32.xlu0 %v2230, 16
          %v2432 = vpop.permute.xlu0 %2431
          %2433 = vrot.lane.b32.xlu0 %v2231, 16
          %v2434 = vpop.permute.xlu0 %2433
          %2435 = vrot.lane.b32.xlu0 %v2232, 16
          %v2436 = vpop.permute.xlu0 %2435
          %2437 = vrot.lane.b32.xlu0 %v2233, 16
          %v2438 = vpop.permute.xlu0 %2437
          %2439 = vrot.lane.b32.xlu0 %v2234, 16
          %v2440 = vpop.permute.xlu0 %2439
          %2441 = vrot.lane.b32.xlu0 %v2235, 16
          %v2442 = vpop.permute.xlu0 %2441
          %2443 = vrot.lane.b32.xlu0 %v2236, 16
          %v2444 = vpop.permute.xlu0 %2443
          %2445 = vrot.lane.b32.xlu0 %v2237, 16
          %v2446 = vpop.permute.xlu0 %2445
          %2447 = vrot.lane.b32.xlu0 %v2238, 16
          %v2448 = vpop.permute.xlu0 %2447
          %2449 = vrot.lane.b32.xlu0 %v2239, 16
          %v2450 = vpop.permute.xlu0 %2449
          %2451 = vrot.lane.b32.xlu0 %v2240, 16
          %v2452 = vpop.permute.xlu0 %2451
          %2453 = vrot.lane.b32.xlu0 %v2241, 16
          %v2454 = vpop.permute.xlu0 %2453
          %2455 = vrot.lane.b32.xlu0 %v2242, 16
          %v2456 = vpop.permute.xlu0 %2455
          %2457 = vrot.lane.b32.xlu0 %v2243, 16
          %v2458 = vpop.permute.xlu0 %2457
          %2459 = vrot.lane.b32.xlu0 %v2244, 16
          %v2460 = vpop.permute.xlu0 %2459
          %v2461 = vsel %vm666, %v2390, %v2392
          %v2462 = vsel %vm666, %v2392, %v2394
          %v2463 = vsel %vm666, %v2396, %v2398
          %v2464 = vsel %vm666, %v2398, %v2400
          %v2465 = vsel %vm666, %v2402, %v2404
          %v2466 = vsel %vm666, %v2404, %v2406
          %v2467 = vsel %vm666, %v2408, %v2410
          %v2468 = vsel %vm666, %v2410, %v2412
          %v2469 = vsel %vm666, %v2414, %v2416
          %v2470 = vsel %vm666, %v2416, %v2418
          %v2471 = vsel %vm666, %v2420, %v2422
          %v2472 = vsel %vm666, %v2422, %v2424
          %v2473 = vsel %vm666, %v2426, %v2428
          %v2474 = vsel %vm666, %v2428, %v2430
          %v2475 = vsel %vm666, %v2432, %v2434
          %v2476 = vsel %vm666, %v2434, %v2436
          %v2477 = vsel %vm666, %v2438, %v2440
          %v2478 = vsel %vm666, %v2440, %v2442
          %v2479 = vsel %vm666, %v2444, %v2446
          %v2480 = vsel %vm666, %v2446, %v2448
          %v2481 = vsel %vm666, %v2450, %v2452
          %v2482 = vsel %vm666, %v2452, %v2454
          %v2483 = vsel %vm666, %v2456, %v2458
          %v2484 = vsel %vm666, %v2458, %v2460
          %v2510 = vsel %vm456, %v2205, 0
          %v2513 = vsel %vm456, %v2206, 0
          %v2516 = vsel %vm456, %v2207, 0
          %v2519 = vsel %vm456, %v2208, 0
          %2521 = vmatprep.subr.mxu0 %v2462
          %2522 = vmatpush1.msra.mxu0 %v2461
          %2523 = vmatprep.subr.mxu0 %v2464
          %2524 = vmatpush1.msra.mxu0 %v2463
          %2525 = vmatprep.subr.mxu0 %v2466
          %2526 = vmatpush1.msra.mxu0 %v2465
          %2527 = vmatprep.subr.mxu0 %v2468
          %2528 = vmatpush1.msra.mxu0 %v2467
          %2529 = vmatprep.subr.mxu0 %v2470
          %2530 = vmatpush1.msra.mxu0 %v2469
          %2531 = vmatprep.subr.mxu0 %v2472
          %2532 = vmatpush1.msra.mxu0 %v2471
          %2533 = vmatprep.subr.mxu0 %v2474
          %2534 = vmatpush1.msra.mxu0 %v2473
          %2535 = vmatprep.subr.mxu0 %v2476
          %2536 = vmatpush1.msra.mxu0 %v2475
          %2537 = vmatprep.subr.mxu0 %v2478
          %2538 = vmatpush1.msra.mxu0 %v2477
          %2539 = vmatprep.subr.mxu0 %v2480
          %2540 = vmatpush1.msra.mxu0 %v2479
          %2541 = vmatprep.subr.mxu0 %v2482
          %2542 = vmatpush1.msra.mxu0 %v2481
          %2543 = vmatprep.subr.mxu0 %v2484
          %2544 = vmatpush1.msra.mxu0 %v2483
          %2545 = vmatprep.subr.mxu0 0.0
          %2546 = vmatpush1.msra.mxu0 0.0
          %2547 = vmatprep.subr.mxu0 0.0
          %2548 = vmatpush1.msra.mxu0 0.0
          %2549 = vmatprep.subr.mxu0 0.0
          %2550 = vmatpush1.msra.mxu0 0.0
          %2551 = vmatprep.subr.mxu0 0.0
          %2552 = vmatpush1.msra.mxu0 0.0
          %2553 = vmatprep.subr.mxu0 0.0
          %2554 = vmatpush1.msra.mxu0 0.0
          %2555 = vmatprep.subr.mxu0 0.0
          %2556 = vmatpush1.msra.mxu0 0.0
          %2557 = vmatprep.subr.mxu0 0.0
          %2558 = vmatpush1.msra.mxu0 0.0
          %2559 = vmatprep.subr.mxu0 0.0
          %2560 = vmatpush1.msra.mxu0 0.0
          %2561 = vmatprep.subr.mxu0 0.0
          %2562 = vmatpush1.msra.mxu0 0.0
          %2563 = vmatprep.subr.mxu0 0.0
          %2564 = vmatpush1.msra.mxu0 0.0
          %2565 = vmatprep.subr.mxu0 0.0
          %2566 = vmatpush1.msra.mxu0 0.0
          %2567 = vmatprep.subr.mxu0 0.0
          %2568 = vmatpush1.msra.mxu0 0.0
          %2569 = vmatprep.subr.mxu0 0.0
          %2570 = vmatpush1.msra.mxu0 0.0
          %2571 = vmatprep.subr.mxu0 0.0
          %2572 = vmatpush1.msra.mxu0 0.0
          %2573 = vmatprep.subr.mxu0 0.0
          %2574 = vmatpush1.msra.mxu0 0.0
          %2575 = vmatprep.subr.mxu0 0.0
          %2576 = vmatpush1.msra.mxu0 0.0
          %2577 = vmatprep.subr.mxu0 0.0
          %2578 = vmatpush1.msra.mxu0 0.0
          %2579 = vmatprep.subr.mxu0 0.0
          %2580 = vmatpush1.msra.mxu0 0.0
          %2581 = vmatprep.subr.mxu0 0.0
          %2582 = vmatpush1.msra.mxu0 0.0
          %2583 = vmatprep.subr.mxu0 0.0
          %2584 = vmatpush1.msra.mxu0 0.0
          %2585 = vmatprep.mubr.f32.mxu0 0.0
          %2586 = vmatmul.mubr.f32.gmra.mrb[0].mxu0 %v2510
          %v2587 = vpop.f32.mrb[0].mxu0
          %v2588 = vadd.f32 %v2331, %v2587
          %v2589 = vpop.f32.mrb[0].mxu0
          %v2590 = vadd.f32 %v2333, %v2589
          %2591 = vmatprep.mubr.f32.mxu0 0.0
          %2592 = vmatmul.mubr.f32.gmra.mrb[0].mxu0 %v2513
          %v2593 = vpop.f32.mrb[0].mxu0
          %v2594 = vadd.f32 %v2337, %v2593
          %v2595 = vpop.f32.mrb[0].mxu0
          %v2596 = vadd.f32 %v2339, %v2595
          %2597 = vmatprep.mubr.f32.mxu0 0.0
          %2598 = vmatmul.mubr.f32.gmra.mrb[0].mxu0 %v2516
          %v2599 = vpop.f32.mrb[0].mxu0
          %v2600 = vadd.f32 %v2343, %v2599
          %v2601 = vpop.f32.mrb[0].mxu0
          %v2602 = vadd.f32 %v2345, %v2601
          %2603 = vmatprep.mubr.f32.mxu0 0.0
          %2604 = vmatmul.mubr.f32.gmra.mrb[0].mxu0 %v2519
          %v2605 = vpop.f32.mrb[0].mxu0
          %v2606 = vadd.f32 %v2349, %v2605
          %v2607 = vpop.f32.mrb[0].mxu0
          %v2608 = vadd.f32 %v2351, %v2607
          %2609 = vdwg.mxu0
          %s2610 = sadd.s32 %s2202, 2
          %s2611 = smul.u32 %s2610, 32
          %s2612 = scalar_lea.vmem [#allocation5], %s2611
          %v2613 = vld [vmem:[%s2612] sm:$0xff]
          %v2614 = vld [vmem:[%s2612 + $0x8] sm:$0xff]
          %v2615 = vld [vmem:[%s2612 + $0x10] sm:$0xff]
          %v2616 = vld [vmem:[%s2612 + $0x18] sm:$0xff]
          %v2617 = vld [vmem:[#allocation2 + $0x8] sm:$0xff]
          %v2618 = vld [vmem:[#allocation2 + $0x10] sm:$0xff]
          %v2619 = vld [vmem:[#allocation2 + $0x18] sm:$0xff]
          %v2620 = vld [vmem:[#allocation2 + $0x28] sm:$0xff]
          %v2621 = vld [vmem:[#allocation2 + $0x30] sm:$0xff]
          %v2622 = vld [vmem:[#allocation2 + $0x38] sm:$0xff]
          %v2623 = vld [vmem:[#allocation2 + $0x48] sm:$0xff]
          %v2624 = vld [vmem:[#allocation2 + $0x50] sm:$0xff]
          %v2625 = vld [vmem:[#allocation2 + $0x58] sm:$0xff]
          %v2626 = vld [vmem:[#allocation2 + $0x68] sm:$0xff]
          %v2627 = vld [vmem:[#allocation2 + $0x70] sm:$0xff]
          %v2628 = vld [vmem:[#allocation2 + $0x78] sm:$0xff]
          %v2629 = vld [vmem:[#allocation2 + $0x88] sm:$0xff]
          %v2630 = vld [vmem:[#allocation2 + $0x90] sm:$0xff]
          %v2631 = vld [vmem:[#allocation2 + $0x98] sm:$0xff]
          %v2632 = vld [vmem:[#allocation2 + $0xa8] sm:$0xff]
          %v2633 = vld [vmem:[#allocation2 + $0xb0] sm:$0xff]
          %v2634 = vld [vmem:[#allocation2 + $0xb8] sm:$0xff]
          %v2635 = vld [vmem:[#allocation2 + $0xc8] sm:$0xff]
          %v2636 = vld [vmem:[#allocation2 + $0xd0] sm:$0xff]
          %v2637 = vld [vmem:[#allocation2 + $0xd8] sm:$0xff]
          %v2638 = vld [vmem:[#allocation2 + $0xe8] sm:$0xff]
          %v2639 = vld [vmem:[#allocation2 + $0xf0] sm:$0xff]
          %v2640 = vld [vmem:[#allocation2 + $0xf8] sm:$0xff]
          %v2641 = vld [vmem:[#allocation2 + $0x108] sm:$0xff]
          %v2642 = vld [vmem:[#allocation2 + $0x110] sm:$0xff]
          %v2643 = vld [vmem:[#allocation2 + $0x118] sm:$0xff]
          %v2644 = vld [vmem:[#allocation2 + $0x128] sm:$0xff]
          %v2645 = vld [vmem:[#allocation2 + $0x130] sm:$0xff]
          %v2646 = vld [vmem:[#allocation2 + $0x138] sm:$0xff]
          %v2647 = vld [vmem:[#allocation2 + $0x148] sm:$0xff]
          %v2648 = vld [vmem:[#allocation2 + $0x150] sm:$0xff]
          %v2649 = vld [vmem:[#allocation2 + $0x158] sm:$0xff]
          %v2650 = vld [vmem:[#allocation2 + $0x168] sm:$0xff]
          %v2651 = vld [vmem:[#allocation2 + $0x170] sm:$0xff]
          %v2652 = vld [vmem:[#allocation2 + $0x178] sm:$0xff]
          %2689 = vrot.lane.b32.xlu0 %v2617, 112
          %v2690 = vpop.permute.xlu0 %2689
          %2691 = vrot.lane.b32.xlu0 %v2618, 112
          %v2692 = vpop.permute.xlu0 %2691
          %2693 = vrot.lane.b32.xlu0 %v2619, 112
          %v2694 = vpop.permute.xlu0 %2693
          %2695 = vrot.lane.b32.xlu0 %v2620, 112
          %v2696 = vpop.permute.xlu0 %2695
          %2697 = vrot.lane.b32.xlu0 %v2621, 112
          %v2698 = vpop.permute.xlu0 %2697
          %2699 = vrot.lane.b32.xlu0 %v2622, 112
          %v2700 = vpop.permute.xlu0 %2699
          %2701 = vrot.lane.b32.xlu0 %v2623, 112
          %v2702 = vpop.permute.xlu0 %2701
          %2703 = vrot.lane.b32.xlu0 %v2624, 112
          %v2704 = vpop.permute.xlu0 %2703
          %2705 = vrot.lane.b32.xlu0 %v2625, 112
          %v2706 = vpop.permute.xlu0 %2705
          %2707 = vrot.lane.b32.xlu0 %v2626, 112
          %v2708 = vpop.permute.xlu0 %2707
          %2709 = vrot.lane.b32.xlu0 %v2627, 112
          %v2710 = vpop.permute.xlu0 %2709
          %2711 = vrot.lane.b32.xlu0 %v2628, 112
          %v2712 = vpop.permute.xlu0 %2711
          %2713 = vrot.lane.b32.xlu0 %v2629, 112
          %v2714 = vpop.permute.xlu0 %2713
          %2715 = vrot.lane.b32.xlu0 %v2630, 112
          %v2716 = vpop.permute.xlu0 %2715
          %2717 = vrot.lane.b32.xlu0 %v2631, 112
          %v2718 = vpop.permute.xlu0 %2717
          %2719 = vrot.lane.b32.xlu0 %v2632, 112
          %v2720 = vpop.permute.xlu0 %2719
          %2721 = vrot.lane.b32.xlu0 %v2633, 112
          %v2722 = vpop.permute.xlu0 %2721
          %2723 = vrot.lane.b32.xlu0 %v2634, 112
          %v2724 = vpop.permute.xlu0 %2723
          %2725 = vrot.lane.b32.xlu0 %v2635, 112
          %v2726 = vpop.permute.xlu0 %2725
          %2727 = vrot.lane.b32.xlu0 %v2636, 112
          %v2728 = vpop.permute.xlu0 %2727
          %2729 = vrot.lane.b32.xlu0 %v2637, 112
          %v2730 = vpop.permute.xlu0 %2729
          %2731 = vrot.lane.b32.xlu0 %v2638, 112
          %v2732 = vpop.permute.xlu0 %2731
          %2733 = vrot.lane.b32.xlu0 %v2639, 112
          %v2734 = vpop.permute.xlu0 %2733
          %2735 = vrot.lane.b32.xlu0 %v2640, 112
          %v2736 = vpop.permute.xlu0 %2735
          %2737 = vrot.lane.b32.xlu0 %v2641, 112
          %v2738 = vpop.permute.xlu0 %2737
          %2739 = vrot.lane.b32.xlu0 %v2642, 112
          %v2740 = vpop.permute.xlu0 %2739
          %2741 = vrot.lane.b32.xlu0 %v2643, 112
          %v2742 = vpop.permute.xlu0 %2741
          %2743 = vrot.lane.b32.xlu0 %v2644, 112
          %v2744 = vpop.permute.xlu0 %2743
          %2745 = vrot.lane.b32.xlu0 %v2645, 112
          %v2746 = vpop.permute.xlu0 %2745
          %2747 = vrot.lane.b32.xlu0 %v2646, 112
          %v2748 = vpop.permute.xlu0 %2747
          %2749 = vrot.lane.b32.xlu0 %v2647, 112
          %v2750 = vpop.permute.xlu0 %2749
          %2751 = vrot.lane.b32.xlu0 %v2648, 112
          %v2752 = vpop.permute.xlu0 %2751
          %2753 = vrot.lane.b32.xlu0 %v2649, 112
          %v2754 = vpop.permute.xlu0 %2753
          %2755 = vrot.lane.b32.xlu0 %v2650, 112
          %v2756 = vpop.permute.xlu0 %2755
          %2757 = vrot.lane.b32.xlu0 %v2651, 112
          %v2758 = vpop.permute.xlu0 %2757
          %2759 = vrot.lane.b32.xlu0 %v2652, 112
          %v2760 = vpop.permute.xlu0 %2759
          %v2761 = vsel %vm965, %v2690, %v2692
          %v2762 = vsel %vm965, %v2692, %v2694
          %v2763 = vsel %vm965, %v2696, %v2698
          %v2764 = vsel %vm965, %v2698, %v2700
          %v2765 = vsel %vm965, %v2702, %v2704
          %v2766 = vsel %vm965, %v2704, %v2706
          %v2767 = vsel %vm965, %v2708, %v2710
          %v2768 = vsel %vm965, %v2710, %v2712
          %v2769 = vsel %vm965, %v2714, %v2716
          %v2770 = vsel %vm965, %v2716, %v2718
          %v2771 = vsel %vm965, %v2720, %v2722
          %v2772 = vsel %vm965, %v2722, %v2724
          %v2773 = vsel %vm965, %v2726, %v2728
          %v2774 = vsel %vm965, %v2728, %v2730
          %v2775 = vsel %vm965, %v2732, %v2734
          %v2776 = vsel %vm965, %v2734, %v2736
          %v2777 = vsel %vm965, %v2738, %v2740
          %v2778 = vsel %vm965, %v2740, %v2742
          %v2779 = vsel %vm965, %v2744, %v2746
          %v2780 = vsel %vm965, %v2746, %v2748
          %v2781 = vsel %vm965, %v2750, %v2752
          %v2782 = vsel %vm965, %v2752, %v2754
          %v2783 = vsel %vm965, %v2756, %v2758
          %v2784 = vsel %vm965, %v2758, %v2760
          %v2810 = vsel %vm456, %v2613, 0
          %v2813 = vsel %vm456, %v2614, 0
          %v2816 = vsel %vm456, %v2615, 0
          %v2819 = vsel %vm456, %v2616, 0
          %2821 = vmatprep.subr.mxu0 %v2762
          %2822 = vmatpush1.msra.mxu0 %v2761
          %2823 = vmatprep.subr.mxu0 %v2764
          %2824 = vmatpush1.msra.mxu0 %v2763
          %2825 = vmatprep.subr.mxu0 %v2766
          %2826 = vmatpush1.msra.mxu0 %v2765
          %2827 = vmatprep.subr.mxu0 %v2768
          %2828 = vmatpush1.msra.mxu0 %v2767
          %2829 = vmatprep.subr.mxu0 %v2770
          %2830 = vmatpush1.msra.mxu0 %v2769
          %2831 = vmatprep.subr.mxu0 %v2772
          %2832 = vmatpush1.msra.mxu0 %v2771
          %2833 = vmatprep.subr.mxu0 %v2774
          %2834 = vmatpush1.msra.mxu0 %v2773
          %2835 = vmatprep.subr.mxu0 %v2776
          %2836 = vmatpush1.msra.mxu0 %v2775
          %2837 = vmatprep.subr.mxu0 %v2778
          %2838 = vmatpush1.msra.mxu0 %v2777
          %2839 = vmatprep.subr.mxu0 %v2780
          %2840 = vmatpush1.msra.mxu0 %v2779
          %2841 = vmatprep.subr.mxu0 %v2782
          %2842 = vmatpush1.msra.mxu0 %v2781
          %2843 = vmatprep.subr.mxu0 %v2784
          %2844 = vmatpush1.msra.mxu0 %v2783
          %2845 = vmatprep.subr.mxu0 0.0
          %2846 = vmatpush1.msra.mxu0 0.0
          %2847 = vmatprep.subr.mxu0 0.0
          %2848 = vmatpush1.msra.mxu0 0.0
          %2849 = vmatprep.subr.mxu0 0.0
          %2850 = vmatpush1.msra.mxu0 0.0
          %2851 = vmatprep.subr.mxu0 0.0
          %2852 = vmatpush1.msra.mxu0 0.0
          %2853 = vmatprep.subr.mxu0 0.0
          %2854 = vmatpush1.msra.mxu0 0.0
          %2855 = vmatprep.subr.mxu0 0.0
          %2856 = vmatpush1.msra.mxu0 0.0
          %2857 = vmatprep.subr.mxu0 0.0
          %2858 = vmatpush1.msra.mxu0 0.0
          %2859 = vmatprep.subr.mxu0 0.0
          %2860 = vmatpush1.msra.mxu0 0.0
          %2861 = vmatprep.subr.mxu0 0.0
          %2862 = vmatpush1.msra.mxu0 0.0
          %2863 = vmatprep.subr.mxu0 0.0
          %2864 = vmatpush1.msra.mxu0 0.0
          %2865 = vmatprep.subr.mxu0 0.0
          %2866 = vmatpush1.msra.mxu0 0.0
          %2867 = vmatprep.subr.mxu0 0.0
          %2868 = vmatpush1.msra.mxu0 0.0
          %2869 = vmatprep.subr.mxu0 0.0
          %2870 = vmatpush1.msra.mxu0 0.0
          %2871 = vmatprep.subr.mxu0 0.0
          %2872 = vmatpush1.msra.mxu0 0.0
          %2873 = vmatprep.subr.mxu0 0.0
          %2874 = vmatpush1.msra.mxu0 0.0
          %2875 = vmatprep.subr.mxu0 0.0
          %2876 = vmatpush1.msra.mxu0 0.0
          %2877 = vmatprep.subr.mxu0 0.0
          %2878 = vmatpush1.msra.mxu0 0.0
          %2879 = vmatprep.subr.mxu0 0.0
          %2880 = vmatpush1.msra.mxu0 0.0
          %2881 = vmatprep.subr.mxu0 0.0
          %2882 = vmatpush1.msra.mxu0 0.0
          %2883 = vmatprep.subr.mxu0 0.0
          %2884 = vmatpush1.msra.mxu0 0.0
          %2885 = vmatprep.mubr.f32.mxu0 0.0
          %2886 = vmatmul.mubr.f32.gmra.mrb[0].mxu0 %v2810
          %v2887 = vpop.f32.mrb[0].mxu0
          %v2888 = vadd.f32 0.0, %v2887
          %v2889 = vpop.f32.mrb[0].mxu0
          %v2890 = vadd.f32 0.0, %v2889
          %2891 = vmatprep.mubr.f32.mxu0 0.0
          %2892 = vmatmul.mubr.f32.gmra.mrb[0].mxu0 %v2813
          %v2893 = vpop.f32.mrb[0].mxu0
          %v2894 = vadd.f32 0.0, %v2893
          %v2895 = vpop.f32.mrb[0].mxu0
          %v2896 = vadd.f32 0.0, %v2895
          %2897 = vmatprep.mubr.f32.mxu0 0.0
          %2898 = vmatmul.mubr.f32.gmra.mrb[0].mxu0 %v2816
          %v2899 = vpop.f32.mrb[0].mxu0
          %v2900 = vadd.f32 0.0, %v2899
          %v2901 = vpop.f32.mrb[0].mxu0
          %v2902 = vadd.f32 0.0, %v2901
          %2903 = vmatprep.mubr.f32.mxu0 0.0
          %2904 = vmatmul.mubr.f32.gmra.mrb[0].mxu0 %v2819
          %v2905 = vpop.f32.mrb[0].mxu0
          %v2906 = vadd.f32 0.0, %v2905
          %v2907 = vpop.f32.mrb[0].mxu0
          %v2908 = vadd.f32 0.0, %v2907
          %2909 = vdwg.mxu0
          %v2910 = vadd.f32 %v2588, %v2888
          %v2911 = vadd.f32 %v2590, %v2890
          %v2912 = vadd.f32 %v2594, %v2894
          %v2913 = vadd.f32 %v2596, %v2896
          %v2914 = vadd.f32 %v2600, %v2900
          %v2915 = vadd.f32 %v2602, %v2902
          %v2916 = vadd.f32 %v2606, %v2906
          %v2917 = vadd.f32 %v2608, %v2908
          %s2918 = smul.u32 %s2073, 32
          %s2919 = scalar_lea.vmem %s2, %s2918
          %v2920 = vld [vmem:[%s2919] sm:$0xff]
          %v2921 = vld [vmem:[%s2919 + $0x8] sm:$0xff]
          %v2922 = vld [vmem:[%s2919 + $0x10] sm:$0xff]
          %v2923 = vld [vmem:[%s2919 + $0x18] sm:$0xff]
          %2925 = vset.pattern.permute.xlu0 0
          %2926 = vperm.xlu0 %2925, %v2920
          %v2927 = vpop.permute.xlu0 %2926
          %2930 = vset.pattern.permute.xlu0 0
          %2931 = vperm.xlu0 %2930, %v2921
          %v2932 = vpop.permute.xlu0 %2931
          %2935 = vset.pattern.permute.xlu0 0
          %2936 = vperm.xlu0 %2935, %v2922
          %v2937 = vpop.permute.xlu0 %2936
          %2940 = vset.pattern.permute.xlu0 0
          %2941 = vperm.xlu0 %2940, %v2923
          %v2942 = vpop.permute.xlu0 %2941
          %v2944 = vadd.f32 %v2910, %v2927
          %v2945 = vadd.f32 %v2911, %v2927
          %v2946 = vadd.f32 %v2912, %v2932
          %v2947 = vadd.f32 %v2913, %v2932
          %v2948 = vadd.f32 %v2914, %v2937
          %v2949 = vadd.f32 %v2915, %v2937
          %v2950 = vadd.f32 %v2916, %v2942
          %v2951 = vadd.f32 %v2917, %v2942
          %v2952 = vld [vmem:[#allocation4] sm:$0xff]
          %v2953 = vld [vmem:[#allocation4 + $0x8] sm:$0xff]
          %v2954 = vld [vmem:[#allocation4 + $0x10] sm:$0xff]
          %v2955 = vld [vmem:[#allocation4 + $0x18] sm:$0xff]
          %v2956 = vld [vmem:[#allocation4 + $0x20] sm:$0xff]
          %v2957 = vld [vmem:[#allocation4 + $0x28] sm:$0xff]
          %v2958 = vld [vmem:[#allocation4 + $0x30] sm:$0xff]
          %v2959 = vld [vmem:[#allocation4 + $0x38] sm:$0xff]
          %v2960 = vadd.f32 %v2944, %v2952
          %v2961 = vadd.f32 %v2945, %v2953
          %v2962 = vadd.f32 %v2946, %v2954
          %v2963 = vadd.f32 %v2947, %v2955
          %v2964 = vadd.f32 %v2948, %v2956
          %v2965 = vadd.f32 %v2949, %v2957
          %v2966 = vadd.f32 %v2950, %v2958
          %v2967 = vadd.f32 %v2951, %v2959
          %2968 = vst [vmem:[#allocation4] sm:$0xff] %v2960
          %2969 = vst [vmem:[#allocation4 + $0x8] sm:$0xff] %v2961
          %2970 = vst [vmem:[#allocation4 + $0x10] sm:$0xff] %v2962
          %2971 = vst [vmem:[#allocation4 + $0x18] sm:$0xff] %v2963
          %2972 = vst [vmem:[#allocation4 + $0x20] sm:$0xff] %v2964
          %2973 = vst [vmem:[#allocation4 + $0x28] sm:$0xff] %v2965
          %2974 = vst [vmem:[#allocation4 + $0x30] sm:$0xff] %v2966
          %2975 = vst [vmem:[#allocation4 + $0x38] sm:$0xff] %v2967
        $region41: #{tpu_custom_call.1} parent=31 // loop_footer
          %s1176 = sadd.s32 1, %s1172
        $region42: #{tpu_custom_call.1} parent=31 // loop_footer_branch
          %1171 = sbr.rel target = $region38
        $region43: #{tpu_custom_call.1} parent=31 // loop_exit
          _
        %v2976 = vld [vmem:[#allocation4] sm:$0xff]
        %v2977 = vld [vmem:[#allocation4 + $0x8] sm:$0xff]
        %v2978 = vld [vmem:[#allocation4 + $0x10] sm:$0xff]
        %v2979 = vld [vmem:[#allocation4 + $0x18] sm:$0xff]
        %v2980 = vld [vmem:[#allocation4 + $0x20] sm:$0xff]
        %v2981 = vld [vmem:[#allocation4 + $0x28] sm:$0xff]
        %v2982 = vld [vmem:[#allocation4 + $0x30] sm:$0xff]
        %v2983 = vld [vmem:[#allocation4 + $0x38] sm:$0xff]
        %2984 = vst [vmem:[#allocation2 + $0x88] sm:$0xff] %v2976
        %2985 = vst [vmem:[#allocation2 + $0x90] sm:$0xff] %v2977
        %2986 = vst [vmem:[#allocation2 + $0xa8] sm:$0xff] %v2978
        %2987 = vst [vmem:[#allocation2 + $0xb0] sm:$0xff] %v2979
        %2988 = vst [vmem:[#allocation2 + $0xc8] sm:$0xff] %v2980
        %2989 = vst [vmem:[#allocation2 + $0xd0] sm:$0xff] %v2981
        %2990 = vst [vmem:[#allocation2 + $0xe8] sm:$0xff] %v2982
        %2991 = vst [vmem:[#allocation2 + $0xf0] sm:$0xff] %v2983
        %v2992 = vsel %vm281, %v2976, 0.0
        %v2993 = vsel %vm282, %v2977, 0.0
        %v2994 = vsel %vm281, %v2978, 0.0
        %v2995 = vsel %vm282, %v2979, 0.0
        %v2996 = vsel %vm281, %v2980, 0.0
        %v2997 = vsel %vm282, %v2981, 0.0
        %v2998 = vsel %vm281, %v2982, 0.0
        %v2999 = vsel %vm282, %v2983, 0.0
        %3008 = vrot.lane.b32.xlu0 %v2992, 1
        %v3009 = vpop.permute.xlu0 %3008
        %3010 = vrot.lane.b32.xlu0 %v2993, 1
        %v3011 = vpop.permute.xlu0 %3010
        %3012 = vrot.lane.b32.xlu0 %v2994, 1
        %v3013 = vpop.permute.xlu0 %3012
        %3014 = vrot.lane.b32.xlu0 %v2995, 1
        %v3015 = vpop.permute.xlu0 %3014
        %3016 = vrot.lane.b32.xlu0 %v2996, 1
        %v3017 = vpop.permute.xlu0 %3016
        %3018 = vrot.lane.b32.xlu0 %v2997, 1
        %v3019 = vpop.permute.xlu0 %3018
        %3020 = vrot.lane.b32.xlu0 %v2998, 1
        %v3021 = vpop.permute.xlu0 %3020
        %3022 = vrot.lane.b32.xlu0 %v2999, 1
        %v3023 = vpop.permute.xlu0 %3022
        %v3024 = vsel %vm315, %v3009, %v3011
        %v3025 = vsel %vm315, %v3013, %v3015
        %v3026 = vsel %vm315, %v3017, %v3019
        %v3027 = vsel %vm315, %v3021, %v3023
        %3040 = vst.msk [vmem:[#allocation2 + $0x8] sm:$0xff] %vm332, %v3009
        %3041 = vst [vmem:[#allocation2 + $0x10] sm:$0xff] %v3024
        %3042 = vst.msk [vmem:[#allocation2 + $0x18] sm:$0xff] %vm315, %v3011
        %3043 = vst.msk [vmem:[#allocation2 + $0x28] sm:$0xff] %vm332, %v3013
        %3044 = vst [vmem:[#allocation2 + $0x30] sm:$0xff] %v3025
        %3045 = vst.msk [vmem:[#allocation2 + $0x38] sm:$0xff] %vm315, %v3015
        %3046 = vst.msk [vmem:[#allocation2 + $0x48] sm:$0xff] %vm332, %v3017
        %3047 = vst [vmem:[#allocation2 + $0x50] sm:$0xff] %v3026
        %3048 = vst.msk [vmem:[#allocation2 + $0x58] sm:$0xff] %vm315, %v3019
        %3049 = vst.msk [vmem:[#allocation2 + $0x68] sm:$0xff] %vm332, %v3021
        %3050 = vst [vmem:[#allocation2 + $0x70] sm:$0xff] %v3027
        %3051 = vst.msk [vmem:[#allocation2 + $0x78] sm:$0xff] %vm315, %v3023
        %v3052 = vsel %vm347, %v2976, 0.0
        %v3053 = vsel %vm348, %v2977, 0.0
        %v3054 = vsel %vm347, %v2978, 0.0
        %v3055 = vsel %vm348, %v2979, 0.0
        %v3056 = vsel %vm347, %v2980, 0.0
        %v3057 = vsel %vm348, %v2981, 0.0
        %v3058 = vsel %vm347, %v2982, 0.0
        %v3059 = vsel %vm348, %v2983, 0.0
        %3068 = vrot.lane.b32.xlu0 %v3052, 127
        %v3069 = vpop.permute.xlu0 %3068
        %3070 = vrot.lane.b32.xlu0 %v3053, 127
        %v3071 = vpop.permute.xlu0 %3070
        %3072 = vrot.lane.b32.xlu0 %v3054, 127
        %v3073 = vpop.permute.xlu0 %3072
        %3074 = vrot.lane.b32.xlu0 %v3055, 127
        %v3075 = vpop.permute.xlu0 %3074
        %3076 = vrot.lane.b32.xlu0 %v3056, 127
        %v3077 = vpop.permute.xlu0 %3076
        %3078 = vrot.lane.b32.xlu0 %v3057, 127
        %v3079 = vpop.permute.xlu0 %3078
        %3080 = vrot.lane.b32.xlu0 %v3058, 127
        %v3081 = vpop.permute.xlu0 %3080
        %3082 = vrot.lane.b32.xlu0 %v3059, 127
        %v3083 = vpop.permute.xlu0 %3082
        %v3084 = vsel %vm381, %v3069, %v3071
        %v3085 = vsel %vm381, %v3073, %v3075
        %v3086 = vsel %vm381, %v3077, %v3079
        %v3087 = vsel %vm381, %v3081, %v3083
        %3100 = vst.msk [vmem:[#allocation2 + $0x100] sm:$0xff] %vm398, %v3069
        %3101 = vst [vmem:[#allocation2 + $0x108] sm:$0xff] %v3084
        %3102 = vst.msk [vmem:[#allocation2 + $0x110] sm:$0xff] %vm381, %v3071
        %3103 = vst.msk [vmem:[#allocation2 + $0x120] sm:$0xff] %vm398, %v3073
        %3104 = vst [vmem:[#allocation2 + $0x128] sm:$0xff] %v3085
        %3105 = vst.msk [vmem:[#allocation2 + $0x130] sm:$0xff] %vm381, %v3075
        %3106 = vst.msk [vmem:[#allocation2 + $0x140] sm:$0xff] %vm398, %v3077
        %3107 = vst [vmem:[#allocation2 + $0x148] sm:$0xff] %v3086
        %3108 = vst.msk [vmem:[#allocation2 + $0x150] sm:$0xff] %vm381, %v3079
        %3109 = vst.msk [vmem:[#allocation2 + $0x160] sm:$0xff] %vm398, %v3081
        %3110 = vst [vmem:[#allocation2 + $0x168] sm:$0xff] %v3087
        %3111 = vst.msk [vmem:[#allocation2 + $0x170] sm:$0xff] %vm381, %v3083
        %s3112 = scalar_lea.vmem [#allocation5], 480
        %v3113 = vld [vmem:[%s3112] sm:$0xff]
        %v3114 = vld [vmem:[%s3112 + $0x8] sm:$0xff]
        %v3115 = vld [vmem:[%s3112 + $0x10] sm:$0xff]
        %v3116 = vld [vmem:[%s3112 + $0x18] sm:$0xff]
        %v3117 = vld [vmem:[#allocation2] sm:$0xff]
        %v3118 = vld [vmem:[#allocation2 + $0x8] sm:$0xff]
        %v3119 = vld [vmem:[#allocation2 + $0x10] sm:$0xff]
        %v3120 = vld [vmem:[#allocation2 + $0x20] sm:$0xff]
        %v3121 = vld [vmem:[#allocation2 + $0x28] sm:$0xff]
        %v3122 = vld [vmem:[#allocation2 + $0x30] sm:$0xff]
        %v3123 = vld [vmem:[#allocation2 + $0x40] sm:$0xff]
        %v3124 = vld [vmem:[#allocation2 + $0x48] sm:$0xff]
        %v3125 = vld [vmem:[#allocation2 + $0x50] sm:$0xff]
        %v3126 = vld [vmem:[#allocation2 + $0x60] sm:$0xff]
        %v3127 = vld [vmem:[#allocation2 + $0x68] sm:$0xff]
        %v3128 = vld [vmem:[#allocation2 + $0x70] sm:$0xff]
        %v3129 = vld [vmem:[#allocation2 + $0x80] sm:$0xff]
        %v3130 = vld [vmem:[#allocation2 + $0x88] sm:$0xff]
        %v3131 = vld [vmem:[#allocation2 + $0x90] sm:$0xff]
        %v3132 = vld [vmem:[#allocation2 + $0xa0] sm:$0xff]
        %v3133 = vld [vmem:[#allocation2 + $0xa8] sm:$0xff]
        %v3134 = vld [vmem:[#allocation2 + $0xb0] sm:$0xff]
        %v3135 = vld [vmem:[#allocation2 + $0xc0] sm:$0xff]
        %v3136 = vld [vmem:[#allocation2 + $0xc8] sm:$0xff]
        %v3137 = vld [vmem:[#allocation2 + $0xd0] sm:$0xff]
        %v3138 = vld [vmem:[#allocation2 + $0xe0] sm:$0xff]
        %v3139 = vld [vmem:[#allocation2 + $0xe8] sm:$0xff]
        %v3140 = vld [vmem:[#allocation2 + $0xf0] sm:$0xff]
        %v3141 = vld [vmem:[#allocation2 + $0x100] sm:$0xff]
        %v3142 = vld [vmem:[#allocation2 + $0x108] sm:$0xff]
        %v3143 = vld [vmem:[#allocation2 + $0x110] sm:$0xff]
        %v3144 = vld [vmem:[#allocation2 + $0x120] sm:$0xff]
        %v3145 = vld [vmem:[#allocation2 + $0x128] sm:$0xff]
        %v3146 = vld [vmem:[#allocation2 + $0x130] sm:$0xff]
        %v3147 = vld [vmem:[#allocation2 + $0x140] sm:$0xff]
        %v3148 = vld [vmem:[#allocation2 + $0x148] sm:$0xff]
        %v3149 = vld [vmem:[#allocation2 + $0x150] sm:$0xff]
        %v3150 = vld [vmem:[#allocation2 + $0x160] sm:$0xff]
        %v3151 = vld [vmem:[#allocation2 + $0x168] sm:$0xff]
        %v3152 = vld [vmem:[#allocation2 + $0x170] sm:$0xff]
        %s3153 = scalar_lea.vmem [#allocation5], 512
        %v3154 = vld [vmem:[%s3153] sm:$0xff]
        %v3155 = vld [vmem:[%s3153 + $0x8] sm:$0xff]
        %v3156 = vld [vmem:[%s3153 + $0x10] sm:$0xff]
        %v3157 = vld [vmem:[%s3153 + $0x18] sm:$0xff]
        %v3159 = vsel %vm456, %v3154, 0
        %v3162 = vsel %vm456, %v3155, 0
        %v3165 = vsel %vm456, %v3156, 0
        %v3168 = vsel %vm456, %v3157, 0
        %3170 = vmatprep.subr.mxu0 %v3119
        %3171 = vmatpush1.msra.mxu0 %v3118
        %3172 = vmatprep.subr.mxu0 %v3122
        %3173 = vmatpush1.msra.mxu0 %v3121
        %3174 = vmatprep.subr.mxu0 %v3125
        %3175 = vmatpush1.msra.mxu0 %v3124
        %3176 = vmatprep.subr.mxu0 %v3128
        %3177 = vmatpush1.msra.mxu0 %v3127
        %3178 = vmatprep.subr.mxu0 %v3131
        %3179 = vmatpush1.msra.mxu0 %v3130
        %3180 = vmatprep.subr.mxu0 %v3134
        %3181 = vmatpush1.msra.mxu0 %v3133
        %3182 = vmatprep.subr.mxu0 %v3137
        %3183 = vmatpush1.msra.mxu0 %v3136
        %3184 = vmatprep.subr.mxu0 %v3140
        %3185 = vmatpush1.msra.mxu0 %v3139
        %3186 = vmatprep.subr.mxu0 %v3143
        %3187 = vmatpush1.msra.mxu0 %v3142
        %3188 = vmatprep.subr.mxu0 %v3146
        %3189 = vmatpush1.msra.mxu0 %v3145
        %3190 = vmatprep.subr.mxu0 %v3149
        %3191 = vmatpush1.msra.mxu0 %v3148
        %3192 = vmatprep.subr.mxu0 %v3152
        %3193 = vmatpush1.msra.mxu0 %v3151
        %3194 = vmatprep.subr.mxu0 0.0
        %3195 = vmatpush1.msra.mxu0 0.0
        %3196 = vmatprep.subr.mxu0 0.0
        %3197 = vmatpush1.msra.mxu0 0.0
        %3198 = vmatprep.subr.mxu0 0.0
        %3199 = vmatpush1.msra.mxu0 0.0
        %3200 = vmatprep.subr.mxu0 0.0
        %3201 = vmatpush1.msra.mxu0 0.0
        %3202 = vmatprep.subr.mxu0 0.0
        %3203 = vmatpush1.msra.mxu0 0.0
        %3204 = vmatprep.subr.mxu0 0.0
        %3205 = vmatpush1.msra.mxu0 0.0
        %3206 = vmatprep.subr.mxu0 0.0
        %3207 = vmatpush1.msra.mxu0 0.0
        %3208 = vmatprep.subr.mxu0 0.0
        %3209 = vmatpush1.msra.mxu0 0.0
        %3210 = vmatprep.subr.mxu0 0.0
        %3211 = vmatpush1.msra.mxu0 0.0
        %3212 = vmatprep.subr.mxu0 0.0
        %3213 = vmatpush1.msra.mxu0 0.0
        %3214 = vmatprep.subr.mxu0 0.0
        %3215 = vmatpush1.msra.mxu0 0.0
        %3216 = vmatprep.subr.mxu0 0.0
        %3217 = vmatpush1.msra.mxu0 0.0
        %3218 = vmatprep.subr.mxu0 0.0
        %3219 = vmatpush1.msra.mxu0 0.0
        %3220 = vmatprep.subr.mxu0 0.0
        %3221 = vmatpush1.msra.mxu0 0.0
        %3222 = vmatprep.subr.mxu0 0.0
        %3223 = vmatpush1.msra.mxu0 0.0
        %3224 = vmatprep.subr.mxu0 0.0
        %3225 = vmatpush1.msra.mxu0 0.0
        %3226 = vmatprep.subr.mxu0 0.0
        %3227 = vmatpush1.msra.mxu0 0.0
        %3228 = vmatprep.subr.mxu0 0.0
        %3229 = vmatpush1.msra.mxu0 0.0
        %3230 = vmatprep.subr.mxu0 0.0
        %3231 = vmatpush1.msra.mxu0 0.0
        %3232 = vmatprep.subr.mxu0 0.0
        %3233 = vmatpush1.msra.mxu0 0.0
        %3234 = vmatprep.mubr.f32.mxu0 0.0
        %3235 = vmatmul.mubr.f32.gmra.mrb[0].mxu0 %v3159
        %v3236 = vpop.f32.mrb[0].mxu0
        %v3237 = vadd.f32 0.0, %v3236
        %v3238 = vpop.f32.mrb[0].mxu0
        %v3239 = vadd.f32 0.0, %v3238
        %3240 = vmatprep.mubr.f32.mxu0 0.0
        %3241 = vmatmul.mubr.f32.gmra.mrb[0].mxu0 %v3162
        %v3242 = vpop.f32.mrb[0].mxu0
        %v3243 = vadd.f32 0.0, %v3242
        %v3244 = vpop.f32.mrb[0].mxu0
        %v3245 = vadd.f32 0.0, %v3244
        %3246 = vmatprep.mubr.f32.mxu0 0.0
        %3247 = vmatmul.mubr.f32.gmra.mrb[0].mxu0 %v3165
        %v3248 = vpop.f32.mrb[0].mxu0
        %v3249 = vadd.f32 0.0, %v3248
        %v3250 = vpop.f32.mrb[0].mxu0
        %v3251 = vadd.f32 0.0, %v3250
        %3252 = vmatprep.mubr.f32.mxu0 0.0
        %3253 = vmatmul.mubr.f32.gmra.mrb[0].mxu0 %v3168
        %v3254 = vpop.f32.mrb[0].mxu0
        %v3255 = vadd.f32 0.0, %v3254
        %v3256 = vpop.f32.mrb[0].mxu0
        %v3257 = vadd.f32 0.0, %v3256
        %3258 = vdwg.mxu0
        %3295 = vrot.lane.b32.xlu0 %v3117, 16
        %v3296 = vpop.permute.xlu0 %3295
        %3297 = vrot.lane.b32.xlu0 %v3118, 16
        %v3298 = vpop.permute.xlu0 %3297
        %3299 = vrot.lane.b32.xlu0 %v3119, 16
        %v3300 = vpop.permute.xlu0 %3299
        %3301 = vrot.lane.b32.xlu0 %v3120, 16
        %v3302 = vpop.permute.xlu0 %3301
        %3303 = vrot.lane.b32.xlu0 %v3121, 16
        %v3304 = vpop.permute.xlu0 %3303
        %3305 = vrot.lane.b32.xlu0 %v3122, 16
        %v3306 = vpop.permute.xlu0 %3305
        %3307 = vrot.lane.b32.xlu0 %v3123, 16
        %v3308 = vpop.permute.xlu0 %3307
        %3309 = vrot.lane.b32.xlu0 %v3124, 16
        %v3310 = vpop.permute.xlu0 %3309
        %3311 = vrot.lane.b32.xlu0 %v3125, 16
        %v3312 = vpop.permute.xlu0 %3311
        %3313 = vrot.lane.b32.xlu0 %v3126, 16
        %v3314 = vpop.permute.xlu0 %3313
        %3315 = vrot.lane.b32.xlu0 %v3127, 16
        %v3316 = vpop.permute.xlu0 %3315
        %3317 = vrot.lane.b32.xlu0 %v3128, 16
        %v3318 = vpop.permute.xlu0 %3317
        %3319 = vrot.lane.b32.xlu0 %v3129, 16
        %v3320 = vpop.permute.xlu0 %3319
        %3321 = vrot.lane.b32.xlu0 %v3130, 16
        %v3322 = vpop.permute.xlu0 %3321
        %3323 = vrot.lane.b32.xlu0 %v3131, 16
        %v3324 = vpop.permute.xlu0 %3323
        %3325 = vrot.lane.b32.xlu0 %v3132, 16
        %v3326 = vpop.permute.xlu0 %3325
        %3327 = vrot.lane.b32.xlu0 %v3133, 16
        %v3328 = vpop.permute.xlu0 %3327
        %3329 = vrot.lane.b32.xlu0 %v3134, 16
        %v3330 = vpop.permute.xlu0 %3329
        %3331 = vrot.lane.b32.xlu0 %v3135, 16
        %v3332 = vpop.permute.xlu0 %3331
        %3333 = vrot.lane.b32.xlu0 %v3136, 16
        %v3334 = vpop.permute.xlu0 %3333
        %3335 = vrot.lane.b32.xlu0 %v3137, 16
        %v3336 = vpop.permute.xlu0 %3335
        %3337 = vrot.lane.b32.xlu0 %v3138, 16
        %v3338 = vpop.permute.xlu0 %3337
        %3339 = vrot.lane.b32.xlu0 %v3139, 16
        %v3340 = vpop.permute.xlu0 %3339
        %3341 = vrot.lane.b32.xlu0 %v3140, 16
        %v3342 = vpop.permute.xlu0 %3341
        %3343 = vrot.lane.b32.xlu0 %v3141, 16
        %v3344 = vpop.permute.xlu0 %3343
        %3345 = vrot.lane.b32.xlu0 %v3142, 16
        %v3346 = vpop.permute.xlu0 %3345
        %3347 = vrot.lane.b32.xlu0 %v3143, 16
        %v3348 = vpop.permute.xlu0 %3347
        %3349 = vrot.lane.b32.xlu0 %v3144, 16
        %v3350 = vpop.permute.xlu0 %3349
        %3351 = vrot.lane.b32.xlu0 %v3145, 16
        %v3352 = vpop.permute.xlu0 %3351
        %3353 = vrot.lane.b32.xlu0 %v3146, 16
        %v3354 = vpop.permute.xlu0 %3353
        %3355 = vrot.lane.b32.xlu0 %v3147, 16
        %v3356 = vpop.permute.xlu0 %3355
        %3357 = vrot.lane.b32.xlu0 %v3148, 16
        %v3358 = vpop.permute.xlu0 %3357
        %3359 = vrot.lane.b32.xlu0 %v3149, 16
        %v3360 = vpop.permute.xlu0 %3359
        %3361 = vrot.lane.b32.xlu0 %v3150, 16
        %v3362 = vpop.permute.xlu0 %3361
        %3363 = vrot.lane.b32.xlu0 %v3151, 16
        %v3364 = vpop.permute.xlu0 %3363
        %3365 = vrot.lane.b32.xlu0 %v3152, 16
        %v3366 = vpop.permute.xlu0 %3365
        %v3367 = vsel %vm666, %v3296, %v3298
        %v3368 = vsel %vm666, %v3298, %v3300
        %v3369 = vsel %vm666, %v3302, %v3304
        %v3370 = vsel %vm666, %v3304, %v3306
        %v3371 = vsel %vm666, %v3308, %v3310
        %v3372 = vsel %vm666, %v3310, %v3312
        %v3373 = vsel %vm666, %v3314, %v3316
        %v3374 = vsel %vm666, %v3316, %v3318
        %v3375 = vsel %vm666, %v3320, %v3322
        %v3376 = vsel %vm666, %v3322, %v3324
        %v3377 = vsel %vm666, %v3326, %v3328
        %v3378 = vsel %vm666, %v3328, %v3330
        %v3379 = vsel %vm666, %v3332, %v3334
        %v3380 = vsel %vm666, %v3334, %v3336
        %v3381 = vsel %vm666, %v3338, %v3340
        %v3382 = vsel %vm666, %v3340, %v3342
        %v3383 = vsel %vm666, %v3344, %v3346
        %v3384 = vsel %vm666, %v3346, %v3348
        %v3385 = vsel %vm666, %v3350, %v3352
        %v3386 = vsel %vm666, %v3352, %v3354
        %v3387 = vsel %vm666, %v3356, %v3358
        %v3388 = vsel %vm666, %v3358, %v3360
        %v3389 = vsel %vm666, %v3362, %v3364
        %v3390 = vsel %vm666, %v3364, %v3366
        %v3416 = vsel %vm456, %v3113, 0
        %v3419 = vsel %vm456, %v3114, 0
        %v3422 = vsel %vm456, %v3115, 0
        %v3425 = vsel %vm456, %v3116, 0
        %3427 = vmatprep.subr.mxu0 %v3368
        %3428 = vmatpush1.msra.mxu0 %v3367
        %3429 = vmatprep.subr.mxu0 %v3370
        %3430 = vmatpush1.msra.mxu0 %v3369
        %3431 = vmatprep.subr.mxu0 %v3372
        %3432 = vmatpush1.msra.mxu0 %v3371
        %3433 = vmatprep.subr.mxu0 %v3374
        %3434 = vmatpush1.msra.mxu0 %v3373
        %3435 = vmatprep.subr.mxu0 %v3376
        %3436 = vmatpush1.msra.mxu0 %v3375
        %3437 = vmatprep.subr.mxu0 %v3378
        %3438 = vmatpush1.msra.mxu0 %v3377
        %3439 = vmatprep.subr.mxu0 %v3380
        %3440 = vmatpush1.msra.mxu0 %v3379
        %3441 = vmatprep.subr.mxu0 %v3382
        %3442 = vmatpush1.msra.mxu0 %v3381
        %3443 = vmatprep.subr.mxu0 %v3384
        %3444 = vmatpush1.msra.mxu0 %v3383
        %3445 = vmatprep.subr.mxu0 %v3386
        %3446 = vmatpush1.msra.mxu0 %v3385
        %3447 = vmatprep.subr.mxu0 %v3388
        %3448 = vmatpush1.msra.mxu0 %v3387
        %3449 = vmatprep.subr.mxu0 %v3390
        %3450 = vmatpush1.msra.mxu0 %v3389
        %3451 = vmatprep.subr.mxu0 0.0
        %3452 = vmatpush1.msra.mxu0 0.0
        %3453 = vmatprep.subr.mxu0 0.0
        %3454 = vmatpush1.msra.mxu0 0.0
        %3455 = vmatprep.subr.mxu0 0.0
        %3456 = vmatpush1.msra.mxu0 0.0
        %3457 = vmatprep.subr.mxu0 0.0
        %3458 = vmatpush1.msra.mxu0 0.0
        %3459 = vmatprep.subr.mxu0 0.0
        %3460 = vmatpush1.msra.mxu0 0.0
        %3461 = vmatprep.subr.mxu0 0.0
        %3462 = vmatpush1.msra.mxu0 0.0
        %3463 = vmatprep.subr.mxu0 0.0
        %3464 = vmatpush1.msra.mxu0 0.0
        %3465 = vmatprep.subr.mxu0 0.0
        %3466 = vmatpush1.msra.mxu0 0.0
        %3467 = vmatprep.subr.mxu0 0.0
        %3468 = vmatpush1.msra.mxu0 0.0
        %3469 = vmatprep.subr.mxu0 0.0
        %3470 = vmatpush1.msra.mxu0 0.0
        %3471 = vmatprep.subr.mxu0 0.0
        %3472 = vmatpush1.msra.mxu0 0.0
        %3473 = vmatprep.subr.mxu0 0.0
        %3474 = vmatpush1.msra.mxu0 0.0
        %3475 = vmatprep.subr.mxu0 0.0
        %3476 = vmatpush1.msra.mxu0 0.0
        %3477 = vmatprep.subr.mxu0 0.0
        %3478 = vmatpush1.msra.mxu0 0.0
        %3479 = vmatprep.subr.mxu0 0.0
        %3480 = vmatpush1.msra.mxu0 0.0
        %3481 = vmatprep.subr.mxu0 0.0
        %3482 = vmatpush1.msra.mxu0 0.0
        %3483 = vmatprep.subr.mxu0 0.0
        %3484 = vmatpush1.msra.mxu0 0.0
        %3485 = vmatprep.subr.mxu0 0.0
        %3486 = vmatpush1.msra.mxu0 0.0
        %3487 = vmatprep.subr.mxu0 0.0
        %3488 = vmatpush1.msra.mxu0 0.0
        %3489 = vmatprep.subr.mxu0 0.0
        %3490 = vmatpush1.msra.mxu0 0.0
        %3491 = vmatprep.mubr.f32.mxu0 0.0
        %3492 = vmatmul.mubr.f32.gmra.mrb[0].mxu0 %v3416
        %v3493 = vpop.f32.mrb[0].mxu0
        %v3494 = vadd.f32 %v3237, %v3493
        %v3495 = vpop.f32.mrb[0].mxu0
        %v3496 = vadd.f32 %v3239, %v3495
        %3497 = vmatprep.mubr.f32.mxu0 0.0
        %3498 = vmatmul.mubr.f32.gmra.mrb[0].mxu0 %v3419
        %v3499 = vpop.f32.mrb[0].mxu0
        %v3500 = vadd.f32 %v3243, %v3499
        %v3501 = vpop.f32.mrb[0].mxu0
        %v3502 = vadd.f32 %v3245, %v3501
        %3503 = vmatprep.mubr.f32.mxu0 0.0
        %3504 = vmatmul.mubr.f32.gmra.mrb[0].mxu0 %v3422
        %v3505 = vpop.f32.mrb[0].mxu0
        %v3506 = vadd.f32 %v3249, %v3505
        %v3507 = vpop.f32.mrb[0].mxu0
        %v3508 = vadd.f32 %v3251, %v3507
        %3509 = vmatprep.mubr.f32.mxu0 0.0
        %3510 = vmatmul.mubr.f32.gmra.mrb[0].mxu0 %v3425
        %v3511 = vpop.f32.mrb[0].mxu0
        %v3512 = vadd.f32 %v3255, %v3511
        %v3513 = vpop.f32.mrb[0].mxu0
        %v3514 = vadd.f32 %v3257, %v3513
        %3515 = vdwg.mxu0
        %s3516 = scalar_lea.vmem [#allocation5], 544
        %v3517 = vld [vmem:[%s3516] sm:$0xff]
        %v3518 = vld [vmem:[%s3516 + $0x8] sm:$0xff]
        %v3519 = vld [vmem:[%s3516 + $0x10] sm:$0xff]
        %v3520 = vld [vmem:[%s3516 + $0x18] sm:$0xff]
        %v3521 = vld [vmem:[#allocation2 + $0x8] sm:$0xff]
        %v3522 = vld [vmem:[#allocation2 + $0x10] sm:$0xff]
        %v3523 = vld [vmem:[#allocation2 + $0x18] sm:$0xff]
        %v3524 = vld [vmem:[#allocation2 + $0x28] sm:$0xff]
        %v3525 = vld [vmem:[#allocation2 + $0x30] sm:$0xff]
        %v3526 = vld [vmem:[#allocation2 + $0x38] sm:$0xff]
        %v3527 = vld [vmem:[#allocation2 + $0x48] sm:$0xff]
        %v3528 = vld [vmem:[#allocation2 + $0x50] sm:$0xff]
        %v3529 = vld [vmem:[#allocation2 + $0x58] sm:$0xff]
        %v3530 = vld [vmem:[#allocation2 + $0x68] sm:$0xff]
        %v3531 = vld [vmem:[#allocation2 + $0x70] sm:$0xff]
        %v3532 = vld [vmem:[#allocation2 + $0x78] sm:$0xff]
        %v3533 = vld [vmem:[#allocation2 + $0x88] sm:$0xff]
        %v3534 = vld [vmem:[#allocation2 + $0x90] sm:$0xff]
        %v3535 = vld [vmem:[#allocation2 + $0x98] sm:$0xff]
        %v3536 = vld [vmem:[#allocation2 + $0xa8] sm:$0xff]
        %v3537 = vld [vmem:[#allocation2 + $0xb0] sm:$0xff]
        %v3538 = vld [vmem:[#allocation2 + $0xb8] sm:$0xff]
        %v3539 = vld [vmem:[#allocation2 + $0xc8] sm:$0xff]
        %v3540 = vld [vmem:[#allocation2 + $0xd0] sm:$0xff]
        %v3541 = vld [vmem:[#allocation2 + $0xd8] sm:$0xff]
        %v3542 = vld [vmem:[#allocation2 + $0xe8] sm:$0xff]
        %v3543 = vld [vmem:[#allocation2 + $0xf0] sm:$0xff]
        %v3544 = vld [vmem:[#allocation2 + $0xf8] sm:$0xff]
        %v3545 = vld [vmem:[#allocation2 + $0x108] sm:$0xff]
        %v3546 = vld [vmem:[#allocation2 + $0x110] sm:$0xff]
        %v3547 = vld [vmem:[#allocation2 + $0x118] sm:$0xff]
        %v3548 = vld [vmem:[#allocation2 + $0x128] sm:$0xff]
        %v3549 = vld [vmem:[#allocation2 + $0x130] sm:$0xff]
        %v3550 = vld [vmem:[#allocation2 + $0x138] sm:$0xff]
        %v3551 = vld [vmem:[#allocation2 + $0x148] sm:$0xff]
        %v3552 = vld [vmem:[#allocation2 + $0x150] sm:$0xff]
        %v3553 = vld [vmem:[#allocation2 + $0x158] sm:$0xff]
        %v3554 = vld [vmem:[#allocation2 + $0x168] sm:$0xff]
        %v3555 = vld [vmem:[#allocation2 + $0x170] sm:$0xff]
        %v3556 = vld [vmem:[#allocation2 + $0x178] sm:$0xff]
        %3593 = vrot.lane.b32.xlu0 %v3521, 112
        %v3594 = vpop.permute.xlu0 %3593
        %3595 = vrot.lane.b32.xlu0 %v3522, 112
        %v3596 = vpop.permute.xlu0 %3595
        %3597 = vrot.lane.b32.xlu0 %v3523, 112
        %v3598 = vpop.permute.xlu0 %3597
        %3599 = vrot.lane.b32.xlu0 %v3524, 112
        %v3600 = vpop.permute.xlu0 %3599
        %3601 = vrot.lane.b32.xlu0 %v3525, 112
        %v3602 = vpop.permute.xlu0 %3601
        %3603 = vrot.lane.b32.xlu0 %v3526, 112
        %v3604 = vpop.permute.xlu0 %3603
        %3605 = vrot.lane.b32.xlu0 %v3527, 112
        %v3606 = vpop.permute.xlu0 %3605
        %3607 = vrot.lane.b32.xlu0 %v3528, 112
        %v3608 = vpop.permute.xlu0 %3607
        %3609 = vrot.lane.b32.xlu0 %v3529, 112
        %v3610 = vpop.permute.xlu0 %3609
        %3611 = vrot.lane.b32.xlu0 %v3530, 112
        %v3612 = vpop.permute.xlu0 %3611
        %3613 = vrot.lane.b32.xlu0 %v3531, 112
        %v3614 = vpop.permute.xlu0 %3613
        %3615 = vrot.lane.b32.xlu0 %v3532, 112
        %v3616 = vpop.permute.xlu0 %3615
        %3617 = vrot.lane.b32.xlu0 %v3533, 112
        %v3618 = vpop.permute.xlu0 %3617
        %3619 = vrot.lane.b32.xlu0 %v3534, 112
        %v3620 = vpop.permute.xlu0 %3619
        %3621 = vrot.lane.b32.xlu0 %v3535, 112
        %v3622 = vpop.permute.xlu0 %3621
        %3623 = vrot.lane.b32.xlu0 %v3536, 112
        %v3624 = vpop.permute.xlu0 %3623
        %3625 = vrot.lane.b32.xlu0 %v3537, 112
        %v3626 = vpop.permute.xlu0 %3625
        %3627 = vrot.lane.b32.xlu0 %v3538, 112
        %v3628 = vpop.permute.xlu0 %3627
        %3629 = vrot.lane.b32.xlu0 %v3539, 112
        %v3630 = vpop.permute.xlu0 %3629
        %3631 = vrot.lane.b32.xlu0 %v3540, 112
        %v3632 = vpop.permute.xlu0 %3631
        %3633 = vrot.lane.b32.xlu0 %v3541, 112
        %v3634 = vpop.permute.xlu0 %3633
        %3635 = vrot.lane.b32.xlu0 %v3542, 112
        %v3636 = vpop.permute.xlu0 %3635
        %3637 = vrot.lane.b32.xlu0 %v3543, 112
        %v3638 = vpop.permute.xlu0 %3637
        %3639 = vrot.lane.b32.xlu0 %v3544, 112
        %v3640 = vpop.permute.xlu0 %3639
        %3641 = vrot.lane.b32.xlu0 %v3545, 112
        %v3642 = vpop.permute.xlu0 %3641
        %3643 = vrot.lane.b32.xlu0 %v3546, 112
        %v3644 = vpop.permute.xlu0 %3643
        %3645 = vrot.lane.b32.xlu0 %v3547, 112
        %v3646 = vpop.permute.xlu0 %3645
        %3647 = vrot.lane.b32.xlu0 %v3548, 112
        %v3648 = vpop.permute.xlu0 %3647
        %3649 = vrot.lane.b32.xlu0 %v3549, 112
        %v3650 = vpop.permute.xlu0 %3649
        %3651 = vrot.lane.b32.xlu0 %v3550, 112
        %v3652 = vpop.permute.xlu0 %3651
        %3653 = vrot.lane.b32.xlu0 %v3551, 112
        %v3654 = vpop.permute.xlu0 %3653
        %3655 = vrot.lane.b32.xlu0 %v3552, 112
        %v3656 = vpop.permute.xlu0 %3655
        %3657 = vrot.lane.b32.xlu0 %v3553, 112
        %v3658 = vpop.permute.xlu0 %3657
        %3659 = vrot.lane.b32.xlu0 %v3554, 112
        %v3660 = vpop.permute.xlu0 %3659
        %3661 = vrot.lane.b32.xlu0 %v3555, 112
        %v3662 = vpop.permute.xlu0 %3661
        %3663 = vrot.lane.b32.xlu0 %v3556, 112
        %v3664 = vpop.permute.xlu0 %3663
        %v3665 = vsel %vm965, %v3594, %v3596
        %v3666 = vsel %vm965, %v3596, %v3598
        %v3667 = vsel %vm965, %v3600, %v3602
        %v3668 = vsel %vm965, %v3602, %v3604
        %v3669 = vsel %vm965, %v3606, %v3608
        %v3670 = vsel %vm965, %v3608, %v3610
        %v3671 = vsel %vm965, %v3612, %v3614
        %v3672 = vsel %vm965, %v3614, %v3616
        %v3673 = vsel %vm965, %v3618, %v3620
        %v3674 = vsel %vm965, %v3620, %v3622
        %v3675 = vsel %vm965, %v3624, %v3626
        %v3676 = vsel %vm965, %v3626, %v3628
        %v3677 = vsel %vm965, %v3630, %v3632
        %v3678 = vsel %vm965, %v3632, %v3634
        %v3679 = vsel %vm965, %v3636, %v3638
        %v3680 = vsel %vm965, %v3638, %v3640
        %v3681 = vsel %vm965, %v3642, %v3644
        %v3682 = vsel %vm965, %v3644, %v3646
        %v3683 = vsel %vm965, %v3648, %v3650
        %v3684 = vsel %vm965, %v3650, %v3652
        %v3685 = vsel %vm965, %v3654, %v3656
        %v3686 = vsel %vm965, %v3656, %v3658
        %v3687 = vsel %vm965, %v3660, %v3662
        %v3688 = vsel %vm965, %v3662, %v3664
        %v3714 = vsel %vm456, %v3517, 0
        %v3717 = vsel %vm456, %v3518, 0
        %v3720 = vsel %vm456, %v3519, 0
        %v3723 = vsel %vm456, %v3520, 0
        %3725 = vmatprep.subr.mxu0 %v3666
        %3726 = vmatpush1.msra.mxu0 %v3665
        %3727 = vmatprep.subr.mxu0 %v3668
        %3728 = vmatpush1.msra.mxu0 %v3667
        %3729 = vmatprep.subr.mxu0 %v3670
        %3730 = vmatpush1.msra.mxu0 %v3669
        %3731 = vmatprep.subr.mxu0 %v3672
        %3732 = vmatpush1.msra.mxu0 %v3671
        %3733 = vmatprep.subr.mxu0 %v3674
        %3734 = vmatpush1.msra.mxu0 %v3673
        %3735 = vmatprep.subr.mxu0 %v3676
        %3736 = vmatpush1.msra.mxu0 %v3675
        %3737 = vmatprep.subr.mxu0 %v3678
        %3738 = vmatpush1.msra.mxu0 %v3677
        %3739 = vmatprep.subr.mxu0 %v3680
        %3740 = vmatpush1.msra.mxu0 %v3679
        %3741 = vmatprep.subr.mxu0 %v3682
        %3742 = vmatpush1.msra.mxu0 %v3681
        %3743 = vmatprep.subr.mxu0 %v3684
        %3744 = vmatpush1.msra.mxu0 %v3683
        %3745 = vmatprep.subr.mxu0 %v3686
        %3746 = vmatpush1.msra.mxu0 %v3685
        %3747 = vmatprep.subr.mxu0 %v3688
        %3748 = vmatpush1.msra.mxu0 %v3687
        %3749 = vmatprep.subr.mxu0 0.0
        %3750 = vmatpush1.msra.mxu0 0.0
        %3751 = vmatprep.subr.mxu0 0.0
        %3752 = vmatpush1.msra.mxu0 0.0
        %3753 = vmatprep.subr.mxu0 0.0
        %3754 = vmatpush1.msra.mxu0 0.0
        %3755 = vmatprep.subr.mxu0 0.0
        %3756 = vmatpush1.msra.mxu0 0.0
        %3757 = vmatprep.subr.mxu0 0.0
        %3758 = vmatpush1.msra.mxu0 0.0
        %3759 = vmatprep.subr.mxu0 0.0
        %3760 = vmatpush1.msra.mxu0 0.0
        %3761 = vmatprep.subr.mxu0 0.0
        %3762 = vmatpush1.msra.mxu0 0.0
        %3763 = vmatprep.subr.mxu0 0.0
        %3764 = vmatpush1.msra.mxu0 0.0
        %3765 = vmatprep.subr.mxu0 0.0
        %3766 = vmatpush1.msra.mxu0 0.0
        %3767 = vmatprep.subr.mxu0 0.0
        %3768 = vmatpush1.msra.mxu0 0.0
        %3769 = vmatprep.subr.mxu0 0.0
        %3770 = vmatpush1.msra.mxu0 0.0
        %3771 = vmatprep.subr.mxu0 0.0
        %3772 = vmatpush1.msra.mxu0 0.0
        %3773 = vmatprep.subr.mxu0 0.0
        %3774 = vmatpush1.msra.mxu0 0.0
        %3775 = vmatprep.subr.mxu0 0.0
        %3776 = vmatpush1.msra.mxu0 0.0
        %3777 = vmatprep.subr.mxu0 0.0
        %3778 = vmatpush1.msra.mxu0 0.0
        %3779 = vmatprep.subr.mxu0 0.0
        %3780 = vmatpush1.msra.mxu0 0.0
        %3781 = vmatprep.subr.mxu0 0.0
        %3782 = vmatpush1.msra.mxu0 0.0
        %3783 = vmatprep.subr.mxu0 0.0
        %3784 = vmatpush1.msra.mxu0 0.0
        %3785 = vmatprep.subr.mxu0 0.0
        %3786 = vmatpush1.msra.mxu0 0.0
        %3787 = vmatprep.subr.mxu0 0.0
        %3788 = vmatpush1.msra.mxu0 0.0
        %3789 = vmatprep.mubr.f32.mxu0 0.0
        %3790 = vmatmul.mubr.f32.gmra.mrb[0].mxu0 %v3714
        %v3791 = vpop.f32.mrb[0].mxu0
        %v3792 = vadd.f32 0.0, %v3791
        %v3793 = vpop.f32.mrb[0].mxu0
        %v3794 = vadd.f32 0.0, %v3793
        %3795 = vmatprep.mubr.f32.mxu0 0.0
        %3796 = vmatmul.mubr.f32.gmra.mrb[0].mxu0 %v3717
        %v3797 = vpop.f32.mrb[0].mxu0
        %v3798 = vadd.f32 0.0, %v3797
        %v3799 = vpop.f32.mrb[0].mxu0
        %v3800 = vadd.f32 0.0, %v3799
        %3801 = vmatprep.mubr.f32.mxu0 0.0
        %3802 = vmatmul.mubr.f32.gmra.mrb[0].mxu0 %v3720
        %v3803 = vpop.f32.mrb[0].mxu0
        %v3804 = vadd.f32 0.0, %v3803
        %v3805 = vpop.f32.mrb[0].mxu0
        %v3806 = vadd.f32 0.0, %v3805
        %3807 = vmatprep.mubr.f32.mxu0 0.0
        %3808 = vmatmul.mubr.f32.gmra.mrb[0].mxu0 %v3723
        %v3809 = vpop.f32.mrb[0].mxu0
        %v3810 = vadd.f32 0.0, %v3809
        %v3811 = vpop.f32.mrb[0].mxu0
        %v3812 = vadd.f32 0.0, %v3811
        %3813 = vdwg.mxu0
        %v3814 = vadd.f32 %v3494, %v3792
        %v3815 = vadd.f32 %v3496, %v3794
        %v3816 = vadd.f32 %v3500, %v3798
        %v3817 = vadd.f32 %v3502, %v3800
        %v3818 = vadd.f32 %v3506, %v3804
        %v3819 = vadd.f32 %v3508, %v3806
        %v3820 = vadd.f32 %v3512, %v3810
        %v3821 = vadd.f32 %v3514, %v3812
        %s3822 = scalar_lea.vmem %s2, 160
        %v3823 = vld [vmem:[%s3822] sm:$0xff]
        %v3824 = vld [vmem:[%s3822 + $0x8] sm:$0xff]
        %v3825 = vld [vmem:[%s3822 + $0x10] sm:$0xff]
        %v3826 = vld [vmem:[%s3822 + $0x18] sm:$0xff]
        %3828 = vset.pattern.permute.xlu0 0
        %3829 = vperm.xlu0 %3828, %v3823
        %v3830 = vpop.permute.xlu0 %3829
        %3833 = vset.pattern.permute.xlu0 0
        %3834 = vperm.xlu0 %3833, %v3824
        %v3835 = vpop.permute.xlu0 %3834
        %3838 = vset.pattern.permute.xlu0 0
        %3839 = vperm.xlu0 %3838, %v3825
        %v3840 = vpop.permute.xlu0 %3839
        %3843 = vset.pattern.permute.xlu0 0
        %3844 = vperm.xlu0 %3843, %v3826
        %v3845 = vpop.permute.xlu0 %3844
        %v3847 = vadd.f32 %v3814, %v3830
        %v3848 = vadd.f32 %v3815, %v3830
        %v3849 = vadd.f32 %v3816, %v3835
        %v3850 = vadd.f32 %v3817, %v3835
        %v3851 = vadd.f32 %v3818, %v3840
        %v3852 = vadd.f32 %v3819, %v3840
        %v3853 = vadd.f32 %v3820, %v3845
        %v3854 = vadd.f32 %v3821, %v3845
        %v3855 = vld [vmem:[#allocation3] sm:$0xff]
        %v3856 = vld [vmem:[#allocation3 + $0x8] sm:$0xff]
        %v3857 = vld [vmem:[#allocation3 + $0x10] sm:$0xff]
        %v3858 = vld [vmem:[#allocation3 + $0x18] sm:$0xff]
        %v3859 = vld [vmem:[#allocation3 + $0x20] sm:$0xff]
        %v3860 = vld [vmem:[#allocation3 + $0x28] sm:$0xff]
        %v3861 = vld [vmem:[#allocation3 + $0x30] sm:$0xff]
        %v3862 = vld [vmem:[#allocation3 + $0x38] sm:$0xff]
        %v3863 = vadd.f32 %v3847, %v3855
        %v3864 = vadd.f32 %v3848, %v3856
        %v3865 = vadd.f32 %v3849, %v3857
        %v3866 = vadd.f32 %v3850, %v3858
        %v3867 = vadd.f32 %v3851, %v3859
        %v3868 = vadd.f32 %v3852, %v3860
        %v3869 = vadd.f32 %v3853, %v3861
        %v3870 = vadd.f32 %v3854, %v3862
        %3871 = vst [vmem:[%s178] sm:$0xff] %v3863
        %3872 = vst [vmem:[%s178 + $0x8] sm:$0xff] %v3864
        %3873 = vst [vmem:[%s178 + $0x10] sm:$0xff] %v3865
        %3874 = vst [vmem:[%s178 + $0x18] sm:$0xff] %v3866
        %3875 = vst [vmem:[%s178 + $0x20] sm:$0xff] %v3867
        %3876 = vst [vmem:[%s178 + $0x28] sm:$0xff] %v3868
        %3877 = vst [vmem:[%s178 + $0x30] sm:$0xff] %v3869
        %3878 = vst [vmem:[%s178 + $0x38] sm:$0xff] %v3870
        %s3879 = sand.u32 %s94, 1
        %s3880 = scalar_lea.sflag [#allocation7], %s3879
        %s3881 = sand.u32 %s94, 1
        %s3882 = smul.addr %s3881, 64
        %s3883 = scalar_lea.vmem [#allocation8], %s3882
        // Predicated region
        $region44: #{tpu_custom_call.1} parent=31 // pred_check
          %p3884 = pneg %p104
        $region45: #{tpu_custom_call.1} parent=31 // pred_check_branch
          %3886 = sbr.rel (%p3884) target = $region47
        $region46: #{tpu_custom_call.1} parent=31 // pred_region
          %s3888 = ssub.s32 1024, 1024
          %3889 = vsyncadd %s3880, %s3888
          %s3890 = smul.addr %s18, 8
          %s3891 = smul.addr %s3890, 128
          %s3892 = scalar_lea.hbm %s3, %s3891
          %s3893 = sshll.u32 %s3883, 4
          %s3894 = int_to_ptr.vmem [resolvable:$true] %s3893
          %3899 = dma.vmem_to_hbm [thread:$0]  %s3894, 1024, %s3892, %s3880, 256, 256, 16
        $region47: #{tpu_custom_call.1} parent=31 // pred_fallthru
          _
      $region32: #{tpu_custom_call.1} parent=5 // pred_fallthru
        _
      %p3900 = scmp.le.s32.totalorder 2, %s13
      // Predicated region
      $region48: #{tpu_custom_call.1} parent=5 // pred_check
        %p3901 = pneg %p3900
      $region49: #{tpu_custom_call.1} parent=5 // pred_check_branch
        %3903 = sbr.rel (%p3901) target = $region51
      $region50: #{tpu_custom_call.1} parent=5 // pred_region
        %s3904 = ssub.s32 %s13, 2
        // Predicated region
        $region52: #{tpu_custom_call.1} parent=50 // pred_check
          %p3905 = pneg %p110
        $region53: #{tpu_custom_call.1} parent=50 // pred_check_branch
          %3907 = sbr.rel (%p3905) target = $region55
        $region54: #{tpu_custom_call.1} parent=50 // pred_region
          %s3908 = sand.u32 %s95, 1
          %s3909 = scalar_lea.sflag [#allocation7], %s3908
          %s3910 = sand.u32 %s95, 1
          %s3911 = smul.addr %s3910, 64
          %s3912 = scalar_lea.vmem [#allocation8], %s3911
          %3913 = dma.done %s3909, 1024
        $region55: #{tpu_custom_call.1} parent=50 // pred_fallthru
          _
      $region51: #{tpu_custom_call.1} parent=5 // pred_fallthru
        _
    $region6: #{tpu_custom_call.1} parent=1 // loop_footer
      %s17 = sadd.s32 1, %s13
    $region7: #{tpu_custom_call.1} parent=1 // loop_footer_branch
      %12 = sbr.rel target = $region3
    $region8: #{tpu_custom_call.1} parent=1 // loop_exit
      _
    %3914 = vsyncpa [#allocation6], 1
    %s3915 = scalar_lea.sflag [#allocation6], 1
    %3916 = vsyncpa %s3915, 1
    %3917 = vsyncpa [#allocation7], 1
    %s3918 = scalar_lea.sflag [#allocation7], 1
    %3919 = vsyncpa %s3918, 1

</llo_original>
